<compile_context>
chip_gen: v5e
topology: v5e:2x2
jax: 0.10.0
libtpu: 0.0.40
codegen_flags: <defaults>
</compile_context>

<pallas_src>
import numpy as np

import jax
import jax.numpy as jnp
from jax import lax
from jax.experimental import pallas as pl
from jax.experimental.pallas import tpu as pltpu

# MXU input dtype (accumulation / bias / ReLU always stay float32).
MATMUL_DTYPE = jnp.bfloat16

# (out_channels, kernel, stride) for the 4 conv layers — static config.
CONV_DEFS = (
    (16, 8, 4),
    (32, 4, 4),
    (64, 3, 2),
    (64, 3, 2),
)


# ---------------------------------------------------------------------------
# Kernel 1: conv layer 1 as a tiled matmul (im2col patches @ packed weight)
# ---------------------------------------------------------------------------
def _conv1_matmul_kernel(x_ref, w_ref, b_ref, o_ref):
    y = jnp.dot(x_ref[...], w_ref[...], preferred_element_type=jnp.float32)
    y = jnp.maximum(y + b_ref[...], 0.0)          # f32 bias + ReLU epilogue
    o_ref[...] = y.astype(o_ref.dtype)            # bf16 writeback


def _pick_tile_m(m, cap=1024):
    """Largest M-tile that divides M, is a multiple of the bf16 sublane tile
    (16) and stays <= `cap` rows (~400 KB per double-buffered input tile at
    K=192 bf16) — sized from a VMEM budget instead of a fixed split."""
    if m <= cap:
        return m
    for tm in range(cap - cap % 16, 15, -16):
        if m % tm == 0:
            return tm
    return m  # no aligned divisor: single block (fine at the sizes used here)


def conv1_matmul(patches, w, b):
    """(relu)(patches @ w + b) with bf16 inputs, f32 epilogue, bf16 output."""
    M, K = patches.shape
    _, N = w.shape
    tm = _pick_tile_m(M)
    grid = (M // tm,)
    return pl.pallas_call(
        _conv1_matmul_kernel,
        out_shape=jax.ShapeDtypeStruct((M, N), MATMUL_DTYPE),
        grid=grid,
        in_specs=[
            pl.BlockSpec((tm, K), lambda i: (i, 0)),
            pl.BlockSpec((K, N), lambda i: (0, 0)),
            pl.BlockSpec((1, N), lambda i: (0, 0)),
        ],
        out_specs=pl.BlockSpec((tm, N), lambda i: (i, 0)),
        compiler_params=pltpu.CompilerParams(
            dimension_semantics=("parallel",)),
    )(patches, w, b)


# ---------------------------------------------------------------------------
# Kernel 2: fused conv2 + conv3 + conv4 + both Q heads (single invocation)
# ---------------------------------------------------------------------------
def _tail_kernel(p2_ref, act_ref, st_ref,
                 w2c_ref, b2c_ref,
                 g3_ref, w3c_ref, b3c_ref,
                 g4_ref, w4c_ref, b4c_ref,
                 gim_ref, w1im_ref, w1a_ref, w1s_ref, b1_ref,
                 wm2_ref, bm2_ref, wm3_ref, bm3_ref,
                 o_ref):
    f32 = jnp.float32
    bf16 = MATMUL_DTYPE

    # conv layer 2 (kernel == stride): patch matrix was a pure reshape.
    h2 = jnp.dot(p2_ref[...], w2c_ref[...], preferred_element_type=f32)
    h2 = jnp.maximum(h2 + b2c_ref[...], 0.0).astype(bf16)

    # conv layer 3 (3x3 s2): per-tap static 0/1 gather matmul + weight matmul.
    acc3 = None
    for t in range(g3_ref.shape[0]):
        gath = jnp.dot(g3_ref[t], h2, preferred_element_type=f32).astype(bf16)
        contrib = jnp.dot(gath, w3c_ref[t], preferred_element_type=f32)
        acc3 = contrib if acc3 is None else acc3 + contrib
    h3 = jnp.maximum(acc3 + b3c_ref[...], 0.0).astype(bf16)

    # conv layer 4 (3x3 s2).
    acc4 = None
    for t in range(g4_ref.shape[0]):
        gath = jnp.dot(g4_ref[t], h3, preferred_element_type=f32).astype(bf16)
        contrib = jnp.dot(gath, w4c_ref[t], preferred_element_type=f32)
        acc4 = contrib if acc4 is None else acc4 + contrib
    h4 = jnp.maximum(acc4 + b4c_ref[...], 0.0).astype(bf16)

    # Q heads, layer 1: torch.cat((im, action, state), 1) folded into
    # row-block matmuls; torch's channel-major Flatten folded into
    # per-spatial-position W1 row blocks (one iteration when spatial is 1x1).
    acc1 = None
    for p in range(gim_ref.shape[0]):
        gath = jnp.dot(gim_ref[p], h4, preferred_element_type=f32).astype(bf16)
        contrib = jnp.dot(gath, w1im_ref[p], preferred_element_type=f32)
        acc1 = contrib if acc1 is None else acc1 + contrib
    acc1 = acc1 + jnp.dot(act_ref[...].astype(bf16), w1a_ref[...],
                          preferred_element_type=f32)
    acc1 = acc1 + jnp.dot(st_ref[...].astype(bf16), w1s_ref[...],
                          preferred_element_type=f32)
    h5 = jnp.maximum(acc1 + b1_ref[...], 0.0).astype(bf16)

    # Q heads, layers 2 and 3 (block-diagonal so q1/q2 stay independent).
    h6 = jnp.dot(h5, wm2_ref[...], preferred_element_type=f32)
    h6 = jnp.maximum(h6 + bm2_ref[...], 0.0).astype(bf16)
    q = jnp.dot(h6, wm3_ref[...], preferred_element_type=f32) + bm3_ref[...]
    o_ref[...] = q.astype(o_ref.dtype)            # col 0 = q1, col 1 = q2


def fused_tail(p2, action, state, g3, g4, gim, pp):
    B = action.shape[0]
    args = (p2, action.astype(jnp.float32), state.astype(jnp.float32),
            pp["w_c2"], pp["b_c2"],
            g3, pp["w_c3"], pp["b_c3"],
            g4, pp["w_c4"], pp["b_c4"],
            gim, pp["w1_im"], pp["w1_act"], pp["w1_st"], pp["b1"],
            pp["w2"], pp["b2"], pp["w3"], pp["b3"])
    vmem = pl.BlockSpec(memory_space=pltpu.MemorySpace.VMEM)
    return pl.pallas_call(
        _tail_kernel,
        out_shape=jax.ShapeDtypeStruct((B, 2), jnp.float32),
        in_specs=[vmem] * len(args),
        out_specs=vmem,
    )(*args)


# ---------------------------------------------------------------------------
# Host-side im2col (NHWC, flatten order (KH, KW, C)) and weight packing
# ---------------------------------------------------------------------------
def im2col_nhwc(x, kh, kw, stride):
    N, H, W, C = x.shape
    oh = (H - kh) // stride + 1
    ow = (W - kw) // stride + 1
    if kh == stride and kw == stride and H % stride == 0 and W % stride == 0:
        # Non-overlapping patches (conv layer 2): pure reshape/transpose.
        p = x.reshape(N, oh, kh, ow, kw, C).transpose(0, 1, 3, 2, 4, 5)
        return p.reshape(N * oh * ow, kh * kw * C), oh, ow
    if kh % stride == 0 and kw % stride == 0 and H % stride == 0 and W % stride == 0:
        # Kernel a multiple of the stride (conv layer 1, 8x8 s4): 4 shifted
        # tilings instead of 64 strided slices.
        rb, cb = kh // stride, kw // stride
        t = x.reshape(N, H // stride, stride, W // stride, stride, C)
        rows = []
        for bi in range(rb):
            cols = []
            for bj in range(cb):
                cols.append(t[:, bi:bi + oh, :, bj:bj + ow, :, :])
            rows.append(jnp.stack(cols, axis=4))     # (N, oh, s, ow, cb, s, C)
        p = jnp.stack(rows, axis=2)                  # (N, oh, rb, s, ow, cb, s, C)
        p = p.transpose(0, 1, 4, 2, 3, 5, 6, 7)      # (N, oh, ow, rb, s, cb, s, C)
        return p.reshape(N * oh * ow, kh * kw * C), oh, ow
    # General strided fallback (not hit for the default config).
    cols = []
    for i in range(kh):
        for j in range(kw):
            cols.append(x[:, i:i + stride * oh:stride, j:j + stride * ow:stride, :])
    p = jnp.stack(cols, axis=3)
    return p.reshape(N * oh * ow, kh * kw * C), oh, ow


def _w_nhwc(w):
    # torch Conv2d layout (OC, IC, KH, KW) -> (KH, KW, IC, OC).
    return jnp.transpose(w, (2, 3, 1, 0))


def pack_conv_layer0(w_a, w_b):
    # Conv layer 1: both branches share the image -> concat output channels.
    oc, c, kh, kw = w_a.shape
    w = jnp.concatenate([_w_nhwc(w_a), _w_nhwc(w_b)], axis=3)
    return w.reshape(kh * kw * c, 2 * oc)


def pack_conv_layer(w_a, w_b):
    # Packed-channel activation: block-diagonal per (kh, kw) tap, flattened
    # in (KH, KW, 2C) order to match the im2col column order.
    oc, c, kh, kw = w_a.shape
    a = _w_nhwc(w_a)
    b = _w_nhwc(w_b)
    z = jnp.zeros_like(a)
    top = jnp.concatenate([a, z], axis=3)
    bot = jnp.concatenate([z, b], axis=3)
    w = jnp.concatenate([top, bot], axis=2)          # (KH, KW, 2C, 2OC)
    return w.reshape(kh * kw * 2 * c, 2 * oc)


def pack_conv_taps(w_a, w_b):
    # Per-tap block-diagonal stack (KH*KW, 2C, 2OC), tap index = ki*KW + kj.
    oc, c, kh, kw = w_a.shape
    a = _w_nhwc(w_a).reshape(kh * kw, c, oc)
    b = _w_nhwc(w_b).reshape(kh * kw, c, oc)
    z = jnp.zeros_like(a)
    top = jnp.concatenate([a, z], axis=2)
    bot = jnp.concatenate([z, b], axis=2)
    return jnp.concatenate([top, bot], axis=1)       # (KH*KW, 2C, 2OC)


def block_diag2(a, b):
    ka, na = a.shape
    kb, nb = b.shape
    return jnp.concatenate([
        jnp.concatenate([a, jnp.zeros((ka, nb), a.dtype)], axis=1),
        jnp.concatenate([jnp.zeros((kb, na), b.dtype), b], axis=1),
    ], axis=0)


# ---------------------------------------------------------------------------
# Static 0/1 gather matrices (trace-time numpy constants) for the fused tail
# ---------------------------------------------------------------------------
def _gather_taps(batch, ih, iw, k, s):
    """g[t, out_row, in_row] = 1 selects input row (b, s*oy+ki, s*ox+kj) for
    output row (b, oy, ox) and tap t = ki*k + kj."""
    oh = (ih - k) // s + 1
    ow = (iw - k) // s + 1
    g = np.zeros((k * k, batch * oh * ow, batch * ih * iw), np.float32)
    for ki in range(k):
        for kj in range(k):
            t = ki * k + kj
            for b in range(batch):
                for oy in range(oh):
                    for ox in range(ow):
                        r = (b * oh + oy) * ow + ox
                        c = (b * ih + (s * oy + ki)) * iw + (s * ox + kj)
                        g[t, r, c] = 1.0
    return jnp.asarray(g, dtype=MATMUL_DTYPE), oh, ow


def _gather_spatial(batch, s4):
    g = np.zeros((s4, batch, batch * s4), np.float32)
    for p in range(s4):
        for b in range(batch):
            g[p, b, b * s4 + p] = 1.0
    return jnp.asarray(g, dtype=MATMUL_DTYPE)


# ---------------------------------------------------------------------------
# Parameter construction + one-time packing
# ---------------------------------------------------------------------------
def _uniform(key, shape, fan_in):
    bound = 1.0 / jnp.sqrt(jnp.float32(fan_in))
    return jax.random.uniform(key, shape, jnp.float32, -bound, bound)


def make_conv_branch(key, n_in_channels):
    params = []
    ic = n_in_channels
    for (oc, k, _s) in CONV_DEFS:
        key, kw_key, kb_key = jax.random.split(key, 3)
        fan_in = ic * k * k
        w = _uniform(kw_key, (oc, ic, k, k), fan_in)   # torch Conv2d layout
        b = _uniform(kb_key, (oc,), fan_in)
        params.append((w, b))
        ic = oc
    return params


def make_mlp_head(key, in_dim, hidden_units):
    dims = [(in_dim, hidden_units), (hidden_units, hidden_units), (hidden_units, 1)]
    params = []
    for (din, dout) in dims:
        key, kw_key, kb_key = jax.random.split(key, 3)
        w = _uniform(kw_key, (din, dout), din)         # (in, out): y = x @ w + b
        b = _uniform(kb_key, (1, dout), din)
        params.append((w, b))
    return params


def conv_stack_output_hw(image_dim):
    h, w = image_dim
    for (_, k, s) in CONV_DEFS:
        h = (h - k) // s + 1
        w = (w - k) // s + 1
    return h, w


def make_double_critic_params(key, n_in_channels, image_dim, action_size,
                              state_size, hidden_units):
    h, w = conv_stack_output_hw(image_dim)
    im_feature_size = CONV_DEFS[-1][0] * h * w
    in_dim = im_feature_size + state_size + action_size
    k1, k2, k3, k4 = jax.random.split(key, 4)
    return {
        "conv1": make_conv_branch(k1, n_in_channels),
        "conv2": make_conv_branch(k2, n_in_channels),
        "q1": make_mlp_head(k3, in_dim, hidden_units),
        "q2": make_mlp_head(k4, in_dim, hidden_units),
    }


def prepare_params(params, image_dim, action_size, state_size):
    """Pack / cast all weights ONCE (per parameter update), outside forward."""
    conv_a, conv_b = params["conv1"], params["conv2"]
    (w1_a, b1_a), (w2_a, b2_a), (w3_a, b3_a) = params["q1"]
    (w1_b, b1_b), (w2_b, b2_b), (w3_b, b3_b) = params["q2"]

    oh, ow = conv_stack_output_hw(image_dim)
    s4 = oh * ow
    feat = CONV_DEFS[-1][0] * s4

    bf = lambda t: t.astype(MATMUL_DTYPE)
    f32 = lambda t: t.astype(jnp.float32)
    cat_b = lambda a, b: f32(jnp.concatenate([a, b]).reshape(1, -1))

    packed = {
        "w_c1": bf(pack_conv_layer0(conv_a[0][0], conv_b[0][0])),
        "b_c1": cat_b(conv_a[0][1], conv_b[0][1]),
        "w_c2": bf(pack_conv_layer(conv_a[1][0], conv_b[1][0])),
        "b_c2": cat_b(conv_a[1][1], conv_b[1][1]),
        "w_c3": bf(pack_conv_taps(conv_a[2][0], conv_b[2][0])),
        "b_c3": cat_b(conv_a[2][1], conv_b[2][1]),
        "w_c4": bf(pack_conv_taps(conv_a[3][0], conv_b[3][0])),
        "b_c4": cat_b(conv_a[3][1], conv_b[3][1]),
    }
    # MLP layer 1: rows ordered [image | action | state] (torch.cat order);
    # torch's channel-major Flatten -> per-spatial-position row blocks.
    a_im, b_im = w1_a[:feat], w1_b[:feat]
    packed["w1_im"] = bf(jnp.stack(
        [block_diag2(a_im[p::s4], b_im[p::s4]) for p in range(s4)], axis=0))
    packed["w1_act"] = bf(jnp.concatenate(
        [w1_a[feat:feat + action_size], w1_b[feat:feat + action_size]], axis=1))
    packed["w1_st"] = bf(jnp.concatenate(
        [w1_a[feat + action_size:], w1_b[feat + action_size:]], axis=1))
    packed["b1"] = f32(jnp.concatenate([b1_a, b1_b], axis=1))
    packed["w2"] = bf(block_diag2(w2_a, w2_b))
    packed["b2"] = f32(jnp.concatenate([b2_a, b2_b], axis=1))
    packed["w3"] = bf(block_diag2(w3_a, w3_b))
    packed["b3"] = f32(jnp.concatenate([b3_a, b3_b], axis=1))
    return packed


# ---------------------------------------------------------------------------
# Forward pass (== DoubleCritic.forward, training=False)
# ---------------------------------------------------------------------------
def double_critic_forward(packed, low_dim_states, top_down_rgb, action):
    B = top_down_rgb.shape[0]
    oc0, k0, s0 = CONV_DEFS[0]
    oc1, k1, s1 = CONV_DEFS[1]
    _, k2, s2 = CONV_DEFS[2]
    _, k3, s3 = CONV_DEFS[3]

    # NCHW -> NHWC once + bf16 cast of the small raw image.
    x = jnp.transpose(top_down_rgb, (0, 2, 3, 1)).astype(MATMUL_DTYPE)

    # conv layer 1: host-side im2col (cheap) + Pallas tiled matmul kernel.
    patches, oh1, ow1 = im2col_nhwc(x, k0, k0, s0)
    y1 = conv1_matmul(patches, packed["w_c1"], packed["b_c1"])   # bf16 out

    # conv layer 2 patch matrix: kernel == stride -> pure reshape (tiny, bf16).
    x1 = y1.reshape(B, oh1, ow1, 2 * oc0)
    p2, oh2, ow2 = im2col_nhwc(x1, k1, k1, s1)

    # Static gather constants for the fused tail kernel (trace-time numpy).
    g3, oh3, ow3 = _gather_taps(B, oh2, ow2, k2, s2)
    g4, oh4, ow4 = _gather_taps(B, oh3, ow3, k3, s3)
    gim = _gather_spatial(B, oh4 * ow4)

    # conv2 + conv3 + conv4 + both Q heads: one fused Pallas kernel.
    q = fused_tail(p2, action, low_dim_states, g3, g4, gim, packed)
    return q[:, 0:1], q[:, 1:2]


# ---------------------------------------------------------------------------
# Pure-JAX f32 reference (for a loosened-tolerance correctness check)
# ---------------------------------------------------------------------------
def reference_forward(params, low_dim_states, top_down_rgb, action):
    def conv_branch(branch, x):
        for (w, b), (_, _k, s) in zip(branch, CONV_DEFS):
            x = lax.conv_general_dilated(
                x, w, (s, s), "VALID",
                dimension_numbers=("NCHW", "OIHW", "NCHW"))
            x = jax.nn.relu(x + b.reshape(1, -1, 1, 1))
        return x.reshape(x.shape[0], -1)

    def head(hp, im):
        z = jnp.concatenate([im, action, low_dim_states], axis=1)
        (w1, b1), (w2, b2), (w3, b3) = hp
        z = jax.nn.relu(z @ w1 + b1)
        z = jax.nn.relu(z @ w2 + b2)
        return z @ w3 + b3

    im1 = conv_branch(params["conv1"], top_down_rgb)
    im2 = conv_branch(params["conv2"], top_down_rgb)
    return head(params["q1"], im1), head(params["q2"], im2)


if __name__ == "__main__":
    # Smallest square image for which all four strided convs are valid.
    batch = 2
    n_in_channels = 3
    image_dim = (116, 116)
    action_size = 4
    state_size = 8
    hidden_units = 32

    key = jax.random.PRNGKey(0)
    pkey, xkey, akey, skey = jax.random.split(key, 4)

    params = make_double_critic_params(
        pkey, n_in_channels, image_dim, action_size, state_size, hidden_units)
    # One-time weight packing (NOT part of the per-step jitted forward).
    packed = prepare_params(params, image_dim, action_size, state_size)

    top_down_rgb = jax.random.normal(
        xkey, (batch, n_in_channels, *image_dim), jnp.float32)
    low_dim_states = jax.random.normal(skey, (batch, state_size), jnp.float32)
    action = jax.random.normal(akey, (batch, action_size), jnp.float32)

    fwd = jax.jit(double_critic_forward)
    q1, q2 = fwd(packed, low_dim_states, top_down_rgb, action)
    jax.block_until_ready((q1, q2))

    assert q1.shape == (batch, 1) and q2.shape == (batch, 1)
    assert q1.dtype == jnp.float32 and q2.dtype == jnp.float32
    assert bool(jnp.all(jnp.isfinite(q1))) and bool(jnp.all(jnp.isfinite(q2)))

    # Loosened-tolerance check vs. the f32 reference (bf16 matmul inputs).
    r1, r2 = jax.jit(reference_forward)(params, low_dim_states, top_down_rgb, action)
    jax.block_until_ready((r1, r2))
    assert bool(jnp.allclose(q1, r1, atol=1e-1, rtol=1e-1)), (q1, r1)
    assert bool(jnp.allclose(q2, r2, atol=1e-1, rtol=1e-1)), (q2, r2)

    print("KERNEL_OK")
</pallas_src>

<mosaic_0001>
module attributes {stable_mosaic.version = 11 : i64} {
  func.func @_conv1_matmul_kernel(%arg0: i32, %arg1: memref<784x192xbf16, #tpu.memory_space<vmem>>, %arg2: memref<192x32xbf16, #tpu.memory_space<vmem>>, %arg3: memref<1x32xf32, #tpu.memory_space<vmem>>, %arg4: memref<784x32xbf16, #tpu.memory_space<vmem>>) attributes {dimension_semantics = [#tpu.dimension_semantics<parallel>], iteration_bounds = array<i64: 2>, scalar_prefetch = 0 : i64, scratch_operands = 0 : i64, tpu.core_type = #tpu.core_type<tc>, window_params = [{transform_indices = @transform_0, window_bounds = array<i64: 784, 192>}, {pipeline_mode = #tpu.pipeline_mode<synchronous>, transform_indices = @transform_1, window_bounds = array<i64: 192, 32>}, {pipeline_mode = #tpu.pipeline_mode<synchronous>, transform_indices = @transform_2, window_bounds = array<i64: 1, 32>}, {transform_indices = @transform_3, window_bounds = array<i64: 784, 32>}]} {
    %c0 = arith.constant 0 : index
    %c0_0 = arith.constant 0 : index
    %0 = vector.load %arg1[%c0, %c0_0] : memref<784x192xbf16, #tpu.memory_space<vmem>>, vector<784x192xbf16>
    %c0_1 = arith.constant 0 : index
    %c0_2 = arith.constant 0 : index
    %1 = vector.load %arg2[%c0_1, %c0_2] : memref<192x32xbf16, #tpu.memory_space<vmem>>, vector<192x32xbf16>
    %cst = arith.constant dense<0.000000e+00> : vector<784x32xf32>
    %2 = tpu.matmul %0, %1, %cst {dimension_numbers = #tpu.dot_dimension_numbers<[1], [0], [0], [1], [0, 0, 1, 1], [], []>} : vector<784x192xbf16>, vector<192x32xbf16>, vector<784x32xf32> -> vector<784x32xf32>
    %c0_3 = arith.constant 0 : index
    %c0_4 = arith.constant 0 : index
    %3 = vector.load %arg3[%c0_3, %c0_4] : memref<1x32xf32, #tpu.memory_space<vmem>>, vector<1x32xf32>
    %4 = vector.broadcast %3 : vector<1x32xf32> to vector<784x32xf32>
    %5 = arith.addf %2, %4 : vector<784x32xf32>
    %cst_5 = arith.constant 0.000000e+00 : f32
    %6 = vector.broadcast %cst_5 : f32 to vector<784x32xf32>
    %7 = arith.maximumf %5, %6 : vector<784x32xf32>
    %8 = arith.truncf %7 : vector<784x32xf32> to vector<784x32xbf16>
    %c0_6 = arith.constant 0 : index
    %c0_7 = arith.constant 0 : index
    %9 = vector.load %arg4[%c0_6, %c0_7] : memref<784x32xbf16, #tpu.memory_space<vmem>>, vector<784x32xbf16>
    tpu.vector_store %arg4[%c0_6, %c0_7], %8 {strides = array<i32>} : memref<784x32xbf16, #tpu.memory_space<vmem>>, vector<784x32xbf16>,
    return
  }
  func.func @transform_0(%arg0: i32) -> (i32, i32) {
    %c0_i32 = arith.constant 0 : i32
    %c0_i32_0 = arith.constant 0 : i32
    return %arg0, %c0_i32 : i32, i32
  }
  func.func @transform_1(%arg0: i32) -> (i32, i32) {
    %c0_i32 = arith.constant 0 : i32
    %c0_i32_0 = arith.constant 0 : i32
    %c0_i32_1 = arith.constant 0 : i32
    return %c0_i32, %c0_i32_0 : i32, i32
  }
  func.func @transform_2(%arg0: i32) -> (i32, i32) {
    %c0_i32 = arith.constant 0 : i32
    %c0_i32_0 = arith.constant 0 : i32
    %c0_i32_1 = arith.constant 0 : i32
    return %c0_i32, %c0_i32_0 : i32, i32
  }
  func.func @transform_3(%arg0: i32) -> (i32, i32) {
    %c0_i32 = arith.constant 0 : i32
    %c0_i32_0 = arith.constant 0 : i32
    return %arg0, %c0_i32 : i32, i32
  }
}

module attributes {stable_mosaic.version = 11 : i64} {
  func.func @_tail_kernel(%arg0: memref<98x512xbf16, #tpu.memory_space<vmem>>, %arg1: memref<2x4xf32, #tpu.memory_space<vmem>>, %arg2: memref<2x8xf32, #tpu.memory_space<vmem>>, %arg3: memref<512x64xbf16, #tpu.memory_space<vmem>>, %arg4: memref<1x64xf32, #tpu.memory_space<vmem>>, %arg5: memref<9x18x98xbf16, #tpu.memory_space<vmem>>, %arg6: memref<9x64x128xbf16, #tpu.memory_space<vmem>>, %arg7: memref<1x128xf32, #tpu.memory_space<vmem>>, %arg8: memref<9x2x18xbf16, #tpu.memory_space<vmem>>, %arg9: memref<9x128x128xbf16, #tpu.memory_space<vmem>>, %arg10: memref<1x128xf32, #tpu.memory_space<vmem>>, %arg11: memref<1x2x2xbf16, #tpu.memory_space<vmem>>, %arg12: memref<1x128x64xbf16, #tpu.memory_space<vmem>>, %arg13: memref<4x64xbf16, #tpu.memory_space<vmem>>, %arg14: memref<8x64xbf16, #tpu.memory_space<vmem>>, %arg15: memref<1x64xf32, #tpu.memory_space<vmem>>, %arg16: memref<64x64xbf16, #tpu.memory_space<vmem>>, %arg17: memref<1x64xf32, #tpu.memory_space<vmem>>, %arg18: memref<64x2xbf16, #tpu.memory_space<vmem>>, %arg19: memref<1x2xf32, #tpu.memory_space<vmem>>, %arg20: memref<2x2xf32, #tpu.memory_space<vmem>>) attributes {dimension_semantics = [], scalar_prefetch = 0 : i64, scratch_operands = 0 : i64, tpu.core_type = #tpu.core_type<tc>} {
    %c0 = arith.constant 0 : index
    %c0_0 = arith.constant 0 : index
    %0 = vector.load %arg0[%c0, %c0_0] : memref<98x512xbf16, #tpu.memory_space<vmem>>, vector<98x512xbf16>
    %c0_1 = arith.constant 0 : index
    %c0_2 = arith.constant 0 : index
    %1 = vector.load %arg3[%c0_1, %c0_2] : memref<512x64xbf16, #tpu.memory_space<vmem>>, vector<512x64xbf16>
    %cst = arith.constant dense<0.000000e+00> : vector<98x64xf32>
    %2 = tpu.matmul %0, %1, %cst {dimension_numbers = #tpu.dot_dimension_numbers<[1], [0], [0], [1], [0, 0, 1, 1], [], []>} : vector<98x512xbf16>, vector<512x64xbf16>, vector<98x64xf32> -> vector<98x64xf32>
    %c0_3 = arith.constant 0 : index
    %c0_4 = arith.constant 0 : index
    %3 = vector.load %arg4[%c0_3, %c0_4] : memref<1x64xf32, #tpu.memory_space<vmem>>, vector<1x64xf32>
    %4 = vector.broadcast %3 : vector<1x64xf32> to vector<98x64xf32>
    %5 = arith.addf %2, %4 : vector<98x64xf32>
    %cst_5 = arith.constant 0.000000e+00 : f32
    %6 = vector.broadcast %cst_5 : f32 to vector<98x64xf32>
    %7 = arith.maximumf %5, %6 : vector<98x64xf32>
    %8 = arith.truncf %7 : vector<98x64xf32> to vector<98x64xbf16>
    %c0_6 = arith.constant 0 : index
    %c0_7 = arith.constant 0 : index
    %c0_8 = arith.constant 0 : index
    %9 = vector.load %arg5[%c0_6, %c0_7, %c0_8] : memref<9x18x98xbf16, #tpu.memory_space<vmem>>, vector<1x18x98xbf16>
    %10 = vector.shape_cast %9 : vector<1x18x98xbf16> to vector<18x98xbf16>
    %cst_9 = arith.constant dense<0.000000e+00> : vector<18x64xf32>
    %11 = tpu.matmul %10, %8, %cst_9 {dimension_numbers = #tpu.dot_dimension_numbers<[1], [0], [0], [1], [0, 0, 1, 1], [], []>} : vector<18x98xbf16>, vector<98x64xbf16>, vector<18x64xf32> -> vector<18x64xf32>
    %12 = arith.truncf %11 : vector<18x64xf32> to vector<18x64xbf16>
    %c0_10 = arith.constant 0 : index
    %c0_11 = arith.constant 0 : index
    %c0_12 = arith.constant 0 : index
    %13 = vector.load %arg6[%c0_10, %c0_11, %c0_12] : memref<9x64x128xbf16, #tpu.memory_space<vmem>>, vector<1x64x128xbf16>
    %14 = vector.shape_cast %13 : vector<1x64x128xbf16> to vector<64x128xbf16>
    %cst_13 = arith.constant dense<0.000000e+00> : vector<18x128xf32>
    %15 = tpu.matmul %12, %14, %cst_13 {dimension_numbers = #tpu.dot_dimension_numbers<[1], [0], [0], [1], [0, 0, 1, 1], [], []>} : vector<18x64xbf16>, vector<64x128xbf16>, vector<18x128xf32> -> vector<18x128xf32>
    %c1 = arith.constant 1 : index
    %c0_14 = arith.constant 0 : index
    %c0_15 = arith.constant 0 : index
    %16 = vector.load %arg5[%c1, %c0_14, %c0_15] : memref<9x18x98xbf16, #tpu.memory_space<vmem>>, vector<1x18x98xbf16>
    %17 = vector.shape_cast %16 : vector<1x18x98xbf16> to vector<18x98xbf16>
    %cst_16 = arith.constant dense<0.000000e+00> : vector<18x64xf32>
    %18 = tpu.matmul %17, %8, %cst_16 {dimension_numbers = #tpu.dot_dimension_numbers<[1], [0], [0], [1], [0, 0, 1, 1], [], []>} : vector<18x98xbf16>, vector<98x64xbf16>, vector<18x64xf32> -> vector<18x64xf32>
    %19 = arith.truncf %18 : vector<18x64xf32> to vector<18x64xbf16>
    %c1_17 = arith.constant 1 : index
    %c0_18 = arith.constant 0 : index
    %c0_19 = arith.constant 0 : index
    %20 = vector.load %arg6[%c1_17, %c0_18, %c0_19] : memref<9x64x128xbf16, #tpu.memory_space<vmem>>, vector<1x64x128xbf16>
    %21 = vector.shape_cast %20 : vector<1x64x128xbf16> to vector<64x128xbf16>
    %cst_20 = arith.constant dense<0.000000e+00> : vector<18x128xf32>
    %22 = tpu.matmul %19, %21, %cst_20 {dimension_numbers = #tpu.dot_dimension_numbers<[1], [0], [0], [1], [0, 0, 1, 1], [], []>} : vector<18x64xbf16>, vector<64x128xbf16>, vector<18x128xf32> -> vector<18x128xf32>
    %23 = arith.addf %15, %22 : vector<18x128xf32>
    %c2 = arith.constant 2 : index
    %c0_21 = arith.constant 0 : index
    %c0_22 = arith.constant 0 : index
    %24 = vector.load %arg5[%c2, %c0_21, %c0_22] : memref<9x18x98xbf16, #tpu.memory_space<vmem>>, vector<1x18x98xbf16>
    %25 = vector.shape_cast %24 : vector<1x18x98xbf16> to vector<18x98xbf16>
    %cst_23 = arith.constant dense<0.000000e+00> : vector<18x64xf32>
    %26 = tpu.matmul %25, %8, %cst_23 {dimension_numbers = #tpu.dot_dimension_numbers<[1], [0], [0], [1], [0, 0, 1, 1], [], []>} : vector<18x98xbf16>, vector<98x64xbf16>, vector<18x64xf32> -> vector<18x64xf32>
    %27 = arith.truncf %26 : vector<18x64xf32> to vector<18x64xbf16>
    %c2_24 = arith.constant 2 : index
    %c0_25 = arith.constant 0 : index
    %c0_26 = arith.constant 0 : index
    %28 = vector.load %arg6[%c2_24, %c0_25, %c0_26] : memref<9x64x128xbf16, #tpu.memory_space<vmem>>, vector<1x64x128xbf16>
    %29 = vector.shape_cast %28 : vector<1x64x128xbf16> to vector<64x128xbf16>
    %cst_27 = arith.constant dense<0.000000e+00> : vector<18x128xf32>
    %30 = tpu.matmul %27, %29, %cst_27 {dimension_numbers = #tpu.dot_dimension_numbers<[1], [0], [0], [1], [0, 0, 1, 1], [], []>} : vector<18x64xbf16>, vector<64x128xbf16>, vector<18x128xf32> -> vector<18x128xf32>
    %31 = arith.addf %23, %30 : vector<18x128xf32>
    %c3 = arith.constant 3 : index
    %c0_28 = arith.constant 0 : index
    %c0_29 = arith.constant 0 : index
    %32 = vector.load %arg5[%c3, %c0_28, %c0_29] : memref<9x18x98xbf16, #tpu.memory_space<vmem>>, vector<1x18x98xbf16>
    %33 = vector.shape_cast %32 : vector<1x18x98xbf16> to vector<18x98xbf16>
    %cst_30 = arith.constant dense<0.000000e+00> : vector<18x64xf32>
    %34 = tpu.matmul %33, %8, %cst_30 {dimension_numbers = #tpu.dot_dimension_numbers<[1], [0], [0], [1], [0, 0, 1, 1], [], []>} : vector<18x98xbf16>, vector<98x64xbf16>, vector<18x64xf32> -> vector<18x64xf32>
    %35 = arith.truncf %34 : vector<18x64xf32> to vector<18x64xbf16>
    %c3_31 = arith.constant 3 : index
    %c0_32 = arith.constant 0 : index
    %c0_33 = arith.constant 0 : index
    %36 = vector.load %arg6[%c3_31, %c0_32, %c0_33] : memref<9x64x128xbf16, #tpu.memory_space<vmem>>, vector<1x64x128xbf16>
    %37 = vector.shape_cast %36 : vector<1x64x128xbf16> to vector<64x128xbf16>
    %cst_34 = arith.constant dense<0.000000e+00> : vector<18x128xf32>
    %38 = tpu.matmul %35, %37, %cst_34 {dimension_numbers = #tpu.dot_dimension_numbers<[1], [0], [0], [1], [0, 0, 1, 1], [], []>} : vector<18x64xbf16>, vector<64x128xbf16>, vector<18x128xf32> -> vector<18x128xf32>
    %39 = arith.addf %31, %38 : vector<18x128xf32>
    %c4 = arith.constant 4 : index
    %c0_35 = arith.constant 0 : index
    %c0_36 = arith.constant 0 : index
    %40 = vector.load %arg5[%c4, %c0_35, %c0_36] : memref<9x18x98xbf16, #tpu.memory_space<vmem>>, vector<1x18x98xbf16>
    %41 = vector.shape_cast %40 : vector<1x18x98xbf16> to vector<18x98xbf16>
    %cst_37 = arith.constant dense<0.000000e+00> : vector<18x64xf32>
    %42 = tpu.matmul %41, %8, %cst_37 {dimension_numbers = #tpu.dot_dimension_numbers<[1], [0], [0], [1], [0, 0, 1, 1], [], []>} : vector<18x98xbf16>, vector<98x64xbf16>, vector<18x64xf32> -> vector<18x64xf32>
    %43 = arith.truncf %42 : vector<18x64xf32> to vector<18x64xbf16>
    %c4_38 = arith.constant 4 : index
    %c0_39 = arith.constant 0 : index
    %c0_40 = arith.constant 0 : index
    %44 = vector.load %arg6[%c4_38, %c0_39, %c0_40] : memref<9x64x128xbf16, #tpu.memory_space<vmem>>, vector<1x64x128xbf16>
    %45 = vector.shape_cast %44 : vector<1x64x128xbf16> to vector<64x128xbf16>
    %cst_41 = arith.constant dense<0.000000e+00> : vector<18x128xf32>
    %46 = tpu.matmul %43, %45, %cst_41 {dimension_numbers = #tpu.dot_dimension_numbers<[1], [0], [0], [1], [0, 0, 1, 1], [], []>} : vector<18x64xbf16>, vector<64x128xbf16>, vector<18x128xf32> -> vector<18x128xf32>
    %47 = arith.addf %39, %46 : vector<18x128xf32>
    %c5 = arith.constant 5 : index
    %c0_42 = arith.constant 0 : index
    %c0_43 = arith.constant 0 : index
    %48 = vector.load %arg5[%c5, %c0_42, %c0_43] : memref<9x18x98xbf16, #tpu.memory_space<vmem>>, vector<1x18x98xbf16>
    %49 = vector.shape_cast %48 : vector<1x18x98xbf16> to vector<18x98xbf16>
    %cst_44 = arith.constant dense<0.000000e+00> : vector<18x64xf32>
    %50 = tpu.matmul %49, %8, %cst_44 {dimension_numbers = #tpu.dot_dimension_numbers<[1], [0], [0], [1], [0, 0, 1, 1], [], []>} : vector<18x98xbf16>, vector<98x64xbf16>, vector<18x64xf32> -> vector<18x64xf32>
    %51 = arith.truncf %50 : vector<18x64xf32> to vector<18x64xbf16>
    %c5_45 = arith.constant 5 : index
    %c0_46 = arith.constant 0 : index
    %c0_47 = arith.constant 0 : index
    %52 = vector.load %arg6[%c5_45, %c0_46, %c0_47] : memref<9x64x128xbf16, #tpu.memory_space<vmem>>, vector<1x64x128xbf16>
    %53 = vector.shape_cast %52 : vector<1x64x128xbf16> to vector<64x128xbf16>
    %cst_48 = arith.constant dense<0.000000e+00> : vector<18x128xf32>
    %54 = tpu.matmul %51, %53, %cst_48 {dimension_numbers = #tpu.dot_dimension_numbers<[1], [0], [0], [1], [0, 0, 1, 1], [], []>} : vector<18x64xbf16>, vector<64x128xbf16>, vector<18x128xf32> -> vector<18x128xf32>
    %55 = arith.addf %47, %54 : vector<18x128xf32>
    %c6 = arith.constant 6 : index
    %c0_49 = arith.constant 0 : index
    %c0_50 = arith.constant 0 : index
    %56 = vector.load %arg5[%c6, %c0_49, %c0_50] : memref<9x18x98xbf16, #tpu.memory_space<vmem>>, vector<1x18x98xbf16>
    %57 = vector.shape_cast %56 : vector<1x18x98xbf16> to vector<18x98xbf16>
    %cst_51 = arith.constant dense<0.000000e+00> : vector<18x64xf32>
    %58 = tpu.matmul %57, %8, %cst_51 {dimension_numbers = #tpu.dot_dimension_numbers<[1], [0], [0], [1], [0, 0, 1, 1], [], []>} : vector<18x98xbf16>, vector<98x64xbf16>, vector<18x64xf32> -> vector<18x64xf32>
    %59 = arith.truncf %58 : vector<18x64xf32> to vector<18x64xbf16>
    %c6_52 = arith.constant 6 : index
    %c0_53 = arith.constant 0 : index
    %c0_54 = arith.constant 0 : index
    %60 = vector.load %arg6[%c6_52, %c0_53, %c0_54] : memref<9x64x128xbf16, #tpu.memory_space<vmem>>, vector<1x64x128xbf16>
    %61 = vector.shape_cast %60 : vector<1x64x128xbf16> to vector<64x128xbf16>
    %cst_55 = arith.constant dense<0.000000e+00> : vector<18x128xf32>
    %62 = tpu.matmul %59, %61, %cst_55 {dimension_numbers = #tpu.dot_dimension_numbers<[1], [0], [0], [1], [0, 0, 1, 1], [], []>} : vector<18x64xbf16>, vector<64x128xbf16>, vector<18x128xf32> -> vector<18x128xf32>
    %63 = arith.addf %55, %62 : vector<18x128xf32>
    %c7 = arith.constant 7 : index
    %c0_56 = arith.constant 0 : index
    %c0_57 = arith.constant 0 : index
    %64 = vector.load %arg5[%c7, %c0_56, %c0_57] : memref<9x18x98xbf16, #tpu.memory_space<vmem>>, vector<1x18x98xbf16>
    %65 = vector.shape_cast %64 : vector<1x18x98xbf16> to vector<18x98xbf16>
    %cst_58 = arith.constant dense<0.000000e+00> : vector<18x64xf32>
    %66 = tpu.matmul %65, %8, %cst_58 {dimension_numbers = #tpu.dot_dimension_numbers<[1], [0], [0], [1], [0, 0, 1, 1], [], []>} : vector<18x98xbf16>, vector<98x64xbf16>, vector<18x64xf32> -> vector<18x64xf32>
    %67 = arith.truncf %66 : vector<18x64xf32> to vector<18x64xbf16>
    %c7_59 = arith.constant 7 : index
    %c0_60 = arith.constant 0 : index
    %c0_61 = arith.constant 0 : index
    %68 = vector.load %arg6[%c7_59, %c0_60, %c0_61] : memref<9x64x128xbf16, #tpu.memory_space<vmem>>, vector<1x64x128xbf16>
    %69 = vector.shape_cast %68 : vector<1x64x128xbf16> to vector<64x128xbf16>
    %cst_62 = arith.constant dense<0.000000e+00> : vector<18x128xf32>
    %70 = tpu.matmul %67, %69, %cst_62 {dimension_numbers = #tpu.dot_dimension_numbers<[1], [0], [0], [1], [0, 0, 1, 1], [], []>} : vector<18x64xbf16>, vector<64x128xbf16>, vector<18x128xf32> -> vector<18x128xf32>
    %71 = arith.addf %63, %70 : vector<18x128xf32>
    %c8 = arith.constant 8 : index
    %c0_63 = arith.constant 0 : index
    %c0_64 = arith.constant 0 : index
    %72 = vector.load %arg5[%c8, %c0_63, %c0_64] : memref<9x18x98xbf16, #tpu.memory_space<vmem>>, vector<1x18x98xbf16>
    %73 = vector.shape_cast %72 : vector<1x18x98xbf16> to vector<18x98xbf16>
    %cst_65 = arith.constant dense<0.000000e+00> : vector<18x64xf32>
    %74 = tpu.matmul %73, %8, %cst_65 {dimension_numbers = #tpu.dot_dimension_numbers<[1], [0], [0], [1], [0, 0, 1, 1], [], []>} : vector<18x98xbf16>, vector<98x64xbf16>, vector<18x64xf32> -> vector<18x64xf32>
    %75 = arith.truncf %74 : vector<18x64xf32> to vector<18x64xbf16>
    %c8_66 = arith.constant 8 : index
    %c0_67 = arith.constant 0 : index
    %c0_68 = arith.constant 0 : index
    %76 = vector.load %arg6[%c8_66, %c0_67, %c0_68] : memref<9x64x128xbf16, #tpu.memory_space<vmem>>, vector<1x64x128xbf16>
    %77 = vector.shape_cast %76 : vector<1x64x128xbf16> to vector<64x128xbf16>
    %cst_69 = arith.constant dense<0.000000e+00> : vector<18x128xf32>
    %78 = tpu.matmul %75, %77, %cst_69 {dimension_numbers = #tpu.dot_dimension_numbers<[1], [0], [0], [1], [0, 0, 1, 1], [], []>} : vector<18x64xbf16>, vector<64x128xbf16>, vector<18x128xf32> -> vector<18x128xf32>
    %79 = arith.addf %71, %78 : vector<18x128xf32>
    %c0_70 = arith.constant 0 : index
    %c0_71 = arith.constant 0 : index
    %80 = vector.load %arg7[%c0_70, %c0_71] : memref<1x128xf32, #tpu.memory_space<vmem>>, vector<1x128xf32>
    %81 = vector.broadcast %80 : vector<1x128xf32> to vector<18x128xf32>
    %82 = arith.addf %79, %81 : vector<18x128xf32>
    %cst_72 = arith.constant 0.000000e+00 : f32
    %83 = vector.broadcast %cst_72 : f32 to vector<18x128xf32>
    %84 = arith.maximumf %82, %83 : vector<18x128xf32>
    %85 = arith.truncf %84 : vector<18x128xf32> to vector<18x128xbf16>
    %c0_73 = arith.constant 0 : index
    %c0_74 = arith.constant 0 : index
    %c0_75 = arith.constant 0 : index
    %86 = vector.load %arg8[%c0_73, %c0_74, %c0_75] : memref<9x2x18xbf16, #tpu.memory_space<vmem>>, vector<1x2x18xbf16>
    %87 = vector.shape_cast %86 : vector<1x2x18xbf16> to vector<2x18xbf16>
    %cst_76 = arith.constant dense<0.000000e+00> : vector<2x128xf32>
    %88 = tpu.matmul %87, %85, %cst_76 {dimension_numbers = #tpu.dot_dimension_numbers<[1], [0], [0], [1], [0, 0, 1, 1], [], []>} : vector<2x18xbf16>, vector<18x128xbf16>, vector<2x128xf32> -> vector<2x128xf32>
    %89 = arith.truncf %88 : vector<2x128xf32> to vector<2x128xbf16>
    %c0_77 = arith.constant 0 : index
    %c0_78 = arith.constant 0 : index
    %c0_79 = arith.constant 0 : index
    %90 = vector.load %arg9[%c0_77, %c0_78, %c0_79] : memref<9x128x128xbf16, #tpu.memory_space<vmem>>, vector<1x128x128xbf16>
    %91 = vector.shape_cast %90 : vector<1x128x128xbf16> to vector<128x128xbf16>
    %cst_80 = arith.constant dense<0.000000e+00> : vector<2x128xf32>
    %92 = tpu.matmul %89, %91, %cst_80 {dimension_numbers = #tpu.dot_dimension_numbers<[1], [0], [0], [1], [0, 0, 1, 1], [], []>} : vector<2x128xbf16>, vector<128x128xbf16>, vector<2x128xf32> -> vector<2x128xf32>
    %c1_81 = arith.constant 1 : index
    %c0_82 = arith.constant 0 : index
    %c0_83 = arith.constant 0 : index
    %93 = vector.load %arg8[%c1_81, %c0_82, %c0_83] : memref<9x2x18xbf16, #tpu.memory_space<vmem>>, vector<1x2x18xbf16>
    %94 = vector.shape_cast %93 : vector<1x2x18xbf16> to vector<2x18xbf16>
    %cst_84 = arith.constant dense<0.000000e+00> : vector<2x128xf32>
    %95 = tpu.matmul %94, %85, %cst_84 {dimension_numbers = #tpu.dot_dimension_numbers<[1], [0], [0], [1], [0, 0, 1, 1], [], []>} : vector<2x18xbf16>, vector<18x128xbf16>, vector<2x128xf32> -> vector<2x128xf32>
    %96 = arith.truncf %95 : vector<2x128xf32> to vector<2x128xbf16>
    %c1_85 = arith.constant 1 : index
    %c0_86 = arith.constant 0 : index
    %c0_87 = arith.constant 0 : index
    %97 = vector.load %arg9[%c1_85, %c0_86, %c0_87] : memref<9x128x128xbf16, #tpu.memory_space<vmem>>, vector<1x128x128xbf16>
    %98 = vector.shape_cast %97 : vector<1x128x128xbf16> to vector<128x128xbf16>
    %cst_88 = arith.constant dense<0.000000e+00> : vector<2x128xf32>
    %99 = tpu.matmul %96, %98, %cst_88 {dimension_numbers = #tpu.dot_dimension_numbers<[1], [0], [0], [1], [0, 0, 1, 1], [], []>} : vector<2x128xbf16>, vector<128x128xbf16>, vector<2x128xf32> -> vector<2x128xf32>
    %100 = arith.addf %92, %99 : vector<2x128xf32>
    %c2_89 = arith.constant 2 : index
    %c0_90 = arith.constant 0 : index
    %c0_91 = arith.constant 0 : index
    %101 = vector.load %arg8[%c2_89, %c0_90, %c0_91] : memref<9x2x18xbf16, #tpu.memory_space<vmem>>, vector<1x2x18xbf16>
    %102 = vector.shape_cast %101 : vector<1x2x18xbf16> to vector<2x18xbf16>
    %cst_92 = arith.constant dense<0.000000e+00> : vector<2x128xf32>
    %103 = tpu.matmul %102, %85, %cst_92 {dimension_numbers = #tpu.dot_dimension_numbers<[1], [0], [0], [1], [0, 0, 1, 1], [], []>} : vector<2x18xbf16>, vector<18x128xbf16>, vector<2x128xf32> -> vector<2x128xf32>
    %104 = arith.truncf %103 : vector<2x128xf32> to vector<2x128xbf16>
    %c2_93 = arith.constant 2 : index
    %c0_94 = arith.constant 0 : index
    %c0_95 = arith.constant 0 : index
    %105 = vector.load %arg9[%c2_93, %c0_94, %c0_95] : memref<9x128x128xbf16, #tpu.memory_space<vmem>>, vector<1x128x128xbf16>
    %106 = vector.shape_cast %105 : vector<1x128x128xbf16> to vector<128x128xbf16>
    %cst_96 = arith.constant dense<0.000000e+00> : vector<2x128xf32>
    %107 = tpu.matmul %104, %106, %cst_96 {dimension_numbers = #tpu.dot_dimension_numbers<[1], [0], [0], [1], [0, 0, 1, 1], [], []>} : vector<2x128xbf16>, vector<128x128xbf16>, vector<2x128xf32> -> vector<2x128xf32>
    %108 = arith.addf %100, %107 : vector<2x128xf32>
    %c3_97 = arith.constant 3 : index
    %c0_98 = arith.constant 0 : index
    %c0_99 = arith.constant 0 : index
    %109 = vector.load %arg8[%c3_97, %c0_98, %c0_99] : memref<9x2x18xbf16, #tpu.memory_space<vmem>>, vector<1x2x18xbf16>
    %110 = vector.shape_cast %109 : vector<1x2x18xbf16> to vector<2x18xbf16>
    %cst_100 = arith.constant dense<0.000000e+00> : vector<2x128xf32>
    %111 = tpu.matmul %110, %85, %cst_100 {dimension_numbers = #tpu.dot_dimension_numbers<[1], [0], [0], [1], [0, 0, 1, 1], [], []>} : vector<2x18xbf16>, vector<18x128xbf16>, vector<2x128xf32> -> vector<2x128xf32>
    %112 = arith.truncf %111 : vector<2x128xf32> to vector<2x128xbf16>
    %c3_101 = arith.constant 3 : index
    %c0_102 = arith.constant 0 : index
    %c0_103 = arith.constant 0 : index
    %113 = vector.load %arg9[%c3_101, %c0_102, %c0_103] : memref<9x128x128xbf16, #tpu.memory_space<vmem>>, vector<1x128x128xbf16>
    %114 = vector.shape_cast %113 : vector<1x128x128xbf16> to vector<128x128xbf16>
    %cst_104 = arith.constant dense<0.000000e+00> : vector<2x128xf32>
    %115 = tpu.matmul %112, %114, %cst_104 {dimension_numbers = #tpu.dot_dimension_numbers<[1], [0], [0], [1], [0, 0, 1, 1], [], []>} : vector<2x128xbf16>, vector<128x128xbf16>, vector<2x128xf32> -> vector<2x128xf32>
    %116 = arith.addf %108, %115 : vector<2x128xf32>
    %c4_105 = arith.constant 4 : index
    %c0_106 = arith.constant 0 : index
    %c0_107 = arith.constant 0 : index
    %117 = vector.load %arg8[%c4_105, %c0_106, %c0_107] : memref<9x2x18xbf16, #tpu.memory_space<vmem>>, vector<1x2x18xbf16>
    %118 = vector.shape_cast %117 : vector<1x2x18xbf16> to vector<2x18xbf16>
    %cst_108 = arith.constant dense<0.000000e+00> : vector<2x128xf32>
    %119 = tpu.matmul %118, %85, %cst_108 {dimension_numbers = #tpu.dot_dimension_numbers<[1], [0], [0], [1], [0, 0, 1, 1], [], []>} : vector<2x18xbf16>, vector<18x128xbf16>, vector<2x128xf32> -> vector<2x128xf32>
    %120 = arith.truncf %119 : vector<2x128xf32> to vector<2x128xbf16>
    %c4_109 = arith.constant 4 : index
    %c0_110 = arith.constant 0 : index
    %c0_111 = arith.constant 0 : index
    %121 = vector.load %arg9[%c4_109, %c0_110, %c0_111] : memref<9x128x128xbf16, #tpu.memory_space<vmem>>, vector<1x128x128xbf16>
    %122 = vector.shape_cast %121 : vector<1x128x128xbf16> to vector<128x128xbf16>
    %cst_112 = arith.constant dense<0.000000e+00> : vector<2x128xf32>
    %123 = tpu.matmul %120, %122, %cst_112 {dimension_numbers = #tpu.dot_dimension_numbers<[1], [0], [0], [1], [0, 0, 1, 1], [], []>} : vector<2x128xbf16>, vector<128x128xbf16>, vector<2x128xf32> -> vector<2x128xf32>
    %124 = arith.addf %116, %123 : vector<2x128xf32>
    %c5_113 = arith.constant 5 : index
    %c0_114 = arith.constant 0 : index
    %c0_115 = arith.constant 0 : index
    %125 = vector.load %arg8[%c5_113, %c0_114, %c0_115] : memref<9x2x18xbf16, #tpu.memory_space<vmem>>, vector<1x2x18xbf16>
    %126 = vector.shape_cast %125 : vector<1x2x18xbf16> to vector<2x18xbf16>
    %cst_116 = arith.constant dense<0.000000e+00> : vector<2x128xf32>
    %127 = tpu.matmul %126, %85, %cst_116 {dimension_numbers = #tpu.dot_dimension_numbers<[1], [0], [0], [1], [0, 0, 1, 1], [], []>} : vector<2x18xbf16>, vector<18x128xbf16>, vector<2x128xf32> -> vector<2x128xf32>
    %128 = arith.truncf %127 : vector<2x128xf32> to vector<2x128xbf16>
    %c5_117 = arith.constant 5 : index
    %c0_118 = arith.constant 0 : index
    %c0_119 = arith.constant 0 : index
    %129 = vector.load %arg9[%c5_117, %c0_118, %c0_119] : memref<9x128x128xbf16, #tpu.memory_space<vmem>>, vector<1x128x128xbf16>
    %130 = vector.shape_cast %129 : vector<1x128x128xbf16> to vector<128x128xbf16>
    %cst_120 = arith.constant dense<0.000000e+00> : vector<2x128xf32>
    %131 = tpu.matmul %128, %130, %cst_120 {dimension_numbers = #tpu.dot_dimension_numbers<[1], [0], [0], [1], [0, 0, 1, 1], [], []>} : vector<2x128xbf16>, vector<128x128xbf16>, vector<2x128xf32> -> vector<2x128xf32>
    %132 = arith.addf %124, %131 : vector<2x128xf32>
    %c6_121 = arith.constant 6 : index
    %c0_122 = arith.constant 0 : index
    %c0_123 = arith.constant 0 : index
    %133 = vector.load %arg8[%c6_121, %c0_122, %c0_123] : memref<9x2x18xbf16, #tpu.memory_space<vmem>>, vector<1x2x18xbf16>
    %134 = vector.shape_cast %133 : vector<1x2x18xbf16> to vector<2x18xbf16>
    %cst_124 = arith.constant dense<0.000000e+00> : vector<2x128xf32>
    %135 = tpu.matmul %134, %85, %cst_124 {dimension_numbers = #tpu.dot_dimension_numbers<[1], [0], [0], [1], [0, 0, 1, 1], [], []>} : vector<2x18xbf16>, vector<18x128xbf16>, vector<2x128xf32> -> vector<2x128xf32>
    %136 = arith.truncf %135 : vector<2x128xf32> to vector<2x128xbf16>
    %c6_125 = arith.constant 6 : index
    %c0_126 = arith.constant 0 : index
    %c0_127 = arith.constant 0 : index
    %137 = vector.load %arg9[%c6_125, %c0_126, %c0_127] : memref<9x128x128xbf16, #tpu.memory_space<vmem>>, vector<1x128x128xbf16>
    %138 = vector.shape_cast %137 : vector<1x128x128xbf16> to vector<128x128xbf16>
    %cst_128 = arith.constant dense<0.000000e+00> : vector<2x128xf32>
    %139 = tpu.matmul %136, %138, %cst_128 {dimension_numbers = #tpu.dot_dimension_numbers<[1], [0], [0], [1], [0, 0, 1, 1], [], []>} : vector<2x128xbf16>, vector<128x128xbf16>, vector<2x128xf32> -> vector<2x128xf32>
    %140 = arith.addf %132, %139 : vector<2x128xf32>
    %c7_129 = arith.constant 7 : index
    %c0_130 = arith.constant 0 : index
    %c0_131 = arith.constant 0 : index
    %141 = vector.load %arg8[%c7_129, %c0_130, %c0_131] : memref<9x2x18xbf16, #tpu.memory_space<vmem>>, vector<1x2x18xbf16>
    %142 = vector.shape_cast %141 : vector<1x2x18xbf16> to vector<2x18xbf16>
    %cst_132 = arith.constant dense<0.000000e+00> : vector<2x128xf32>
    %143 = tpu.matmul %142, %85, %cst_132 {dimension_numbers = #tpu.dot_dimension_numbers<[1], [0], [0], [1], [0, 0, 1, 1], [], []>} : vector<2x18xbf16>, vector<18x128xbf16>, vector<2x128xf32> -> vector<2x128xf32>
    %144 = arith.truncf %143 : vector<2x128xf32> to vector<2x128xbf16>
    %c7_133 = arith.constant 7 : index
    %c0_134 = arith.constant 0 : index
    %c0_135 = arith.constant 0 : index
    %145 = vector.load %arg9[%c7_133, %c0_134, %c0_135] : memref<9x128x128xbf16, #tpu.memory_space<vmem>>, vector<1x128x128xbf16>
    %146 = vector.shape_cast %145 : vector<1x128x128xbf16> to vector<128x128xbf16>
    %cst_136 = arith.constant dense<0.000000e+00> : vector<2x128xf32>
    %147 = tpu.matmul %144, %146, %cst_136 {dimension_numbers = #tpu.dot_dimension_numbers<[1], [0], [0], [1], [0, 0, 1, 1], [], []>} : vector<2x128xbf16>, vector<128x128xbf16>, vector<2x128xf32> -> vector<2x128xf32>
    %148 = arith.addf %140, %147 : vector<2x128xf32>
    %c8_137 = arith.constant 8 : index
    %c0_138 = arith.constant 0 : index
    %c0_139 = arith.constant 0 : index
    %149 = vector.load %arg8[%c8_137, %c0_138, %c0_139] : memref<9x2x18xbf16, #tpu.memory_space<vmem>>, vector<1x2x18xbf16>
    %150 = vector.shape_cast %149 : vector<1x2x18xbf16> to vector<2x18xbf16>
    %cst_140 = arith.constant dense<0.000000e+00> : vector<2x128xf32>
    %151 = tpu.matmul %150, %85, %cst_140 {dimension_numbers = #tpu.dot_dimension_numbers<[1], [0], [0], [1], [0, 0, 1, 1], [], []>} : vector<2x18xbf16>, vector<18x128xbf16>, vector<2x128xf32> -> vector<2x128xf32>
    %152 = arith.truncf %151 : vector<2x128xf32> to vector<2x128xbf16>
    %c8_141 = arith.constant 8 : index
    %c0_142 = arith.constant 0 : index
    %c0_143 = arith.constant 0 : index
    %153 = vector.load %arg9[%c8_141, %c0_142, %c0_143] : memref<9x128x128xbf16, #tpu.memory_space<vmem>>, vector<1x128x128xbf16>
    %154 = vector.shape_cast %153 : vector<1x128x128xbf16> to vector<128x128xbf16>
    %cst_144 = arith.constant dense<0.000000e+00> : vector<2x128xf32>
    %155 = tpu.matmul %152, %154, %cst_144 {dimension_numbers = #tpu.dot_dimension_numbers<[1], [0], [0], [1], [0, 0, 1, 1], [], []>} : vector<2x128xbf16>, vector<128x128xbf16>, vector<2x128xf32> -> vector<2x128xf32>
    %156 = arith.addf %148, %155 : vector<2x128xf32>
    %c0_145 = arith.constant 0 : index
    %c0_146 = arith.constant 0 : index
    %157 = vector.load %arg10[%c0_145, %c0_146] : memref<1x128xf32, #tpu.memory_space<vmem>>, vector<1x128xf32>
    %158 = vector.broadcast %157 : vector<1x128xf32> to vector<2x128xf32>
    %159 = arith.addf %156, %158 : vector<2x128xf32>
    %cst_147 = arith.constant 0.000000e+00 : f32
    %160 = vector.broadcast %cst_147 : f32 to vector<2x128xf32>
    %161 = arith.maximumf %159, %160 : vector<2x128xf32>
    %162 = arith.truncf %161 : vector<2x128xf32> to vector<2x128xbf16>
    %c0_148 = arith.constant 0 : index
    %c0_149 = arith.constant 0 : index
    %c0_150 = arith.constant 0 : index
    %163 = vector.load %arg11[%c0_148, %c0_149, %c0_150] : memref<1x2x2xbf16, #tpu.memory_space<vmem>>, vector<1x2x2xbf16>
    %164 = vector.shape_cast %163 : vector<1x2x2xbf16> to vector<2x2xbf16>
    %cst_151 = arith.constant dense<0.000000e+00> : vector<2x128xf32>
    %165 = tpu.matmul %164, %162, %cst_151 {dimension_numbers = #tpu.dot_dimension_numbers<[1], [0], [0], [1], [0, 0, 1, 1], [], []>} : vector<2x2xbf16>, vector<2x128xbf16>, vector<2x128xf32> -> vector<2x128xf32>
    %166 = arith.truncf %165 : vector<2x128xf32> to vector<2x128xbf16>
    %c0_152 = arith.constant 0 : index
    %c0_153 = arith.constant 0 : index
    %c0_154 = arith.constant 0 : index
    %167 = vector.load %arg12[%c0_152, %c0_153, %c0_154] : memref<1x128x64xbf16, #tpu.memory_space<vmem>>, vector<1x128x64xbf16>
    %168 = vector.shape_cast %167 : vector<1x128x64xbf16> to vector<128x64xbf16>
    %cst_155 = arith.constant dense<0.000000e+00> : vector<2x64xf32>
    %169 = tpu.matmul %166, %168, %cst_155 {dimension_numbers = #tpu.dot_dimension_numbers<[1], [0], [0], [1], [0, 0, 1, 1], [], []>} : vector<2x128xbf16>, vector<128x64xbf16>, vector<2x64xf32> -> vector<2x64xf32>
    %c0_156 = arith.constant 0 : index
    %c0_157 = arith.constant 0 : index
    %170 = vector.load %arg1[%c0_156, %c0_157] : memref<2x4xf32, #tpu.memory_space<vmem>>, vector<2x4xf32>
    %171 = arith.truncf %170 : vector<2x4xf32> to vector<2x4xbf16>
    %c0_158 = arith.constant 0 : index
    %c0_159 = arith.constant 0 : index
    %172 = vector.load %arg13[%c0_158, %c0_159] : memref<4x64xbf16, #tpu.memory_space<vmem>>, vector<4x64xbf16>
    %cst_160 = arith.constant dense<0.000000e+00> : vector<2x64xf32>
    %173 = tpu.matmul %171, %172, %cst_160 {dimension_numbers = #tpu.dot_dimension_numbers<[1], [0], [0], [1], [0, 0, 1, 1], [], []>} : vector<2x4xbf16>, vector<4x64xbf16>, vector<2x64xf32> -> vector<2x64xf32>
    %174 = arith.addf %169, %173 : vector<2x64xf32>
    %c0_161 = arith.constant 0 : index
    %c0_162 = arith.constant 0 : index
    %175 = vector.load %arg2[%c0_161, %c0_162] : memref<2x8xf32, #tpu.memory_space<vmem>>, vector<2x8xf32>
    %176 = arith.truncf %175 : vector<2x8xf32> to vector<2x8xbf16>
    %c0_163 = arith.constant 0 : index
    %c0_164 = arith.constant 0 : index
    %177 = vector.load %arg14[%c0_163, %c0_164] : memref<8x64xbf16, #tpu.memory_space<vmem>>, vector<8x64xbf16>
    %cst_165 = arith.constant dense<0.000000e+00> : vector<2x64xf32>
    %178 = tpu.matmul %176, %177, %cst_165 {dimension_numbers = #tpu.dot_dimension_numbers<[1], [0], [0], [1], [0, 0, 1, 1], [], []>} : vector<2x8xbf16>, vector<8x64xbf16>, vector<2x64xf32> -> vector<2x64xf32>
    %179 = arith.addf %174, %178 : vector<2x64xf32>
    %c0_166 = arith.constant 0 : index
    %c0_167 = arith.constant 0 : index
    %180 = vector.load %arg15[%c0_166, %c0_167] : memref<1x64xf32, #tpu.memory_space<vmem>>, vector<1x64xf32>
    %181 = vector.broadcast %180 : vector<1x64xf32> to vector<2x64xf32>
    %182 = arith.addf %179, %181 : vector<2x64xf32>
    %cst_168 = arith.constant 0.000000e+00 : f32
    %183 = vector.broadcast %cst_168 : f32 to vector<2x64xf32>
    %184 = arith.maximumf %182, %183 : vector<2x64xf32>
    %185 = arith.truncf %184 : vector<2x64xf32> to vector<2x64xbf16>
    %c0_169 = arith.constant 0 : index
    %c0_170 = arith.constant 0 : index
    %186 = vector.load %arg16[%c0_169, %c0_170] : memref<64x64xbf16, #tpu.memory_space<vmem>>, vector<64x64xbf16>
    %cst_171 = arith.constant dense<0.000000e+00> : vector<2x64xf32>
    %187 = tpu.matmul %185, %186, %cst_171 {dimension_numbers = #tpu.dot_dimension_numbers<[1], [0], [0], [1], [0, 0, 1, 1], [], []>} : vector<2x64xbf16>, vector<64x64xbf16>, vector<2x64xf32> -> vector<2x64xf32>
    %c0_172 = arith.constant 0 : index
    %c0_173 = arith.constant 0 : index
    %188 = vector.load %arg17[%c0_172, %c0_173] : memref<1x64xf32, #tpu.memory_space<vmem>>, vector<1x64xf32>
    %189 = vector.broadcast %188 : vector<1x64xf32> to vector<2x64xf32>
    %190 = arith.addf %187, %189 : vector<2x64xf32>
    %cst_174 = arith.constant 0.000000e+00 : f32
    %191 = vector.broadcast %cst_174 : f32 to vector<2x64xf32>
    %192 = arith.maximumf %190, %191 : vector<2x64xf32>
    %193 = arith.truncf %192 : vector<2x64xf32> to vector<2x64xbf16>
    %c0_175 = arith.constant 0 : index
    %c0_176 = arith.constant 0 : index
    %194 = vector.load %arg18[%c0_175, %c0_176] : memref<64x2xbf16, #tpu.memory_space<vmem>>, vector<64x2xbf16>
    %cst_177 = arith.constant dense<0.000000e+00> : vector<2x2xf32>
    %195 = tpu.matmul %193, %194, %cst_177 {dimension_numbers = #tpu.dot_dimension_numbers<[1], [0], [0], [1], [0, 0, 1, 1], [], []>} : vector<2x64xbf16>, vector<64x2xbf16>, vector<2x2xf32> -> vector<2x2xf32>
    %c0_178 = arith.constant 0 : index
    %c0_179 = arith.constant 0 : index
    %196 = vector.load %arg19[%c0_178, %c0_179] : memref<1x2xf32, #tpu.memory_space<vmem>>, vector<1x2xf32>
    %197 = vector.broadcast %196 : vector<1x2xf32> to vector<2x2xf32>
    %198 = arith.addf %195, %197 : vector<2x2xf32>
    %c0_180 = arith.constant 0 : index
    %c0_181 = arith.constant 0 : index
    %199 = vector.load %arg20[%c0_180, %c0_181] : memref<2x2xf32, #tpu.memory_space<vmem>>, vector<2x2xf32>
    tpu.vector_store %arg20[%c0_180, %c0_181], %198 {strides = array<i32>} : memref<2x2xf32, #tpu.memory_space<vmem>>, vector<2x2xf32>,
    return
  }
}

</mosaic_0001>

<llo_original>
// kernel: double_critic_forward.2
$region0: #{double_critic_forward.2}
  #allocation0 [shape = 'u32[]', space=smem, size = 0x4, offset = 0x4, fixed_abs, tag = 'smem constant byte address 0x4 - core index']
  #allocation1 [shape = 'u32[72,128]{1,0:T(1,128)}', space=vmem, size = 0x9000, scoped, tag = 'internal scratch']
  %s0 = inlined_call_operand.vmem [shape: bf16[1568,192], index: 0, kind: input, shape index: {}]
  %s1 = inlined_call_operand.vmem [shape: bf16[192,32], index: 1, kind: input, shape index: {}]
  %s2 = inlined_call_operand.vmem [shape: f32[1,32], index: 2, kind: input, shape index: {}]
  %s3 = inlined_call_operand.vmem [shape: bf16[1568,32], index: 3, kind: output, shape index: {}]
  %s4 = sld [smem:[#allocation0]]
  $region45: #{double_critic_forward.2} parent=0
    _
  %s6 = ssub.s32 1, %s4
  %s7 = scalar_select 0, %s6, %s4
  loop: start=0, step=1, limit=4
  $region2: #{double_critic_forward.2} parent=0 // loop_pre_header
    _
  $region3: #{double_critic_forward.2} parent=0 // loop_header
    %s9 = sphi 0, %s13
    %p10 = scmp.ge.s32.totalorder %s9, 4
    %s19 = sphi 0, %s21
    %s22 = sphi 0, %s19
    %s23 = sphi 0, %s22
    %s39 = sphi 0, %s23
    %s43 = sphi 0, %s43
    %s45 = sphi 0, %s43
    %s46 = sphi 0, %s45
    %s60 = sphi 0, %s46
    %s64 = sphi 0, %s64
    %s66 = sphi 0, %s64
    %s67 = sphi 0, %s66
    %s81 = sphi 0, %s67
    %s87 = sphi 0, %s89
    %s90 = sphi 0, %s87
    %s91 = sphi 0, %s90
    %s107 = sphi 0, %s91
  $region4: #{double_critic_forward.2} parent=0 // loop_header_branch
    %12 = sbr.rel (%p10) target = $region8
  $region5: #{double_critic_forward.2} parent=0 // loop_body
    %s14 = ssub.s32 %s9, 1
    %s15 = ssub.s32 %s9, 2
    %s16 = sadd.s32 %s9, 1
    %s17 = ssub.s32 %s9, %s16
    %p18 = scmp.eq.s32.totalorder %s17, 0
    %s20 = sadd.s32 %s19, 1
    %s21 = scalar_select %p18, %s19, %s20
    %p24 = pneg %p18
    %p25 = scmp.eq.s32.totalorder %s9, 1
    %p26 = por %p24, %p25
    %p27 = scmp.ne.s32.totalorder %s19, %s22
    %p28 = scmp.eq.s32.totalorder %s9, 0
    %p29 = por %p27, %p28
    %p30 = scmp.ne.s32.totalorder %s19, %s22
    %p31 = scmp.eq.s32.totalorder %s14, 1
    %p32 = por %p30, %p31
    %p33 = scmp.ne.s32.totalorder %s22, %s23
    %p34 = scmp.eq.s32.totalorder %s14, 0
    %p35 = por %p33, %p34
    %p36 = scmp.ne.s32.totalorder %s22, %s23
    %p37 = scmp.eq.s32.totalorder %s15, 1
    %p38 = por %p36, %p37
    %p40 = scmp.ne.s32.totalorder %s23, %s39
    %p41 = scmp.eq.s32.totalorder %s15, 0
    %p42 = por %p40, %p41
    %s44 = sadd.s32 %s43, 1
    %p47 = scmp.eq.s32.totalorder %s9, 1
    %p48 = scmp.ne.s32.totalorder %s43, %s45
    %p49 = scmp.eq.s32.totalorder %s9, 0
    %p50 = por %p48, %p49
    %p51 = scmp.ne.s32.totalorder %s43, %s45
    %p52 = scmp.eq.s32.totalorder %s14, 1
    %p53 = por %p51, %p52
    %p54 = scmp.ne.s32.totalorder %s45, %s46
    %p55 = scmp.eq.s32.totalorder %s14, 0
    %p56 = por %p54, %p55
    %p57 = scmp.ne.s32.totalorder %s45, %s46
    %p58 = scmp.eq.s32.totalorder %s15, 1
    %p59 = por %p57, %p58
    %p61 = scmp.ne.s32.totalorder %s46, %s60
    %p62 = scmp.eq.s32.totalorder %s15, 0
    %p63 = por %p61, %p62
    %s65 = sadd.s32 %s64, 1
    %p68 = scmp.eq.s32.totalorder %s9, 1
    %p69 = scmp.ne.s32.totalorder %s64, %s66
    %p70 = scmp.eq.s32.totalorder %s9, 0
    %p71 = por %p69, %p70
    %p72 = scmp.ne.s32.totalorder %s64, %s66
    %p73 = scmp.eq.s32.totalorder %s14, 1
    %p74 = por %p72, %p73
    %p75 = scmp.ne.s32.totalorder %s66, %s67
    %p76 = scmp.eq.s32.totalorder %s14, 0
    %p77 = por %p75, %p76
    %p78 = scmp.ne.s32.totalorder %s66, %s67
    %p79 = scmp.eq.s32.totalorder %s15, 1
    %p80 = por %p78, %p79
    %p82 = scmp.ne.s32.totalorder %s67, %s81
    %p83 = scmp.eq.s32.totalorder %s15, 0
    %p84 = por %p82, %p83
    %s85 = ssub.s32 %s9, %s16
    %p86 = scmp.eq.s32.totalorder %s85, 0
    %s88 = sadd.s32 %s87, 1
    %s89 = scalar_select %p86, %s87, %s88
    %p92 = pneg %p86
    %p93 = scmp.eq.s32.totalorder %s9, 1
    %p94 = por %p92, %p93
    %p95 = scmp.ne.s32.totalorder %s87, %s90
    %p96 = scmp.eq.s32.totalorder %s9, 0
    %p97 = por %p95, %p96
    %p98 = scmp.ne.s32.totalorder %s87, %s90
    %p99 = scmp.eq.s32.totalorder %s14, 1
    %p100 = por %p98, %p99
    %p101 = scmp.ne.s32.totalorder %s90, %s91
    %p102 = scmp.eq.s32.totalorder %s14, 0
    %p103 = por %p101, %p102
    %p104 = scmp.ne.s32.totalorder %s90, %s91
    %p105 = scmp.eq.s32.totalorder %s15, 1
    %p106 = por %p104, %p105
    %p108 = scmp.ne.s32.totalorder %s91, %s107
    %p109 = scmp.eq.s32.totalorder %s15, 0
    %p110 = por %p108, %p109
    %p111 = scmp.le.s32.totalorder 1, %s9
    %p112 = scmp.lt.s32.totalorder %s9, 3
    %p113 = pnand %p111, %p112
    %p114 = pneg %p113
    // Predicated region
    $region9: #{double_critic_forward.2} parent=5 // pred_check
      _
    $region10: #{double_critic_forward.2} parent=5 // pred_check_branch
      %116 = sbr.rel (%p113) target = $region12
    $region11: #{double_critic_forward.2} parent=5 // pred_region
      %s117 = ssub.s32 %s9, 1
      // Predicated region
      $region13: #{double_critic_forward.2} parent=11 // pred_check
        %p118 = pneg %p56
      $region14: #{double_critic_forward.2} parent=11 // pred_check_branch
        %120 = sbr.rel (%p118) target = $region16
      $region15: #{double_critic_forward.2} parent=11 // pred_region
        _
      $region16: #{double_critic_forward.2} parent=11 // pred_fallthru
        _
      // Predicated region
      $region17: #{double_critic_forward.2} parent=11 // pred_check
        %p121 = pneg %p77
      $region18: #{double_critic_forward.2} parent=11 // pred_check_branch
        %123 = sbr.rel (%p121) target = $region20
      $region19: #{double_critic_forward.2} parent=11 // pred_region
        _
      $region20: #{double_critic_forward.2} parent=11 // pred_fallthru
        _
    $region12: #{double_critic_forward.2} parent=5 // pred_fallthru
      _
    %p124 = scmp.lt.s32.totalorder %s9, 2
    // Predicated region
    $region21: #{double_critic_forward.2} parent=5 // pred_check
      %p125 = pneg %p124
    $region22: #{double_critic_forward.2} parent=5 // pred_check_branch
      %127 = sbr.rel (%p125) target = $region24
    $region23: #{double_critic_forward.2} parent=5 // pred_region
      // Predicated region
      $region25: #{double_critic_forward.2} parent=23 // pred_check
        %p128 = pneg %p29
      $region26: #{double_critic_forward.2} parent=23 // pred_check_branch
        %130 = sbr.rel (%p128) target = $region28
      $region27: #{double_critic_forward.2} parent=23 // pred_region
        %s131 = smul.u32 98, %s9
        %p132 = scmp.lt.s32.totalorder %s131, 195
        %s133 = scalar_select %p132, %s131, 195
        %s134 = smul.addr %s133, 2
        %s135 = smul.addr %s134, 4
        %s136 = scalar_lea.vmem %s0, %s135
        %s137 = smul.u32 98, %s9
      $region28: #{double_critic_forward.2} parent=23 // pred_fallthru
        _
    $region24: #{double_critic_forward.2} parent=5 // pred_fallthru
      _
    %p138 = scmp.le.s32.totalorder 1, %s9
    %p139 = scmp.lt.s32.totalorder %s9, 3
    %p140 = pnand %p138, %p139
    %p141 = pneg %p140
    // Predicated region
    $region29: #{double_critic_forward.2} parent=5 // pred_check
      _
    $region30: #{double_critic_forward.2} parent=5 // pred_check_branch
      %143 = sbr.rel (%p140) target = $region32
    $region31: #{double_critic_forward.2} parent=5 // pred_region
      %s144 = ssub.s32 %s9, 1
      %s145 = smul.u32 98, %s14
      %p146 = scmp.lt.s32.totalorder %s145, 195
      %s147 = scalar_select %p146, %s145, 195
      %s148 = smul.addr %s147, 2
      %s149 = smul.addr %s148, 4
      %s150 = scalar_lea.vmem %s0, %s149
      %p151 = pneg %p35
      %p152 = pneg %p32
      %p153 = pneg %p56
      %p154 = pneg %p53
      %p155 = pneg %p77
      %p156 = pneg %p74
      %p157 = pneg %p103
      %p158 = pneg %p100
      %s159 = smul.u32 98, %s14
      %p160 = scmp.lt.s32.totalorder %s159, 195
      %s161 = scalar_select %p160, %s159, 195
      %s162 = smul.addr %s161, 4
      %s163 = scalar_lea.vmem %s3, %s162
      %s164 = smul.u32 98, %s14
      %p165 = scmp.lt.s32.totalorder %s164, 195
      %s166 = scalar_select %p165, %s164, 195
      %s167 = smul.addr %s166, 2
      %s168 = smul.addr %s167, 4
      %s169 = scalar_lea.vmem %s0, %s168
      %s170 = smul.u32 98, %s14
      %s171 = smul.u32 98, %s14
      %p172 = scmp.lt.s32.totalorder %s171, 195
      %s173 = scalar_select %p172, %s171, 195
      %s174 = smul.addr %s173, 4
      %s175 = scalar_lea.vmem %s3, %s174
      %s176 = smul.u32 98, %s14
      %v178 = vld [vmem:[%s169] sm:$0xff]
      %v179 = vld [vmem:[%s169 + $0x8] sm:$0xff]
      %v180 = vld [vmem:[%s169 + $0x10] sm:$0xff]
      %v181 = vld [vmem:[%s169 + $0x18] sm:$0xff]
      %v182 = vld [vmem:[%s169 + $0x20] sm:$0xff]
      %v183 = vld [vmem:[%s169 + $0x28] sm:$0xff]
      %v184 = vld [vmem:[%s169 + $0x30] sm:$0xff]
      %v185 = vld [vmem:[%s169 + $0x38] sm:$0xff]
      %v186 = vld [vmem:[%s169 + $0x40] sm:$0xff]
      %v187 = vld [vmem:[%s169 + $0x48] sm:$0xff]
      %v188 = vld [vmem:[%s169 + $0x50] sm:$0xff]
      %v189 = vld [vmem:[%s169 + $0x58] sm:$0xff]
      %v190 = vld [vmem:[%s169 + $0x60] sm:$0xff]
      %v191 = vld [vmem:[%s169 + $0x68] sm:$0xff]
      %v192 = vld [vmem:[%s169 + $0x70] sm:$0xff]
      %v193 = vld [vmem:[%s169 + $0x78] sm:$0xff]
      %v194 = vld [vmem:[%s169 + $0x80] sm:$0xff]
      %v195 = vld [vmem:[%s169 + $0x88] sm:$0xff]
      %v196 = vld [vmem:[%s169 + $0x90] sm:$0xff]
      %v197 = vld [vmem:[%s169 + $0x98] sm:$0xff]
      %v198 = vld [vmem:[%s169 + $0xa0] sm:$0xff]
      %v199 = vld [vmem:[%s169 + $0xa8] sm:$0xff]
      %v200 = vld [vmem:[%s169 + $0xb0] sm:$0xff]
      %v201 = vld [vmem:[%s169 + $0xb8] sm:$0xff]
      %v202 = vld [vmem:[%s169 + $0xc0] sm:$0xff]
      %v203 = vld [vmem:[%s169 + $0xc8] sm:$0xff]
      %v204 = vld [vmem:[%s169 + $0xd0] sm:$0xff]
      %v205 = vld [vmem:[%s169 + $0xd8] sm:$0xff]
      %v206 = vld [vmem:[%s169 + $0xe0] sm:$0xff]
      %v207 = vld [vmem:[%s169 + $0xe8] sm:$0xff]
      %v208 = vld [vmem:[%s169 + $0xf0] sm:$0xff]
      %v209 = vld [vmem:[%s169 + $0xf8] sm:$0xff]
      %v210 = vld [vmem:[%s169 + $0x100] sm:$0xff]
      %v211 = vld [vmem:[%s169 + $0x108] sm:$0xff]
      %v212 = vld [vmem:[%s169 + $0x110] sm:$0xff]
      %v213 = vld [vmem:[%s169 + $0x118] sm:$0xff]
      %v214 = vld [vmem:[%s169 + $0x120] sm:$0xff]
      %v215 = vld [vmem:[%s169 + $0x128] sm:$0xff]
      %v216 = vld [vmem:[%s169 + $0x130] sm:$0xff]
      %v217 = vld [vmem:[%s169 + $0x138] sm:$0xff]
      %v218 = vld [vmem:[%s169 + $0x140] sm:$0xff]
      %v219 = vld [vmem:[%s169 + $0x148] sm:$0xff]
      %v220 = vld [vmem:[%s169 + $0x150] sm:$0xff]
      %v221 = vld [vmem:[%s169 + $0x158] sm:$0xff]
      %v222 = vld [vmem:[%s169 + $0x160] sm:$0xff]
      %v223 = vld [vmem:[%s169 + $0x168] sm:$0xff]
      %v224 = vld [vmem:[%s169 + $0x170] sm:$0xff]
      %v225 = vld [vmem:[%s169 + $0x178] sm:$0xff]
      %v226 = vld [vmem:[%s169 + $0x180] sm:$0xff]
      %v227 = vld [vmem:[%s169 + $0x188] sm:$0xff]
      %v228 = vld [vmem:[%s169 + $0x190] sm:$0xff]
      %v229 = vld [vmem:[%s169 + $0x198] sm:$0xff]
      %v230 = vld [vmem:[%s169 + $0x1a0] sm:$0xff]
      %v231 = vld [vmem:[%s169 + $0x1a8] sm:$0xff]
      %v232 = vld [vmem:[%s169 + $0x1b0] sm:$0xff]
      %v233 = vld [vmem:[%s169 + $0x1b8] sm:$0xff]
      %v234 = vld [vmem:[%s169 + $0x1c0] sm:$0xff]
      %v235 = vld [vmem:[%s169 + $0x1c8] sm:$0xff]
      %v236 = vld [vmem:[%s169 + $0x1d0] sm:$0xff]
      %v237 = vld [vmem:[%s169 + $0x1d8] sm:$0xff]
      %v238 = vld [vmem:[%s169 + $0x1e0] sm:$0xff]
      %v239 = vld [vmem:[%s169 + $0x1e8] sm:$0xff]
      %v240 = vld [vmem:[%s169 + $0x1f0] sm:$0xff]
      %v241 = vld [vmem:[%s169 + $0x1f8] sm:$0xff]
      %v242 = vld [vmem:[%s169 + $0x200] sm:$0xff]
      %v243 = vld [vmem:[%s169 + $0x208] sm:$0xff]
      %v244 = vld [vmem:[%s169 + $0x210] sm:$0xff]
      %v245 = vld [vmem:[%s169 + $0x218] sm:$0xff]
      %v246 = vld [vmem:[%s169 + $0x220] sm:$0xff]
      %v247 = vld [vmem:[%s169 + $0x228] sm:$0xff]
      %v248 = vld [vmem:[%s169 + $0x230] sm:$0xff]
      %v249 = vld [vmem:[%s169 + $0x238] sm:$0xff]
      %v250 = vld [vmem:[%s169 + $0x240] sm:$0xff]
      %v251 = vld [vmem:[%s169 + $0x248] sm:$0xff]
      %v252 = vld [vmem:[%s169 + $0x250] sm:$0xff]
      %v253 = vld [vmem:[%s169 + $0x258] sm:$0xff]
      %v254 = vld [vmem:[%s169 + $0x260] sm:$0xff]
      %v255 = vld [vmem:[%s169 + $0x268] sm:$0xff]
      %v256 = vld [vmem:[%s169 + $0x270] sm:$0xff]
      %v257 = vld [vmem:[%s169 + $0x278] sm:$0xff]
      %v258 = vld [vmem:[%s169 + $0x280] sm:$0xff]
      %v259 = vld [vmem:[%s169 + $0x288] sm:$0xff]
      %v260 = vld [vmem:[%s169 + $0x290] sm:$0xff]
      %v261 = vld [vmem:[%s169 + $0x298] sm:$0xff]
      %v262 = vld [vmem:[%s169 + $0x2a0] sm:$0xff]
      %v263 = vld [vmem:[%s169 + $0x2a8] sm:$0xff]
      %v264 = vld [vmem:[%s169 + $0x2b0] sm:$0xff]
      %v265 = vld [vmem:[%s169 + $0x2b8] sm:$0xff]
      %v266 = vld [vmem:[%s169 + $0x2c0] sm:$0xff]
      %v267 = vld [vmem:[%s169 + $0x2c8] sm:$0xff]
      %v268 = vld [vmem:[%s169 + $0x2d0] sm:$0xff]
      %v269 = vld [vmem:[%s169 + $0x2d8] sm:$0xff]
      %v270 = vld [vmem:[%s169 + $0x2e0] sm:$0xff]
      %v271 = vld [vmem:[%s169 + $0x2e8] sm:$0xff]
      %v272 = vld [vmem:[%s169 + $0x2f0] sm:$0xff]
      %v273 = vld [vmem:[%s169 + $0x2f8] sm:$0xff]
      %v274 = vld [vmem:[%s169 + $0x300] sm:$0xff]
      %v275 = vld [vmem:[%s169 + $0x308] sm:$0xff]
      %v276 = vld [vmem:[%s1] sm:$0xf]
      %v277 = vld [vmem:[%s1 + $0x4] sm:$0xf]
      %v278 = vld [vmem:[%s1 + $0x8] sm:$0xf]
      %v279 = vld [vmem:[%s1 + $0xc] sm:$0xf]
      %v280 = vld [vmem:[%s1 + $0x10] sm:$0xf]
      %v281 = vld [vmem:[%s1 + $0x14] sm:$0xf]
      %v282 = vld [vmem:[%s1 + $0x18] sm:$0xf]
      %v283 = vld [vmem:[%s1 + $0x1c] sm:$0xf]
      %v284 = vld [vmem:[%s1 + $0x20] sm:$0xf]
      %v285 = vld [vmem:[%s1 + $0x24] sm:$0xf]
      %v286 = vld [vmem:[%s1 + $0x28] sm:$0xf]
      %v287 = vld [vmem:[%s1 + $0x2c] sm:$0xf]
      %v288 = vld [vmem:[%s1 + $0x30] sm:$0xf]
      %v289 = vld [vmem:[%s1 + $0x34] sm:$0xf]
      %v290 = vld [vmem:[%s1 + $0x38] sm:$0xf]
      %v291 = vld [vmem:[%s1 + $0x3c] sm:$0xf]
      %v292 = vld [vmem:[%s1 + $0x40] sm:$0xf]
      %v293 = vld [vmem:[%s1 + $0x44] sm:$0xf]
      %v294 = vld [vmem:[%s1 + $0x48] sm:$0xf]
      %v295 = vld [vmem:[%s1 + $0x4c] sm:$0xf]
      %v296 = vld [vmem:[%s1 + $0x50] sm:$0xf]
      %v297 = vld [vmem:[%s1 + $0x54] sm:$0xf]
      %v298 = vld [vmem:[%s1 + $0x58] sm:$0xf]
      %v299 = vld [vmem:[%s1 + $0x5c] sm:$0xf]
      %v300 = vld [vmem:[%s2] sm:$0x1]
      %v302 = vperm.slane %v300, 0
      %v402 = vunpack.c.l.b16 %v178
      %v403 = vunpack.c.h.b16 %v178
      %v404 = vunpack.c.l.b16 %v179
      %v405 = vunpack.c.h.b16 %v179
      %v406 = vunpack.c.l.b16 %v180
      %v407 = vunpack.c.h.b16 %v180
      %v408 = vunpack.c.l.b16 %v181
      %v409 = vunpack.c.h.b16 %v181
      %v410 = vunpack.c.l.b16 %v182
      %v411 = vunpack.c.h.b16 %v182
      %v412 = vunpack.c.l.b16 %v183
      %v413 = vunpack.c.h.b16 %v183
      %v414 = vunpack.c.l.b16 %v184
      %v415 = vunpack.c.h.b16 %v184
      %v416 = vunpack.c.l.b16 %v185
      %v417 = vunpack.c.h.b16 %v185
      %v418 = vunpack.c.l.b16 %v186
      %v419 = vunpack.c.h.b16 %v186
      %v420 = vunpack.c.l.b16 %v187
      %v421 = vunpack.c.h.b16 %v187
      %v422 = vunpack.c.l.b16 %v188
      %v423 = vunpack.c.h.b16 %v188
      %v424 = vunpack.c.l.b16 %v189
      %v425 = vunpack.c.h.b16 %v189
      %v426 = vunpack.c.l.b16 %v190
      %v427 = vunpack.c.h.b16 %v190
      %v428 = vunpack.c.l.b16 %v191
      %v429 = vunpack.c.h.b16 %v191
      %v430 = vunpack.c.l.b16 %v192
      %v431 = vunpack.c.h.b16 %v192
      %v432 = vunpack.c.l.b16 %v193
      %v433 = vunpack.c.h.b16 %v193
      %v434 = vunpack.c.l.b16 %v194
      %v435 = vunpack.c.h.b16 %v194
      %v436 = vunpack.c.l.b16 %v195
      %v437 = vunpack.c.h.b16 %v195
      %v438 = vunpack.c.l.b16 %v196
      %v439 = vunpack.c.h.b16 %v196
      %v440 = vunpack.c.l.b16 %v197
      %v441 = vunpack.c.h.b16 %v197
      %v442 = vunpack.c.l.b16 %v198
      %v443 = vunpack.c.h.b16 %v198
      %v444 = vunpack.c.l.b16 %v199
      %v445 = vunpack.c.h.b16 %v199
      %v446 = vunpack.c.l.b16 %v200
      %v447 = vunpack.c.h.b16 %v200
      %v448 = vunpack.c.l.b16 %v201
      %v449 = vunpack.c.h.b16 %v201
      %v450 = vunpack.c.l.b16 %v202
      %v451 = vunpack.c.h.b16 %v202
      %v452 = vunpack.c.l.b16 %v203
      %v453 = vunpack.c.h.b16 %v203
      %v454 = vunpack.c.l.b16 %v204
      %v455 = vunpack.c.h.b16 %v204
      %v456 = vunpack.c.l.b16 %v205
      %v457 = vunpack.c.h.b16 %v205
      %v458 = vunpack.c.l.b16 %v206
      %v459 = vunpack.c.h.b16 %v206
      %v460 = vunpack.c.l.b16 %v207
      %v461 = vunpack.c.h.b16 %v207
      %v462 = vunpack.c.l.b16 %v208
      %v463 = vunpack.c.h.b16 %v208
      %v464 = vunpack.c.l.b16 %v209
      %v465 = vunpack.c.h.b16 %v209
      %v466 = vunpack.c.l.b16 %v210
      %v467 = vunpack.c.h.b16 %v210
      %v468 = vunpack.c.l.b16 %v211
      %v469 = vunpack.c.h.b16 %v211
      %v470 = vunpack.c.l.b16 %v212
      %v471 = vunpack.c.h.b16 %v212
      %v472 = vunpack.c.l.b16 %v213
      %v473 = vunpack.c.h.b16 %v213
      %v474 = vunpack.c.l.b16 %v214
      %v475 = vunpack.c.h.b16 %v214
      %v476 = vunpack.c.l.b16 %v215
      %v477 = vunpack.c.h.b16 %v215
      %v478 = vunpack.c.l.b16 %v216
      %v479 = vunpack.c.h.b16 %v216
      %v480 = vunpack.c.l.b16 %v217
      %v481 = vunpack.c.h.b16 %v217
      %v482 = vunpack.c.l.b16 %v218
      %v483 = vunpack.c.h.b16 %v218
      %v484 = vunpack.c.l.b16 %v219
      %v485 = vunpack.c.h.b16 %v219
      %v486 = vunpack.c.l.b16 %v220
      %v487 = vunpack.c.h.b16 %v220
      %v488 = vunpack.c.l.b16 %v221
      %v489 = vunpack.c.h.b16 %v221
      %v490 = vunpack.c.l.b16 %v222
      %v491 = vunpack.c.h.b16 %v222
      %v492 = vunpack.c.l.b16 %v223
      %v493 = vunpack.c.h.b16 %v223
      %v494 = vunpack.c.l.b16 %v224
      %v495 = vunpack.c.h.b16 %v224
      %v496 = vunpack.c.l.b16 %v225
      %v497 = vunpack.c.h.b16 %v225
      %v498 = vunpack.c.l.b16 %v226
      %v499 = vunpack.c.h.b16 %v226
      %v500 = vunpack.c.l.b16 %v227
      %v501 = vunpack.c.h.b16 %v227
      %v502 = vunpack.c.l.b16 %v228
      %v503 = vunpack.c.h.b16 %v228
      %v504 = vunpack.c.l.b16 %v229
      %v505 = vunpack.c.h.b16 %v229
      %v506 = vunpack.c.l.b16 %v230
      %v507 = vunpack.c.h.b16 %v230
      %v508 = vunpack.c.l.b16 %v231
      %v509 = vunpack.c.h.b16 %v231
      %v510 = vunpack.c.l.b16 %v232
      %v511 = vunpack.c.h.b16 %v232
      %v512 = vunpack.c.l.b16 %v233
      %v513 = vunpack.c.h.b16 %v233
      %v514 = vunpack.c.l.b16 %v234
      %v515 = vunpack.c.h.b16 %v234
      %v516 = vunpack.c.l.b16 %v235
      %v517 = vunpack.c.h.b16 %v235
      %v518 = vunpack.c.l.b16 %v236
      %v519 = vunpack.c.h.b16 %v236
      %v520 = vunpack.c.l.b16 %v237
      %v521 = vunpack.c.h.b16 %v237
      %v522 = vunpack.c.l.b16 %v238
      %v523 = vunpack.c.h.b16 %v238
      %v524 = vunpack.c.l.b16 %v239
      %v525 = vunpack.c.h.b16 %v239
      %v526 = vunpack.c.l.b16 %v240
      %v527 = vunpack.c.h.b16 %v240
      %v528 = vunpack.c.l.b16 %v241
      %v529 = vunpack.c.h.b16 %v241
      %v530 = vunpack.c.l.b16 %v242
      %v531 = vunpack.c.h.b16 %v242
      %v532 = vunpack.c.l.b16 %v243
      %v533 = vunpack.c.h.b16 %v243
      %v534 = vunpack.c.l.b16 %v244
      %v535 = vunpack.c.h.b16 %v244
      %v536 = vunpack.c.l.b16 %v245
      %v537 = vunpack.c.h.b16 %v245
      %v538 = vunpack.c.l.b16 %v246
      %v539 = vunpack.c.h.b16 %v246
      %v540 = vunpack.c.l.b16 %v247
      %v541 = vunpack.c.h.b16 %v247
      %v542 = vunpack.c.l.b16 %v248
      %v543 = vunpack.c.h.b16 %v248
      %v544 = vunpack.c.l.b16 %v249
      %v545 = vunpack.c.h.b16 %v249
      %v546 = vunpack.c.l.b16 %v250
      %v547 = vunpack.c.h.b16 %v250
      %v548 = vunpack.c.l.b16 %v251
      %v549 = vunpack.c.h.b16 %v251
      %v550 = vunpack.c.l.b16 %v252
      %v551 = vunpack.c.h.b16 %v252
      %v552 = vunpack.c.l.b16 %v253
      %v553 = vunpack.c.h.b16 %v253
      %v554 = vunpack.c.l.b16 %v254
      %v555 = vunpack.c.h.b16 %v254
      %v556 = vunpack.c.l.b16 %v255
      %v557 = vunpack.c.h.b16 %v255
      %v558 = vunpack.c.l.b16 %v256
      %v559 = vunpack.c.h.b16 %v256
      %v560 = vunpack.c.l.b16 %v257
      %v561 = vunpack.c.h.b16 %v257
      %v562 = vunpack.c.l.b16 %v258
      %v563 = vunpack.c.h.b16 %v258
      %v564 = vunpack.c.l.b16 %v259
      %v565 = vunpack.c.h.b16 %v259
      %v566 = vunpack.c.l.b16 %v260
      %v567 = vunpack.c.h.b16 %v260
      %v568 = vunpack.c.l.b16 %v261
      %v569 = vunpack.c.h.b16 %v261
      %v570 = vunpack.c.l.b16 %v262
      %v571 = vunpack.c.h.b16 %v262
      %v572 = vunpack.c.l.b16 %v263
      %v573 = vunpack.c.h.b16 %v263
      %v574 = vunpack.c.l.b16 %v264
      %v575 = vunpack.c.h.b16 %v264
      %v576 = vunpack.c.l.b16 %v265
      %v577 = vunpack.c.h.b16 %v265
      %v578 = vunpack.c.l.b16 %v266
      %v579 = vunpack.c.h.b16 %v266
      %v580 = vunpack.c.l.b16 %v267
      %v581 = vunpack.c.h.b16 %v267
      %v582 = vunpack.c.l.b16 %v268
      %v583 = vunpack.c.h.b16 %v268
      %v584 = vunpack.c.l.b16 %v269
      %v585 = vunpack.c.h.b16 %v269
      %v586 = vunpack.c.l.b16 %v270
      %v587 = vunpack.c.h.b16 %v270
      %v588 = vunpack.c.l.b16 %v271
      %v589 = vunpack.c.h.b16 %v271
      %v590 = vunpack.c.l.b16 %v272
      %v591 = vunpack.c.h.b16 %v272
      %v592 = vunpack.c.l.b16 %v273
      %v593 = vunpack.c.h.b16 %v273
      %v594 = vunpack.c.l.b16 %v274
      %v595 = vunpack.c.h.b16 %v274
      %v596 = vunpack.c.l.b16 %v275
      %v597 = vunpack.c.h.b16 %v275
      %v598 = vpack.c.b16 %v404, %v402
      %v599 = vpack.c.b16 %v405, %v403
      %v600 = vpack.c.b16 %v408, %v406
      %v601 = vpack.c.b16 %v409, %v407
      %v602 = vpack.c.b16 %v412, %v410
      %v603 = vpack.c.b16 %v413, %v411
      %v604 = vpack.c.b16 %v416, %v414
      %v605 = vpack.c.b16 %v417, %v415
      %v606 = vpack.c.b16 %v420, %v418
      %v607 = vpack.c.b16 %v421, %v419
      %v608 = vpack.c.b16 %v424, %v422
      %v609 = vpack.c.b16 %v425, %v423
      %v610 = vpack.c.b16 %v428, %v426
      %v611 = vpack.c.b16 %v429, %v427
      %v612 = vpack.c.b16 %v432, %v430
      %v613 = vpack.c.b16 %v433, %v431
      %v614 = vpack.c.b16 %v436, %v434
      %v615 = vpack.c.b16 %v437, %v435
      %v616 = vpack.c.b16 %v440, %v438
      %v617 = vpack.c.b16 %v441, %v439
      %v618 = vpack.c.b16 %v444, %v442
      %v619 = vpack.c.b16 %v445, %v443
      %v620 = vpack.c.b16 %v448, %v446
      %v621 = vpack.c.b16 %v449, %v447
      %v622 = vpack.c.b16 %v452, %v450
      %v623 = vpack.c.b16 %v453, %v451
      %v624 = vpack.c.b16 %v456, %v454
      %v625 = vpack.c.b16 %v457, %v455
      %v626 = vpack.c.b16 %v460, %v458
      %v627 = vpack.c.b16 %v461, %v459
      %v628 = vpack.c.b16 %v464, %v462
      %v629 = vpack.c.b16 %v465, %v463
      %v630 = vpack.c.b16 %v468, %v466
      %v631 = vpack.c.b16 %v469, %v467
      %v632 = vpack.c.b16 %v472, %v470
      %v633 = vpack.c.b16 %v473, %v471
      %v634 = vpack.c.b16 %v476, %v474
      %v635 = vpack.c.b16 %v477, %v475
      %v636 = vpack.c.b16 %v480, %v478
      %v637 = vpack.c.b16 %v481, %v479
      %v638 = vpack.c.b16 %v484, %v482
      %v639 = vpack.c.b16 %v485, %v483
      %v640 = vpack.c.b16 %v488, %v486
      %v641 = vpack.c.b16 %v489, %v487
      %v642 = vpack.c.b16 %v492, %v490
      %v643 = vpack.c.b16 %v493, %v491
      %v644 = vpack.c.b16 %v496, %v494
      %v645 = vpack.c.b16 %v497, %v495
      %v646 = vpack.c.b16 %v500, %v498
      %v647 = vpack.c.b16 %v501, %v499
      %v648 = vpack.c.b16 %v504, %v502
      %v649 = vpack.c.b16 %v505, %v503
      %v650 = vpack.c.b16 %v508, %v506
      %v651 = vpack.c.b16 %v509, %v507
      %v652 = vpack.c.b16 %v512, %v510
      %v653 = vpack.c.b16 %v513, %v511
      %v654 = vpack.c.b16 %v516, %v514
      %v655 = vpack.c.b16 %v517, %v515
      %v656 = vpack.c.b16 %v520, %v518
      %v657 = vpack.c.b16 %v521, %v519
      %v658 = vpack.c.b16 %v524, %v522
      %v659 = vpack.c.b16 %v525, %v523
      %v660 = vpack.c.b16 %v528, %v526
      %v661 = vpack.c.b16 %v529, %v527
      %v662 = vpack.c.b16 %v532, %v530
      %v663 = vpack.c.b16 %v533, %v531
      %v664 = vpack.c.b16 %v536, %v534
      %v665 = vpack.c.b16 %v537, %v535
      %v666 = vpack.c.b16 %v540, %v538
      %v667 = vpack.c.b16 %v541, %v539
      %v668 = vpack.c.b16 %v544, %v542
      %v669 = vpack.c.b16 %v545, %v543
      %v670 = vpack.c.b16 %v548, %v546
      %v671 = vpack.c.b16 %v549, %v547
      %v672 = vpack.c.b16 %v552, %v550
      %v673 = vpack.c.b16 %v553, %v551
      %v674 = vpack.c.b16 %v556, %v554
      %v675 = vpack.c.b16 %v557, %v555
      %v676 = vpack.c.b16 %v560, %v558
      %v677 = vpack.c.b16 %v561, %v559
      %v678 = vpack.c.b16 %v564, %v562
      %v679 = vpack.c.b16 %v565, %v563
      %v680 = vpack.c.b16 %v568, %v566
      %v681 = vpack.c.b16 %v569, %v567
      %v682 = vpack.c.b16 %v572, %v570
      %v683 = vpack.c.b16 %v573, %v571
      %v684 = vpack.c.b16 %v576, %v574
      %v685 = vpack.c.b16 %v577, %v575
      %v686 = vpack.c.b16 %v580, %v578
      %v687 = vpack.c.b16 %v581, %v579
      %v688 = vpack.c.b16 %v584, %v582
      %v689 = vpack.c.b16 %v585, %v583
      %v690 = vpack.c.b16 %v588, %v586
      %v691 = vpack.c.b16 %v589, %v587
      %v692 = vpack.c.b16 %v592, %v590
      %v693 = vpack.c.b16 %v593, %v591
      %v694 = vpack.c.b16 %v596, %v594
      %v695 = vpack.c.b16 %v597, %v595
      %v769 = vunpack.c.l.b16 %v276
      %v770 = vunpack.c.l.b16 %v277
      %v771 = vunpack.c.l.b16 %v278
      %v772 = vunpack.c.l.b16 %v279
      %v773 = vunpack.c.l.b16 %v280
      %v774 = vunpack.c.l.b16 %v281
      %v775 = vunpack.c.l.b16 %v282
      %v776 = vunpack.c.l.b16 %v283
      %v777 = vunpack.c.l.b16 %v284
      %v778 = vunpack.c.l.b16 %v285
      %v779 = vunpack.c.l.b16 %v286
      %v780 = vunpack.c.l.b16 %v287
      %v781 = vunpack.c.l.b16 %v288
      %v782 = vunpack.c.l.b16 %v289
      %v783 = vunpack.c.l.b16 %v290
      %v784 = vunpack.c.l.b16 %v291
      %v785 = vunpack.c.l.b16 %v292
      %v786 = vunpack.c.l.b16 %v293
      %v787 = vunpack.c.l.b16 %v294
      %v788 = vunpack.c.l.b16 %v295
      %v789 = vunpack.c.l.b16 %v296
      %v790 = vunpack.c.l.b16 %v297
      %v791 = vunpack.c.l.b16 %v298
      %v792 = vunpack.c.l.b16 %v299
      %v793 = vpack.c.b16 %v770, %v769
      %v794 = vpack.c.b16 %v772, %v771
      %v795 = vpack.c.b16 %v774, %v773
      %v796 = vpack.c.b16 %v776, %v775
      %v797 = vpack.c.b16 %v778, %v777
      %v798 = vpack.c.b16 %v780, %v779
      %v799 = vpack.c.b16 %v782, %v781
      %v800 = vpack.c.b16 %v784, %v783
      %v801 = vpack.c.b16 %v786, %v785
      %v802 = vpack.c.b16 %v788, %v787
      %v803 = vpack.c.b16 %v790, %v789
      %v804 = vpack.c.b16 %v792, %v791
      %vm817 = vcmask 523264
      %v819 = vsel %vm817, %v599, 0
      %v822 = vsel %vm817, %v601, 0
      %v825 = vsel %vm817, %v603, 0
      %v828 = vsel %vm817, %v605, 0
      %v831 = vsel %vm817, %v607, 0
      %v834 = vsel %vm817, %v609, 0
      %v837 = vsel %vm817, %v611, 0
      %v840 = vsel %vm817, %v613, 0
      %v843 = vsel %vm817, %v615, 0
      %v846 = vsel %vm817, %v617, 0
      %v849 = vsel %vm817, %v619, 0
      %v852 = vsel %vm817, %v621, 0
      %v855 = vsel %vm817, %v623, 0
      %v858 = vsel %vm817, %v625, 0
      %v861 = vsel %vm817, %v627, 0
      %v864 = vsel %vm817, %v629, 0
      %v867 = vsel %vm817, %v631, 0
      %v870 = vsel %vm817, %v633, 0
      %v873 = vsel %vm817, %v635, 0
      %v876 = vsel %vm817, %v637, 0
      %v879 = vsel %vm817, %v639, 0
      %v882 = vsel %vm817, %v641, 0
      %v885 = vsel %vm817, %v643, 0
      %v888 = vsel %vm817, %v645, 0
      %v891 = vsel %vm817, %v647, 0
      %v894 = vsel %vm817, %v649, 0
      %v897 = vsel %vm817, %v651, 0
      %v900 = vsel %vm817, %v653, 0
      %v903 = vsel %vm817, %v655, 0
      %v906 = vsel %vm817, %v657, 0
      %v909 = vsel %vm817, %v659, 0
      %v912 = vsel %vm817, %v661, 0
      %v915 = vsel %vm817, %v663, 0
      %v918 = vsel %vm817, %v665, 0
      %v921 = vsel %vm817, %v667, 0
      %v924 = vsel %vm817, %v669, 0
      %v927 = vsel %vm817, %v671, 0
      %v930 = vsel %vm817, %v673, 0
      %v933 = vsel %vm817, %v675, 0
      %v936 = vsel %vm817, %v677, 0
      %v939 = vsel %vm817, %v679, 0
      %v942 = vsel %vm817, %v681, 0
      %v945 = vsel %vm817, %v683, 0
      %v948 = vsel %vm817, %v685, 0
      %v951 = vsel %vm817, %v687, 0
      %v954 = vsel %vm817, %v689, 0
      %v957 = vsel %vm817, %v691, 0
      %v960 = vsel %vm817, %v693, 0
      %v963 = vsel %vm817, %v695, 0
      %965 = vmatpush.bf16.msra.mxu0 %v800
      %966 = vmatpush.bf16.msra.mxu0 %v799
      %967 = vmatpush.bf16.msra.mxu0 %v798
      %968 = vmatpush.bf16.msra.mxu0 %v797
      %969 = vmatpush.bf16.msra.mxu0 %v796
      %970 = vmatpush.bf16.msra.mxu0 %v795
      %971 = vmatpush.bf16.msra.mxu0 %v794
      %972 = vmatpush.bf16.msra.mxu0 %v793
      %973 = vmatmul.bf16.gmra.mxu0 %v598
      %v974 = vpop.f32.mrf.mxu0
      %v975 = vadd.f32 %v302, %v974
      %v976 = vpop.f32.mrf.mxu0
      %v977 = vadd.f32 %v302, %v976
      %978 = vmatmul.bf16.gmra.mxu0 %v600
      %v979 = vpop.f32.mrf.mxu0
      %v980 = vadd.f32 %v302, %v979
      %v981 = vpop.f32.mrf.mxu0
      %v982 = vadd.f32 %v302, %v981
      %983 = vmatmul.bf16.gmra.mxu0 %v602
      %v984 = vpop.f32.mrf.mxu0
      %v985 = vadd.f32 %v302, %v984
      %v986 = vpop.f32.mrf.mxu0
      %v987 = vadd.f32 %v302, %v986
      %988 = vmatmul.bf16.gmra.mxu0 %v604
      %v989 = vpop.f32.mrf.mxu0
      %v990 = vadd.f32 %v302, %v989
      %v991 = vpop.f32.mrf.mxu0
      %v992 = vadd.f32 %v302, %v991
      %993 = vmatmul.bf16.gmra.mxu0 %v606
      %v994 = vpop.f32.mrf.mxu0
      %v995 = vadd.f32 %v302, %v994
      %v996 = vpop.f32.mrf.mxu0
      %v997 = vadd.f32 %v302, %v996
      %998 = vmatmul.bf16.gmra.mxu0 %v608
      %v999 = vpop.f32.mrf.mxu0
      %v1000 = vadd.f32 %v302, %v999
      %v1001 = vpop.f32.mrf.mxu0
      %v1002 = vadd.f32 %v302, %v1001
      %1003 = vmatmul.bf16.gmra.mxu0 %v610
      %v1004 = vpop.f32.mrf.mxu0
      %v1005 = vadd.f32 %v302, %v1004
      %v1006 = vpop.f32.mrf.mxu0
      %v1007 = vadd.f32 %v302, %v1006
      %1008 = vmatmul.bf16.gmra.mxu0 %v612
      %v1009 = vpop.f32.mrf.mxu0
      %v1010 = vadd.f32 %v302, %v1009
      %v1011 = vpop.f32.mrf.mxu0
      %v1012 = vadd.f32 %v302, %v1011
      %1013 = vmatmul.bf16.gmra.mxu0 %v614
      %v1014 = vpop.f32.mrf.mxu0
      %v1015 = vadd.f32 %v302, %v1014
      %v1016 = vpop.f32.mrf.mxu0
      %v1017 = vadd.f32 %v302, %v1016
      %1018 = vmatmul.bf16.gmra.mxu0 %v616
      %v1019 = vpop.f32.mrf.mxu0
      %v1020 = vadd.f32 %v302, %v1019
      %v1021 = vpop.f32.mrf.mxu0
      %v1022 = vadd.f32 %v302, %v1021
      %1023 = vmatmul.bf16.gmra.mxu0 %v618
      %v1024 = vpop.f32.mrf.mxu0
      %v1025 = vadd.f32 %v302, %v1024
      %v1026 = vpop.f32.mrf.mxu0
      %v1027 = vadd.f32 %v302, %v1026
      %1028 = vmatmul.bf16.gmra.mxu0 %v620
      %v1029 = vpop.f32.mrf.mxu0
      %v1030 = vadd.f32 %v302, %v1029
      %v1031 = vpop.f32.mrf.mxu0
      %v1032 = vadd.f32 %v302, %v1031
      %1033 = vmatmul.bf16.gmra.mxu0 %v622
      %v1034 = vpop.f32.mrf.mxu0
      %v1035 = vadd.f32 %v302, %v1034
      %v1036 = vpop.f32.mrf.mxu0
      %v1037 = vadd.f32 %v302, %v1036
      %1038 = vmatmul.bf16.gmra.mxu0 %v624
      %v1039 = vpop.f32.mrf.mxu0
      %v1040 = vadd.f32 %v302, %v1039
      %v1041 = vpop.f32.mrf.mxu0
      %v1042 = vadd.f32 %v302, %v1041
      %1043 = vmatmul.bf16.gmra.mxu0 %v626
      %v1044 = vpop.f32.mrf.mxu0
      %v1045 = vadd.f32 %v302, %v1044
      %v1046 = vpop.f32.mrf.mxu0
      %v1047 = vadd.f32 %v302, %v1046
      %1048 = vmatmul.bf16.gmra.mxu0 %v628
      %v1049 = vpop.f32.mrf.mxu0
      %v1050 = vadd.f32 %v302, %v1049
      %v1051 = vpop.f32.mrf.mxu0
      %v1052 = vadd.f32 %v302, %v1051
      %1053 = vmatmul.bf16.gmra.mxu0 %v630
      %v1054 = vpop.f32.mrf.mxu0
      %v1055 = vadd.f32 %v302, %v1054
      %v1056 = vpop.f32.mrf.mxu0
      %v1057 = vadd.f32 %v302, %v1056
      %1058 = vmatmul.bf16.gmra.mxu0 %v632
      %v1059 = vpop.f32.mrf.mxu0
      %v1060 = vadd.f32 %v302, %v1059
      %v1061 = vpop.f32.mrf.mxu0
      %v1062 = vadd.f32 %v302, %v1061
      %1063 = vmatmul.bf16.gmra.mxu0 %v634
      %v1064 = vpop.f32.mrf.mxu0
      %v1065 = vadd.f32 %v302, %v1064
      %v1066 = vpop.f32.mrf.mxu0
      %v1067 = vadd.f32 %v302, %v1066
      %1068 = vmatmul.bf16.gmra.mxu0 %v636
      %v1069 = vpop.f32.mrf.mxu0
      %v1070 = vadd.f32 %v302, %v1069
      %v1071 = vpop.f32.mrf.mxu0
      %v1072 = vadd.f32 %v302, %v1071
      %1073 = vmatmul.bf16.gmra.mxu0 %v638
      %v1074 = vpop.f32.mrf.mxu0
      %v1075 = vadd.f32 %v302, %v1074
      %v1076 = vpop.f32.mrf.mxu0
      %v1077 = vadd.f32 %v302, %v1076
      %1078 = vmatmul.bf16.gmra.mxu0 %v640
      %v1079 = vpop.f32.mrf.mxu0
      %v1080 = vadd.f32 %v302, %v1079
      %v1081 = vpop.f32.mrf.mxu0
      %v1082 = vadd.f32 %v302, %v1081
      %1083 = vmatmul.bf16.gmra.mxu0 %v642
      %v1084 = vpop.f32.mrf.mxu0
      %v1085 = vadd.f32 %v302, %v1084
      %v1086 = vpop.f32.mrf.mxu0
      %v1087 = vadd.f32 %v302, %v1086
      %1088 = vmatmul.bf16.gmra.mxu0 %v644
      %v1089 = vpop.f32.mrf.mxu0
      %v1090 = vadd.f32 %v302, %v1089
      %v1091 = vpop.f32.mrf.mxu0
      %v1092 = vadd.f32 %v302, %v1091
      %1093 = vmatmul.bf16.gmra.mxu0 %v646
      %v1094 = vpop.f32.mrf.mxu0
      %v1095 = vadd.f32 %v302, %v1094
      %v1096 = vpop.f32.mrf.mxu0
      %v1097 = vadd.f32 %v302, %v1096
      %1098 = vmatmul.bf16.gmra.mxu0 %v648
      %v1099 = vpop.f32.mrf.mxu0
      %v1100 = vadd.f32 %v302, %v1099
      %v1101 = vpop.f32.mrf.mxu0
      %v1102 = vadd.f32 %v302, %v1101
      %1103 = vmatmul.bf16.gmra.mxu0 %v650
      %v1104 = vpop.f32.mrf.mxu0
      %v1105 = vadd.f32 %v302, %v1104
      %v1106 = vpop.f32.mrf.mxu0
      %v1107 = vadd.f32 %v302, %v1106
      %1108 = vmatmul.bf16.gmra.mxu0 %v652
      %v1109 = vpop.f32.mrf.mxu0
      %v1110 = vadd.f32 %v302, %v1109
      %v1111 = vpop.f32.mrf.mxu0
      %v1112 = vadd.f32 %v302, %v1111
      %1113 = vmatmul.bf16.gmra.mxu0 %v654
      %v1114 = vpop.f32.mrf.mxu0
      %v1115 = vadd.f32 %v302, %v1114
      %v1116 = vpop.f32.mrf.mxu0
      %v1117 = vadd.f32 %v302, %v1116
      %1118 = vmatmul.bf16.gmra.mxu0 %v656
      %v1119 = vpop.f32.mrf.mxu0
      %v1120 = vadd.f32 %v302, %v1119
      %v1121 = vpop.f32.mrf.mxu0
      %v1122 = vadd.f32 %v302, %v1121
      %1123 = vmatmul.bf16.gmra.mxu0 %v658
      %v1124 = vpop.f32.mrf.mxu0
      %v1125 = vadd.f32 %v302, %v1124
      %v1126 = vpop.f32.mrf.mxu0
      %v1127 = vadd.f32 %v302, %v1126
      %1128 = vmatmul.bf16.gmra.mxu0 %v660
      %v1129 = vpop.f32.mrf.mxu0
      %v1130 = vadd.f32 %v302, %v1129
      %v1131 = vpop.f32.mrf.mxu0
      %v1132 = vadd.f32 %v302, %v1131
      %1133 = vmatmul.bf16.gmra.mxu0 %v662
      %v1134 = vpop.f32.mrf.mxu0
      %v1135 = vadd.f32 %v302, %v1134
      %v1136 = vpop.f32.mrf.mxu0
      %v1137 = vadd.f32 %v302, %v1136
      %1138 = vmatmul.bf16.gmra.mxu0 %v664
      %v1139 = vpop.f32.mrf.mxu0
      %v1140 = vadd.f32 %v302, %v1139
      %v1141 = vpop.f32.mrf.mxu0
      %v1142 = vadd.f32 %v302, %v1141
      %1143 = vmatmul.bf16.gmra.mxu0 %v666
      %v1144 = vpop.f32.mrf.mxu0
      %v1145 = vadd.f32 %v302, %v1144
      %v1146 = vpop.f32.mrf.mxu0
      %v1147 = vadd.f32 %v302, %v1146
      %1148 = vmatmul.bf16.gmra.mxu0 %v668
      %v1149 = vpop.f32.mrf.mxu0
      %v1150 = vadd.f32 %v302, %v1149
      %v1151 = vpop.f32.mrf.mxu0
      %v1152 = vadd.f32 %v302, %v1151
      %1153 = vmatmul.bf16.gmra.mxu0 %v670
      %v1154 = vpop.f32.mrf.mxu0
      %v1155 = vadd.f32 %v302, %v1154
      %v1156 = vpop.f32.mrf.mxu0
      %v1157 = vadd.f32 %v302, %v1156
      %1158 = vmatmul.bf16.gmra.mxu0 %v672
      %v1159 = vpop.f32.mrf.mxu0
      %v1160 = vadd.f32 %v302, %v1159
      %v1161 = vpop.f32.mrf.mxu0
      %v1162 = vadd.f32 %v302, %v1161
      %1163 = vmatmul.bf16.gmra.mxu0 %v674
      %v1164 = vpop.f32.mrf.mxu0
      %v1165 = vadd.f32 %v302, %v1164
      %v1166 = vpop.f32.mrf.mxu0
      %v1167 = vadd.f32 %v302, %v1166
      %1168 = vmatmul.bf16.gmra.mxu0 %v676
      %v1169 = vpop.f32.mrf.mxu0
      %v1170 = vadd.f32 %v302, %v1169
      %v1171 = vpop.f32.mrf.mxu0
      %v1172 = vadd.f32 %v302, %v1171
      %1173 = vmatmul.bf16.gmra.mxu0 %v678
      %v1174 = vpop.f32.mrf.mxu0
      %v1175 = vadd.f32 %v302, %v1174
      %v1176 = vpop.f32.mrf.mxu0
      %v1177 = vadd.f32 %v302, %v1176
      %1178 = vmatmul.bf16.gmra.mxu0 %v680
      %v1179 = vpop.f32.mrf.mxu0
      %v1180 = vadd.f32 %v302, %v1179
      %v1181 = vpop.f32.mrf.mxu0
      %v1182 = vadd.f32 %v302, %v1181
      %1183 = vmatmul.bf16.gmra.mxu0 %v682
      %v1184 = vpop.f32.mrf.mxu0
      %v1185 = vadd.f32 %v302, %v1184
      %v1186 = vpop.f32.mrf.mxu0
      %v1187 = vadd.f32 %v302, %v1186
      %1188 = vmatmul.bf16.gmra.mxu0 %v684
      %v1189 = vpop.f32.mrf.mxu0
      %v1190 = vadd.f32 %v302, %v1189
      %v1191 = vpop.f32.mrf.mxu0
      %v1192 = vadd.f32 %v302, %v1191
      %1193 = vmatmul.bf16.gmra.mxu0 %v686
      %v1194 = vpop.f32.mrf.mxu0
      %v1195 = vadd.f32 %v302, %v1194
      %v1196 = vpop.f32.mrf.mxu0
      %v1197 = vadd.f32 %v302, %v1196
      %1198 = vmatmul.bf16.gmra.mxu0 %v688
      %v1199 = vpop.f32.mrf.mxu0
      %v1200 = vadd.f32 %v302, %v1199
      %v1201 = vpop.f32.mrf.mxu0
      %v1202 = vadd.f32 %v302, %v1201
      %1203 = vmatmul.bf16.gmra.mxu0 %v690
      %v1204 = vpop.f32.mrf.mxu0
      %v1205 = vadd.f32 %v302, %v1204
      %v1206 = vpop.f32.mrf.mxu0
      %v1207 = vadd.f32 %v302, %v1206
      %1208 = vmatmul.bf16.gmra.mxu0 %v692
      %v1209 = vpop.f32.mrf.mxu0
      %v1210 = vadd.f32 %v302, %v1209
      %v1211 = vpop.f32.mrf.mxu0
      %v1212 = vadd.f32 %v302, %v1211
      %1213 = vmatmul.bf16.gmra.mxu0 %v694
      %v1214 = vpop.f32.mrf.mxu0
      %v1215 = vadd.f32 %v302, %v1214
      %v1216 = vpop.f32.mrf.mxu0
      %v1217 = vadd.f32 %v302, %v1216
      %1218 = vdwg.mxu0
      %1219 = vmatpush.bf16.msra.mxu0 0
      %1220 = vmatpush.bf16.msra.mxu0 0
      %1221 = vmatpush.bf16.msra.mxu0 0
      %1222 = vmatpush.bf16.msra.mxu0 0
      %1223 = vmatpush.bf16.msra.mxu0 %v804
      %1224 = vmatpush.bf16.msra.mxu0 %v803
      %1225 = vmatpush.bf16.msra.mxu0 %v802
      %1226 = vmatpush.bf16.msra.mxu0 %v801
      %1227 = vmatmul.bf16.gmra.mxu0 %v819
      %v1228 = vpop.f32.mrf.mxu0
      %v1229 = vadd.f32 %v975, %v1228
      %v1230 = vpop.f32.mrf.mxu0
      %v1231 = vadd.f32 %v977, %v1230
      %1232 = vmatmul.bf16.gmra.mxu0 %v822
      %v1233 = vpop.f32.mrf.mxu0
      %v1234 = vadd.f32 %v980, %v1233
      %v1235 = vpop.f32.mrf.mxu0
      %v1236 = vadd.f32 %v982, %v1235
      %1237 = vmatmul.bf16.gmra.mxu0 %v825
      %v1238 = vpop.f32.mrf.mxu0
      %v1239 = vadd.f32 %v985, %v1238
      %v1240 = vpop.f32.mrf.mxu0
      %v1241 = vadd.f32 %v987, %v1240
      %1242 = vmatmul.bf16.gmra.mxu0 %v828
      %v1243 = vpop.f32.mrf.mxu0
      %v1244 = vadd.f32 %v990, %v1243
      %v1245 = vpop.f32.mrf.mxu0
      %v1246 = vadd.f32 %v992, %v1245
      %1247 = vmatmul.bf16.gmra.mxu0 %v831
      %v1248 = vpop.f32.mrf.mxu0
      %v1249 = vadd.f32 %v995, %v1248
      %v1250 = vpop.f32.mrf.mxu0
      %v1251 = vadd.f32 %v997, %v1250
      %1252 = vmatmul.bf16.gmra.mxu0 %v834
      %v1253 = vpop.f32.mrf.mxu0
      %v1254 = vadd.f32 %v1000, %v1253
      %v1255 = vpop.f32.mrf.mxu0
      %v1256 = vadd.f32 %v1002, %v1255
      %1257 = vmatmul.bf16.gmra.mxu0 %v837
      %v1258 = vpop.f32.mrf.mxu0
      %v1259 = vadd.f32 %v1005, %v1258
      %v1260 = vpop.f32.mrf.mxu0
      %v1261 = vadd.f32 %v1007, %v1260
      %1262 = vmatmul.bf16.gmra.mxu0 %v840
      %v1263 = vpop.f32.mrf.mxu0
      %v1264 = vadd.f32 %v1010, %v1263
      %v1265 = vpop.f32.mrf.mxu0
      %v1266 = vadd.f32 %v1012, %v1265
      %1267 = vmatmul.bf16.gmra.mxu0 %v843
      %v1268 = vpop.f32.mrf.mxu0
      %v1269 = vadd.f32 %v1015, %v1268
      %v1270 = vpop.f32.mrf.mxu0
      %v1271 = vadd.f32 %v1017, %v1270
      %1272 = vmatmul.bf16.gmra.mxu0 %v846
      %v1273 = vpop.f32.mrf.mxu0
      %v1274 = vadd.f32 %v1020, %v1273
      %v1275 = vpop.f32.mrf.mxu0
      %v1276 = vadd.f32 %v1022, %v1275
      %1277 = vmatmul.bf16.gmra.mxu0 %v849
      %v1278 = vpop.f32.mrf.mxu0
      %v1279 = vadd.f32 %v1025, %v1278
      %v1280 = vpop.f32.mrf.mxu0
      %v1281 = vadd.f32 %v1027, %v1280
      %1282 = vmatmul.bf16.gmra.mxu0 %v852
      %v1283 = vpop.f32.mrf.mxu0
      %v1284 = vadd.f32 %v1030, %v1283
      %v1285 = vpop.f32.mrf.mxu0
      %v1286 = vadd.f32 %v1032, %v1285
      %1287 = vmatmul.bf16.gmra.mxu0 %v855
      %v1288 = vpop.f32.mrf.mxu0
      %v1289 = vadd.f32 %v1035, %v1288
      %v1290 = vpop.f32.mrf.mxu0
      %v1291 = vadd.f32 %v1037, %v1290
      %1292 = vmatmul.bf16.gmra.mxu0 %v858
      %v1293 = vpop.f32.mrf.mxu0
      %v1294 = vadd.f32 %v1040, %v1293
      %v1295 = vpop.f32.mrf.mxu0
      %v1296 = vadd.f32 %v1042, %v1295
      %1297 = vmatmul.bf16.gmra.mxu0 %v861
      %v1298 = vpop.f32.mrf.mxu0
      %v1299 = vadd.f32 %v1045, %v1298
      %v1300 = vpop.f32.mrf.mxu0
      %v1301 = vadd.f32 %v1047, %v1300
      %1302 = vmatmul.bf16.gmra.mxu0 %v864
      %v1303 = vpop.f32.mrf.mxu0
      %v1304 = vadd.f32 %v1050, %v1303
      %v1305 = vpop.f32.mrf.mxu0
      %v1306 = vadd.f32 %v1052, %v1305
      %1307 = vmatmul.bf16.gmra.mxu0 %v867
      %v1308 = vpop.f32.mrf.mxu0
      %v1309 = vadd.f32 %v1055, %v1308
      %v1310 = vpop.f32.mrf.mxu0
      %v1311 = vadd.f32 %v1057, %v1310
      %1312 = vmatmul.bf16.gmra.mxu0 %v870
      %v1313 = vpop.f32.mrf.mxu0
      %v1314 = vadd.f32 %v1060, %v1313
      %v1315 = vpop.f32.mrf.mxu0
      %v1316 = vadd.f32 %v1062, %v1315
      %1317 = vmatmul.bf16.gmra.mxu0 %v873
      %v1318 = vpop.f32.mrf.mxu0
      %v1319 = vadd.f32 %v1065, %v1318
      %v1320 = vpop.f32.mrf.mxu0
      %v1321 = vadd.f32 %v1067, %v1320
      %1322 = vmatmul.bf16.gmra.mxu0 %v876
      %v1323 = vpop.f32.mrf.mxu0
      %v1324 = vadd.f32 %v1070, %v1323
      %v1325 = vpop.f32.mrf.mxu0
      %v1326 = vadd.f32 %v1072, %v1325
      %1327 = vmatmul.bf16.gmra.mxu0 %v879
      %v1328 = vpop.f32.mrf.mxu0
      %v1329 = vadd.f32 %v1075, %v1328
      %v1330 = vpop.f32.mrf.mxu0
      %v1331 = vadd.f32 %v1077, %v1330
      %1332 = vmatmul.bf16.gmra.mxu0 %v882
      %v1333 = vpop.f32.mrf.mxu0
      %v1334 = vadd.f32 %v1080, %v1333
      %v1335 = vpop.f32.mrf.mxu0
      %v1336 = vadd.f32 %v1082, %v1335
      %1337 = vmatmul.bf16.gmra.mxu0 %v885
      %v1338 = vpop.f32.mrf.mxu0
      %v1339 = vadd.f32 %v1085, %v1338
      %v1340 = vpop.f32.mrf.mxu0
      %v1341 = vadd.f32 %v1087, %v1340
      %1342 = vmatmul.bf16.gmra.mxu0 %v888
      %v1343 = vpop.f32.mrf.mxu0
      %v1344 = vadd.f32 %v1090, %v1343
      %v1345 = vpop.f32.mrf.mxu0
      %v1346 = vadd.f32 %v1092, %v1345
      %1347 = vmatmul.bf16.gmra.mxu0 %v891
      %v1348 = vpop.f32.mrf.mxu0
      %v1349 = vadd.f32 %v1095, %v1348
      %v1350 = vpop.f32.mrf.mxu0
      %v1351 = vadd.f32 %v1097, %v1350
      %1352 = vmatmul.bf16.gmra.mxu0 %v894
      %v1353 = vpop.f32.mrf.mxu0
      %v1354 = vadd.f32 %v1100, %v1353
      %v1355 = vpop.f32.mrf.mxu0
      %v1356 = vadd.f32 %v1102, %v1355
      %1357 = vmatmul.bf16.gmra.mxu0 %v897
      %v1358 = vpop.f32.mrf.mxu0
      %v1359 = vadd.f32 %v1105, %v1358
      %v1360 = vpop.f32.mrf.mxu0
      %v1361 = vadd.f32 %v1107, %v1360
      %1362 = vmatmul.bf16.gmra.mxu0 %v900
      %v1363 = vpop.f32.mrf.mxu0
      %v1364 = vadd.f32 %v1110, %v1363
      %v1365 = vpop.f32.mrf.mxu0
      %v1366 = vadd.f32 %v1112, %v1365
      %1367 = vmatmul.bf16.gmra.mxu0 %v903
      %v1368 = vpop.f32.mrf.mxu0
      %v1369 = vadd.f32 %v1115, %v1368
      %v1370 = vpop.f32.mrf.mxu0
      %v1371 = vadd.f32 %v1117, %v1370
      %1372 = vmatmul.bf16.gmra.mxu0 %v906
      %v1373 = vpop.f32.mrf.mxu0
      %v1374 = vadd.f32 %v1120, %v1373
      %v1375 = vpop.f32.mrf.mxu0
      %v1376 = vadd.f32 %v1122, %v1375
      %1377 = vmatmul.bf16.gmra.mxu0 %v909
      %v1378 = vpop.f32.mrf.mxu0
      %v1379 = vadd.f32 %v1125, %v1378
      %v1380 = vpop.f32.mrf.mxu0
      %v1381 = vadd.f32 %v1127, %v1380
      %1382 = vmatmul.bf16.gmra.mxu0 %v912
      %v1383 = vpop.f32.mrf.mxu0
      %v1384 = vadd.f32 %v1130, %v1383
      %v1385 = vpop.f32.mrf.mxu0
      %v1386 = vadd.f32 %v1132, %v1385
      %1387 = vmatmul.bf16.gmra.mxu0 %v915
      %v1388 = vpop.f32.mrf.mxu0
      %v1389 = vadd.f32 %v1135, %v1388
      %v1390 = vpop.f32.mrf.mxu0
      %v1391 = vadd.f32 %v1137, %v1390
      %1392 = vmatmul.bf16.gmra.mxu0 %v918
      %v1393 = vpop.f32.mrf.mxu0
      %v1394 = vadd.f32 %v1140, %v1393
      %v1395 = vpop.f32.mrf.mxu0
      %v1396 = vadd.f32 %v1142, %v1395
      %1397 = vmatmul.bf16.gmra.mxu0 %v921
      %v1398 = vpop.f32.mrf.mxu0
      %v1399 = vadd.f32 %v1145, %v1398
      %v1400 = vpop.f32.mrf.mxu0
      %v1401 = vadd.f32 %v1147, %v1400
      %1402 = vmatmul.bf16.gmra.mxu0 %v924
      %v1403 = vpop.f32.mrf.mxu0
      %v1404 = vadd.f32 %v1150, %v1403
      %v1405 = vpop.f32.mrf.mxu0
      %v1406 = vadd.f32 %v1152, %v1405
      %1407 = vmatmul.bf16.gmra.mxu0 %v927
      %v1408 = vpop.f32.mrf.mxu0
      %v1409 = vadd.f32 %v1155, %v1408
      %v1410 = vpop.f32.mrf.mxu0
      %v1411 = vadd.f32 %v1157, %v1410
      %1412 = vmatmul.bf16.gmra.mxu0 %v930
      %v1413 = vpop.f32.mrf.mxu0
      %v1414 = vadd.f32 %v1160, %v1413
      %v1415 = vpop.f32.mrf.mxu0
      %v1416 = vadd.f32 %v1162, %v1415
      %1417 = vmatmul.bf16.gmra.mxu0 %v933
      %v1418 = vpop.f32.mrf.mxu0
      %v1419 = vadd.f32 %v1165, %v1418
      %v1420 = vpop.f32.mrf.mxu0
      %v1421 = vadd.f32 %v1167, %v1420
      %1422 = vmatmul.bf16.gmra.mxu0 %v936
      %v1423 = vpop.f32.mrf.mxu0
      %v1424 = vadd.f32 %v1170, %v1423
      %v1425 = vpop.f32.mrf.mxu0
      %v1426 = vadd.f32 %v1172, %v1425
      %1427 = vmatmul.bf16.gmra.mxu0 %v939
      %v1428 = vpop.f32.mrf.mxu0
      %v1429 = vadd.f32 %v1175, %v1428
      %v1430 = vpop.f32.mrf.mxu0
      %v1431 = vadd.f32 %v1177, %v1430
      %1432 = vmatmul.bf16.gmra.mxu0 %v942
      %v1433 = vpop.f32.mrf.mxu0
      %v1434 = vadd.f32 %v1180, %v1433
      %v1435 = vpop.f32.mrf.mxu0
      %v1436 = vadd.f32 %v1182, %v1435
      %1437 = vmatmul.bf16.gmra.mxu0 %v945
      %v1438 = vpop.f32.mrf.mxu0
      %v1439 = vadd.f32 %v1185, %v1438
      %v1440 = vpop.f32.mrf.mxu0
      %v1441 = vadd.f32 %v1187, %v1440
      %1442 = vmatmul.bf16.gmra.mxu0 %v948
      %v1443 = vpop.f32.mrf.mxu0
      %v1444 = vadd.f32 %v1190, %v1443
      %v1445 = vpop.f32.mrf.mxu0
      %v1446 = vadd.f32 %v1192, %v1445
      %1447 = vmatmul.bf16.gmra.mxu0 %v951
      %v1448 = vpop.f32.mrf.mxu0
      %v1449 = vadd.f32 %v1195, %v1448
      %v1450 = vpop.f32.mrf.mxu0
      %v1451 = vadd.f32 %v1197, %v1450
      %1452 = vmatmul.bf16.gmra.mxu0 %v954
      %v1453 = vpop.f32.mrf.mxu0
      %v1454 = vadd.f32 %v1200, %v1453
      %v1455 = vpop.f32.mrf.mxu0
      %v1456 = vadd.f32 %v1202, %v1455
      %1457 = vmatmul.bf16.gmra.mxu0 %v957
      %v1458 = vpop.f32.mrf.mxu0
      %v1459 = vadd.f32 %v1205, %v1458
      %v1460 = vpop.f32.mrf.mxu0
      %v1461 = vadd.f32 %v1207, %v1460
      %1462 = vmatmul.bf16.gmra.mxu0 %v960
      %v1463 = vpop.f32.mrf.mxu0
      %v1464 = vadd.f32 %v1210, %v1463
      %v1465 = vpop.f32.mrf.mxu0
      %v1466 = vadd.f32 %v1212, %v1465
      %1467 = vmatmul.bf16.gmra.mxu0 %v963
      %v1468 = vpop.f32.mrf.mxu0
      %v1469 = vadd.f32 %v1215, %v1468
      %v1470 = vpop.f32.mrf.mxu0
      %v1471 = vadd.f32 %v1217, %v1470
      %1472 = vdwg.mxu0
      %v1473 = vmax.f32 %v1229, 0.0
      %v1474 = vmax.f32 %v1231, 0.0
      %v1475 = vmax.f32 %v1234, 0.0
      %v1476 = vmax.f32 %v1236, 0.0
      %v1477 = vmax.f32 %v1239, 0.0
      %v1478 = vmax.f32 %v1241, 0.0
      %v1479 = vmax.f32 %v1244, 0.0
      %v1480 = vmax.f32 %v1246, 0.0
      %v1481 = vmax.f32 %v1249, 0.0
      %v1482 = vmax.f32 %v1251, 0.0
      %v1483 = vmax.f32 %v1254, 0.0
      %v1484 = vmax.f32 %v1256, 0.0
      %v1485 = vmax.f32 %v1259, 0.0
      %v1486 = vmax.f32 %v1261, 0.0
      %v1487 = vmax.f32 %v1264, 0.0
      %v1488 = vmax.f32 %v1266, 0.0
      %v1489 = vmax.f32 %v1269, 0.0
      %v1490 = vmax.f32 %v1271, 0.0
      %v1491 = vmax.f32 %v1274, 0.0
      %v1492 = vmax.f32 %v1276, 0.0
      %v1493 = vmax.f32 %v1279, 0.0
      %v1494 = vmax.f32 %v1281, 0.0
      %v1495 = vmax.f32 %v1284, 0.0
      %v1496 = vmax.f32 %v1286, 0.0
      %v1497 = vmax.f32 %v1289, 0.0
      %v1498 = vmax.f32 %v1291, 0.0
      %v1499 = vmax.f32 %v1294, 0.0
      %v1500 = vmax.f32 %v1296, 0.0
      %v1501 = vmax.f32 %v1299, 0.0
      %v1502 = vmax.f32 %v1301, 0.0
      %v1503 = vmax.f32 %v1304, 0.0
      %v1504 = vmax.f32 %v1306, 0.0
      %v1505 = vmax.f32 %v1309, 0.0
      %v1506 = vmax.f32 %v1311, 0.0
      %v1507 = vmax.f32 %v1314, 0.0
      %v1508 = vmax.f32 %v1316, 0.0
      %v1509 = vmax.f32 %v1319, 0.0
      %v1510 = vmax.f32 %v1321, 0.0
      %v1511 = vmax.f32 %v1324, 0.0
      %v1512 = vmax.f32 %v1326, 0.0
      %v1513 = vmax.f32 %v1329, 0.0
      %v1514 = vmax.f32 %v1331, 0.0
      %v1515 = vmax.f32 %v1334, 0.0
      %v1516 = vmax.f32 %v1336, 0.0
      %v1517 = vmax.f32 %v1339, 0.0
      %v1518 = vmax.f32 %v1341, 0.0
      %v1519 = vmax.f32 %v1344, 0.0
      %v1520 = vmax.f32 %v1346, 0.0
      %v1521 = vmax.f32 %v1349, 0.0
      %v1522 = vmax.f32 %v1351, 0.0
      %v1523 = vmax.f32 %v1354, 0.0
      %v1524 = vmax.f32 %v1356, 0.0
      %v1525 = vmax.f32 %v1359, 0.0
      %v1526 = vmax.f32 %v1361, 0.0
      %v1527 = vmax.f32 %v1364, 0.0
      %v1528 = vmax.f32 %v1366, 0.0
      %v1529 = vmax.f32 %v1369, 0.0
      %v1530 = vmax.f32 %v1371, 0.0
      %v1531 = vmax.f32 %v1374, 0.0
      %v1532 = vmax.f32 %v1376, 0.0
      %v1533 = vmax.f32 %v1379, 0.0
      %v1534 = vmax.f32 %v1381, 0.0
      %v1535 = vmax.f32 %v1384, 0.0
      %v1536 = vmax.f32 %v1386, 0.0
      %v1537 = vmax.f32 %v1389, 0.0
      %v1538 = vmax.f32 %v1391, 0.0
      %v1539 = vmax.f32 %v1394, 0.0
      %v1540 = vmax.f32 %v1396, 0.0
      %v1541 = vmax.f32 %v1399, 0.0
      %v1542 = vmax.f32 %v1401, 0.0
      %v1543 = vmax.f32 %v1404, 0.0
      %v1544 = vmax.f32 %v1406, 0.0
      %v1545 = vmax.f32 %v1409, 0.0
      %v1546 = vmax.f32 %v1411, 0.0
      %v1547 = vmax.f32 %v1414, 0.0
      %v1548 = vmax.f32 %v1416, 0.0
      %v1549 = vmax.f32 %v1419, 0.0
      %v1550 = vmax.f32 %v1421, 0.0
      %v1551 = vmax.f32 %v1424, 0.0
      %v1552 = vmax.f32 %v1426, 0.0
      %v1553 = vmax.f32 %v1429, 0.0
      %v1554 = vmax.f32 %v1431, 0.0
      %v1555 = vmax.f32 %v1434, 0.0
      %v1556 = vmax.f32 %v1436, 0.0
      %v1557 = vmax.f32 %v1439, 0.0
      %v1558 = vmax.f32 %v1441, 0.0
      %v1559 = vmax.f32 %v1444, 0.0
      %v1560 = vmax.f32 %v1446, 0.0
      %v1561 = vmax.f32 %v1449, 0.0
      %v1562 = vmax.f32 %v1451, 0.0
      %v1563 = vmax.f32 %v1454, 0.0
      %v1564 = vmax.f32 %v1456, 0.0
      %v1565 = vmax.f32 %v1459, 0.0
      %v1566 = vmax.f32 %v1461, 0.0
      %v1567 = vmax.f32 %v1464, 0.0
      %v1568 = vmax.f32 %v1466, 0.0
      %v1569 = vmax.f32 %v1469, 0.0
      %v1570 = vmax.f32 %v1471, 0.0
      %v1571 = vpack.c.bf16 %v1473, %v1473
      %v1572 = vpack.c.bf16 %v1474, %v1474
      %v1573 = vpack.c.bf16 %v1475, %v1475
      %v1574 = vpack.c.bf16 %v1476, %v1476
      %v1575 = vpack.c.bf16 %v1477, %v1477
      %v1576 = vpack.c.bf16 %v1478, %v1478
      %v1577 = vpack.c.bf16 %v1479, %v1479
      %v1578 = vpack.c.bf16 %v1480, %v1480
      %v1579 = vpack.c.bf16 %v1481, %v1481
      %v1580 = vpack.c.bf16 %v1482, %v1482
      %v1581 = vpack.c.bf16 %v1483, %v1483
      %v1582 = vpack.c.bf16 %v1484, %v1484
      %v1583 = vpack.c.bf16 %v1485, %v1485
      %v1584 = vpack.c.bf16 %v1486, %v1486
      %v1585 = vpack.c.bf16 %v1487, %v1487
      %v1586 = vpack.c.bf16 %v1488, %v1488
      %v1587 = vpack.c.bf16 %v1489, %v1489
      %v1588 = vpack.c.bf16 %v1490, %v1490
      %v1589 = vpack.c.bf16 %v1491, %v1491
      %v1590 = vpack.c.bf16 %v1492, %v1492
      %v1591 = vpack.c.bf16 %v1493, %v1493
      %v1592 = vpack.c.bf16 %v1494, %v1494
      %v1593 = vpack.c.bf16 %v1495, %v1495
      %v1594 = vpack.c.bf16 %v1496, %v1496
      %v1595 = vpack.c.bf16 %v1497, %v1497
      %v1596 = vpack.c.bf16 %v1498, %v1498
      %v1597 = vpack.c.bf16 %v1499, %v1499
      %v1598 = vpack.c.bf16 %v1500, %v1500
      %v1599 = vpack.c.bf16 %v1501, %v1501
      %v1600 = vpack.c.bf16 %v1502, %v1502
      %v1601 = vpack.c.bf16 %v1503, %v1503
      %v1602 = vpack.c.bf16 %v1504, %v1504
      %v1603 = vpack.c.bf16 %v1505, %v1505
      %v1604 = vpack.c.bf16 %v1506, %v1506
      %v1605 = vpack.c.bf16 %v1507, %v1507
      %v1606 = vpack.c.bf16 %v1508, %v1508
      %v1607 = vpack.c.bf16 %v1509, %v1509
      %v1608 = vpack.c.bf16 %v1510, %v1510
      %v1609 = vpack.c.bf16 %v1511, %v1511
      %v1610 = vpack.c.bf16 %v1512, %v1512
      %v1611 = vpack.c.bf16 %v1513, %v1513
      %v1612 = vpack.c.bf16 %v1514, %v1514
      %v1613 = vpack.c.bf16 %v1515, %v1515
      %v1614 = vpack.c.bf16 %v1516, %v1516
      %v1615 = vpack.c.bf16 %v1517, %v1517
      %v1616 = vpack.c.bf16 %v1518, %v1518
      %v1617 = vpack.c.bf16 %v1519, %v1519
      %v1618 = vpack.c.bf16 %v1520, %v1520
      %v1619 = vpack.c.bf16 %v1521, %v1521
      %v1620 = vpack.c.bf16 %v1522, %v1522
      %v1621 = vpack.c.bf16 %v1523, %v1523
      %v1622 = vpack.c.bf16 %v1524, %v1524
      %v1623 = vpack.c.bf16 %v1525, %v1525
      %v1624 = vpack.c.bf16 %v1526, %v1526
      %v1625 = vpack.c.bf16 %v1527, %v1527
      %v1626 = vpack.c.bf16 %v1528, %v1528
      %v1627 = vpack.c.bf16 %v1529, %v1529
      %v1628 = vpack.c.bf16 %v1530, %v1530
      %v1629 = vpack.c.bf16 %v1531, %v1531
      %v1630 = vpack.c.bf16 %v1532, %v1532
      %v1631 = vpack.c.bf16 %v1533, %v1533
      %v1632 = vpack.c.bf16 %v1534, %v1534
      %v1633 = vpack.c.bf16 %v1535, %v1535
      %v1634 = vpack.c.bf16 %v1536, %v1536
      %v1635 = vpack.c.bf16 %v1537, %v1537
      %v1636 = vpack.c.bf16 %v1538, %v1538
      %v1637 = vpack.c.bf16 %v1539, %v1539
      %v1638 = vpack.c.bf16 %v1540, %v1540
      %v1639 = vpack.c.bf16 %v1541, %v1541
      %v1640 = vpack.c.bf16 %v1542, %v1542
      %v1641 = vpack.c.bf16 %v1543, %v1543
      %v1642 = vpack.c.bf16 %v1544, %v1544
      %v1643 = vpack.c.bf16 %v1545, %v1545
      %v1644 = vpack.c.bf16 %v1546, %v1546
      %v1645 = vpack.c.bf16 %v1547, %v1547
      %v1646 = vpack.c.bf16 %v1548, %v1548
      %v1647 = vpack.c.bf16 %v1549, %v1549
      %v1648 = vpack.c.bf16 %v1550, %v1550
      %v1649 = vpack.c.bf16 %v1551, %v1551
      %v1650 = vpack.c.bf16 %v1552, %v1552
      %v1651 = vpack.c.bf16 %v1553, %v1553
      %v1652 = vpack.c.bf16 %v1554, %v1554
      %v1653 = vpack.c.bf16 %v1555, %v1555
      %v1654 = vpack.c.bf16 %v1556, %v1556
      %v1655 = vpack.c.bf16 %v1557, %v1557
      %v1656 = vpack.c.bf16 %v1558, %v1558
      %v1657 = vpack.c.bf16 %v1559, %v1559
      %v1658 = vpack.c.bf16 %v1560, %v1560
      %v1659 = vpack.c.bf16 %v1561, %v1561
      %v1660 = vpack.c.bf16 %v1562, %v1562
      %v1661 = vpack.c.bf16 %v1563, %v1563
      %v1662 = vpack.c.bf16 %v1564, %v1564
      %v1663 = vpack.c.bf16 %v1565, %v1565
      %v1664 = vpack.c.bf16 %v1566, %v1566
      %v1665 = vpack.c.bf16 %v1567, %v1567
      %v1666 = vpack.c.bf16 %v1568, %v1568
      %v1667 = vpack.c.bf16 %v1569, %v1569
      %v1668 = vpack.c.bf16 %v1570, %v1570
      %vm1669 = vcmask 257024
      %1670 = vst.msk [vmem:[%s175] sm:$0xf] %vm1669, %v1571
      %1671 = vst.msk [vmem:[%s175 + $0x4] sm:$0xf] %vm1669, %v1572
      %1672 = vst.msk [vmem:[%s175 + $0x8] sm:$0xf] %vm1669, %v1573
      %1673 = vst.msk [vmem:[%s175 + $0xc] sm:$0xf] %vm1669, %v1574
      %1674 = vst.msk [vmem:[%s175 + $0x10] sm:$0xf] %vm1669, %v1575
      %1675 = vst.msk [vmem:[%s175 + $0x14] sm:$0xf] %vm1669, %v1576
      %1676 = vst.msk [vmem:[%s175 + $0x18] sm:$0xf] %vm1669, %v1577
      %1677 = vst.msk [vmem:[%s175 + $0x1c] sm:$0xf] %vm1669, %v1578
      %1678 = vst.msk [vmem:[%s175 + $0x20] sm:$0xf] %vm1669, %v1579
      %1679 = vst.msk [vmem:[%s175 + $0x24] sm:$0xf] %vm1669, %v1580
      %1680 = vst.msk [vmem:[%s175 + $0x28] sm:$0xf] %vm1669, %v1581
      %1681 = vst.msk [vmem:[%s175 + $0x2c] sm:$0xf] %vm1669, %v1582
      %1682 = vst.msk [vmem:[%s175 + $0x30] sm:$0xf] %vm1669, %v1583
      %1683 = vst.msk [vmem:[%s175 + $0x34] sm:$0xf] %vm1669, %v1584
      %1684 = vst.msk [vmem:[%s175 + $0x38] sm:$0xf] %vm1669, %v1585
      %1685 = vst.msk [vmem:[%s175 + $0x3c] sm:$0xf] %vm1669, %v1586
      %1686 = vst.msk [vmem:[%s175 + $0x40] sm:$0xf] %vm1669, %v1587
      %1687 = vst.msk [vmem:[%s175 + $0x44] sm:$0xf] %vm1669, %v1588
      %1688 = vst.msk [vmem:[%s175 + $0x48] sm:$0xf] %vm1669, %v1589
      %1689 = vst.msk [vmem:[%s175 + $0x4c] sm:$0xf] %vm1669, %v1590
      %1690 = vst.msk [vmem:[%s175 + $0x50] sm:$0xf] %vm1669, %v1591
      %1691 = vst.msk [vmem:[%s175 + $0x54] sm:$0xf] %vm1669, %v1592
      %1692 = vst.msk [vmem:[%s175 + $0x58] sm:$0xf] %vm1669, %v1593
      %1693 = vst.msk [vmem:[%s175 + $0x5c] sm:$0xf] %vm1669, %v1594
      %1694 = vst.msk [vmem:[%s175 + $0x60] sm:$0xf] %vm1669, %v1595
      %1695 = vst.msk [vmem:[%s175 + $0x64] sm:$0xf] %vm1669, %v1596
      %1696 = vst.msk [vmem:[%s175 + $0x68] sm:$0xf] %vm1669, %v1597
      %1697 = vst.msk [vmem:[%s175 + $0x6c] sm:$0xf] %vm1669, %v1598
      %1698 = vst.msk [vmem:[%s175 + $0x70] sm:$0xf] %vm1669, %v1599
      %1699 = vst.msk [vmem:[%s175 + $0x74] sm:$0xf] %vm1669, %v1600
      %1700 = vst.msk [vmem:[%s175 + $0x78] sm:$0xf] %vm1669, %v1601
      %1701 = vst.msk [vmem:[%s175 + $0x7c] sm:$0xf] %vm1669, %v1602
      %1702 = vst.msk [vmem:[%s175 + $0x80] sm:$0xf] %vm1669, %v1603
      %1703 = vst.msk [vmem:[%s175 + $0x84] sm:$0xf] %vm1669, %v1604
      %1704 = vst.msk [vmem:[%s175 + $0x88] sm:$0xf] %vm1669, %v1605
      %1705 = vst.msk [vmem:[%s175 + $0x8c] sm:$0xf] %vm1669, %v1606
      %1706 = vst.msk [vmem:[%s175 + $0x90] sm:$0xf] %vm1669, %v1607
      %1707 = vst.msk [vmem:[%s175 + $0x94] sm:$0xf] %vm1669, %v1608
      %1708 = vst.msk [vmem:[%s175 + $0x98] sm:$0xf] %vm1669, %v1609
      %1709 = vst.msk [vmem:[%s175 + $0x9c] sm:$0xf] %vm1669, %v1610
      %1710 = vst.msk [vmem:[%s175 + $0xa0] sm:$0xf] %vm1669, %v1611
      %1711 = vst.msk [vmem:[%s175 + $0xa4] sm:$0xf] %vm1669, %v1612
      %1712 = vst.msk [vmem:[%s175 + $0xa8] sm:$0xf] %vm1669, %v1613
      %1713 = vst.msk [vmem:[%s175 + $0xac] sm:$0xf] %vm1669, %v1614
      %1714 = vst.msk [vmem:[%s175 + $0xb0] sm:$0xf] %vm1669, %v1615
      %1715 = vst.msk [vmem:[%s175 + $0xb4] sm:$0xf] %vm1669, %v1616
      %1716 = vst.msk [vmem:[%s175 + $0xb8] sm:$0xf] %vm1669, %v1617
      %1717 = vst.msk [vmem:[%s175 + $0xbc] sm:$0xf] %vm1669, %v1618
      %1718 = vst.msk [vmem:[%s175 + $0xc0] sm:$0xf] %vm1669, %v1619
      %1719 = vst.msk [vmem:[%s175 + $0xc4] sm:$0xf] %vm1669, %v1620
      %1720 = vst.msk [vmem:[%s175 + $0xc8] sm:$0xf] %vm1669, %v1621
      %1721 = vst.msk [vmem:[%s175 + $0xcc] sm:$0xf] %vm1669, %v1622
      %1722 = vst.msk [vmem:[%s175 + $0xd0] sm:$0xf] %vm1669, %v1623
      %1723 = vst.msk [vmem:[%s175 + $0xd4] sm:$0xf] %vm1669, %v1624
      %1724 = vst.msk [vmem:[%s175 + $0xd8] sm:$0xf] %vm1669, %v1625
      %1725 = vst.msk [vmem:[%s175 + $0xdc] sm:$0xf] %vm1669, %v1626
      %1726 = vst.msk [vmem:[%s175 + $0xe0] sm:$0xf] %vm1669, %v1627
      %1727 = vst.msk [vmem:[%s175 + $0xe4] sm:$0xf] %vm1669, %v1628
      %1728 = vst.msk [vmem:[%s175 + $0xe8] sm:$0xf] %vm1669, %v1629
      %1729 = vst.msk [vmem:[%s175 + $0xec] sm:$0xf] %vm1669, %v1630
      %1730 = vst.msk [vmem:[%s175 + $0xf0] sm:$0xf] %vm1669, %v1631
      %1731 = vst.msk [vmem:[%s175 + $0xf4] sm:$0xf] %vm1669, %v1632
      %1732 = vst.msk [vmem:[%s175 + $0xf8] sm:$0xf] %vm1669, %v1633
      %1733 = vst.msk [vmem:[%s175 + $0xfc] sm:$0xf] %vm1669, %v1634
      %1734 = vst.msk [vmem:[%s175 + $0x100] sm:$0xf] %vm1669, %v1635
      %1735 = vst.msk [vmem:[%s175 + $0x104] sm:$0xf] %vm1669, %v1636
      %1736 = vst.msk [vmem:[%s175 + $0x108] sm:$0xf] %vm1669, %v1637
      %1737 = vst.msk [vmem:[%s175 + $0x10c] sm:$0xf] %vm1669, %v1638
      %1738 = vst.msk [vmem:[%s175 + $0x110] sm:$0xf] %vm1669, %v1639
      %1739 = vst.msk [vmem:[%s175 + $0x114] sm:$0xf] %vm1669, %v1640
      %1740 = vst.msk [vmem:[%s175 + $0x118] sm:$0xf] %vm1669, %v1641
      %1741 = vst.msk [vmem:[%s175 + $0x11c] sm:$0xf] %vm1669, %v1642
      %1742 = vst.msk [vmem:[%s175 + $0x120] sm:$0xf] %vm1669, %v1643
      %1743 = vst.msk [vmem:[%s175 + $0x124] sm:$0xf] %vm1669, %v1644
      %1744 = vst.msk [vmem:[%s175 + $0x128] sm:$0xf] %vm1669, %v1645
      %1745 = vst.msk [vmem:[%s175 + $0x12c] sm:$0xf] %vm1669, %v1646
      %1746 = vst.msk [vmem:[%s175 + $0x130] sm:$0xf] %vm1669, %v1647
      %1747 = vst.msk [vmem:[%s175 + $0x134] sm:$0xf] %vm1669, %v1648
      %1748 = vst.msk [vmem:[%s175 + $0x138] sm:$0xf] %vm1669, %v1649
      %1749 = vst.msk [vmem:[%s175 + $0x13c] sm:$0xf] %vm1669, %v1650
      %1750 = vst.msk [vmem:[%s175 + $0x140] sm:$0xf] %vm1669, %v1651
      %1751 = vst.msk [vmem:[%s175 + $0x144] sm:$0xf] %vm1669, %v1652
      %1752 = vst.msk [vmem:[%s175 + $0x148] sm:$0xf] %vm1669, %v1653
      %1753 = vst.msk [vmem:[%s175 + $0x14c] sm:$0xf] %vm1669, %v1654
      %1754 = vst.msk [vmem:[%s175 + $0x150] sm:$0xf] %vm1669, %v1655
      %1755 = vst.msk [vmem:[%s175 + $0x154] sm:$0xf] %vm1669, %v1656
      %1756 = vst.msk [vmem:[%s175 + $0x158] sm:$0xf] %vm1669, %v1657
      %1757 = vst.msk [vmem:[%s175 + $0x15c] sm:$0xf] %vm1669, %v1658
      %1758 = vst.msk [vmem:[%s175 + $0x160] sm:$0xf] %vm1669, %v1659
      %1759 = vst.msk [vmem:[%s175 + $0x164] sm:$0xf] %vm1669, %v1660
      %1760 = vst.msk [vmem:[%s175 + $0x168] sm:$0xf] %vm1669, %v1661
      %1761 = vst.msk [vmem:[%s175 + $0x16c] sm:$0xf] %vm1669, %v1662
      %1762 = vst.msk [vmem:[%s175 + $0x170] sm:$0xf] %vm1669, %v1663
      %1763 = vst.msk [vmem:[%s175 + $0x174] sm:$0xf] %vm1669, %v1664
      %1764 = vst.msk [vmem:[%s175 + $0x178] sm:$0xf] %vm1669, %v1665
      %1765 = vst.msk [vmem:[%s175 + $0x17c] sm:$0xf] %vm1669, %v1666
      %1766 = vst.msk [vmem:[%s175 + $0x180] sm:$0xf] %vm1669, %v1667
      %1767 = vst.msk [vmem:[%s175 + $0x184] sm:$0xf] %vm1669, %v1668
      %s1768 = smul.u32 98, %s14
      %p1769 = scmp.lt.s32.totalorder %s1768, 195
      %s1770 = scalar_select %p1769, %s1768, 195
      %s1771 = smul.addr %s1770, 4
      %s1772 = scalar_lea.vmem %s3, %s1771
      // Predicated region
      $region33: #{double_critic_forward.2} parent=31 // pred_check
        %p1773 = pneg %p100
      $region34: #{double_critic_forward.2} parent=31 // pred_check_branch
        %1775 = sbr.rel (%p1773) target = $region36
      $region35: #{double_critic_forward.2} parent=31 // pred_region
        %s1776 = smul.u32 98, %s14
      $region36: #{double_critic_forward.2} parent=31 // pred_fallthru
        _
    $region32: #{double_critic_forward.2} parent=5 // pred_fallthru
      _
    %p1777 = scmp.le.s32.totalorder 2, %s9
    // Predicated region
    $region37: #{double_critic_forward.2} parent=5 // pred_check
      %p1778 = pneg %p1777
    $region38: #{double_critic_forward.2} parent=5 // pred_check_branch
      %1780 = sbr.rel (%p1778) target = $region40
    $region39: #{double_critic_forward.2} parent=5 // pred_region
      %s1781 = ssub.s32 %s9, 2
      // Predicated region
      $region41: #{double_critic_forward.2} parent=39 // pred_check
        %p1782 = pneg %p106
      $region42: #{double_critic_forward.2} parent=39 // pred_check_branch
        %1784 = sbr.rel (%p1782) target = $region44
      $region43: #{double_critic_forward.2} parent=39 // pred_region
        %s1785 = smul.u32 98, %s15
        %p1786 = scmp.lt.s32.totalorder %s1785, 195
        %s1787 = scalar_select %p1786, %s1785, 195
        %s1788 = smul.addr %s1787, 4
        %s1789 = scalar_lea.vmem %s3, %s1788
      $region44: #{double_critic_forward.2} parent=39 // pred_fallthru
        _
    $region40: #{double_critic_forward.2} parent=5 // pred_fallthru
      _
  $region6: #{double_critic_forward.2} parent=0 // loop_footer
    %s13 = sadd.s32 1, %s9
  $region7: #{double_critic_forward.2} parent=0 // loop_footer_branch
    %8 = sbr.rel target = $region3
  $region8: #{double_critic_forward.2} parent=0 // loop_exit
    _

// kernel: double_critic_forward.3
$region0: #{double_critic_forward.3}
  #allocation0 [shape = 'u32[]', space=smem, size = 0x4, offset = 0x4, fixed_abs, tag = 'smem constant byte address 0x4 - core index']
  #allocation1 [shape = 'u32[72,128]{1,0:T(1,128)}', space=vmem, size = 0x9000, scoped, tag = 'internal scratch']
  %s0 = inlined_call_operand.vmem [shape: bf16[98,512], index: 0, kind: input, shape index: {}]
  %s1 = inlined_call_operand.vmem [shape: f32[2,4], index: 1, kind: input, shape index: {}]
  %s2 = inlined_call_operand.vmem [shape: f32[2,8], index: 2, kind: input, shape index: {}]
  %s3 = inlined_call_operand.vmem [shape: bf16[512,64], index: 3, kind: input, shape index: {}]
  %s4 = inlined_call_operand.vmem [shape: f32[1,64], index: 4, kind: input, shape index: {}]
  %s5 = inlined_call_operand.vmem [shape: bf16[9,18,98], index: 5, kind: input, shape index: {}]
  %s6 = inlined_call_operand.vmem [shape: bf16[9,64,128], index: 6, kind: input, shape index: {}]
  %s7 = inlined_call_operand.vmem [shape: f32[1,128], index: 7, kind: input, shape index: {}]
  %s8 = inlined_call_operand.vmem [shape: bf16[9,2,18], index: 8, kind: input, shape index: {}]
  %s9 = inlined_call_operand.vmem [shape: bf16[9,128,128], index: 9, kind: input, shape index: {}]
  %s10 = inlined_call_operand.vmem [shape: f32[1,128], index: 10, kind: input, shape index: {}]
  %s11 = inlined_call_operand.vmem [shape: bf16[1,2,2], index: 11, kind: input, shape index: {}]
  %s12 = inlined_call_operand.vmem [shape: bf16[1,128,64], index: 12, kind: input, shape index: {}]
  %s13 = inlined_call_operand.vmem [shape: bf16[4,64], index: 13, kind: input, shape index: {}]
  %s14 = inlined_call_operand.vmem [shape: bf16[8,64], index: 14, kind: input, shape index: {}]
  %s15 = inlined_call_operand.vmem [shape: f32[1,64], index: 15, kind: input, shape index: {}]
  %s16 = inlined_call_operand.vmem [shape: bf16[64,64], index: 16, kind: input, shape index: {}]
  %s17 = inlined_call_operand.vmem [shape: f32[1,64], index: 17, kind: input, shape index: {}]
  %s18 = inlined_call_operand.vmem [shape: bf16[64,2], index: 18, kind: input, shape index: {}]
  %s19 = inlined_call_operand.vmem [shape: f32[1,2], index: 19, kind: input, shape index: {}]
  %s20 = inlined_call_operand.vmem [shape: f32[2,2], index: 20, kind: output, shape index: {}]
  %s21 = sld [smem:[#allocation0]]
  $region90: #{double_critic_forward.3} parent=0
    _
  %s23 = ssub.s32 1, %s21
  %s24 = scalar_select 0, %s23, %s21
  // Predicated region
  $region2: #{double_critic_forward.3} parent=0 // pred_check
    _
  $region3: #{double_critic_forward.3} parent=0 // pred_check_branch
    %26 = sbr.rel (0) target = $region5
  $region4: #{double_critic_forward.3} parent=0 // pred_region
    _
  $region5: #{double_critic_forward.3} parent=0 // pred_fallthru
    _
  // Predicated region
  $region6: #{double_critic_forward.3} parent=0 // pred_check
    _
  $region7: #{double_critic_forward.3} parent=0 // pred_check_branch
    %28 = sbr.rel (0) target = $region9
  $region8: #{double_critic_forward.3} parent=0 // pred_region
    _
  $region9: #{double_critic_forward.3} parent=0 // pred_fallthru
    _
  // Predicated region
  $region10: #{double_critic_forward.3} parent=0 // pred_check
    _
  $region11: #{double_critic_forward.3} parent=0 // pred_check_branch
    %30 = sbr.rel (0) target = $region13
  $region12: #{double_critic_forward.3} parent=0 // pred_region
    _
  $region13: #{double_critic_forward.3} parent=0 // pred_fallthru
    _
  // Predicated region
  $region14: #{double_critic_forward.3} parent=0 // pred_check
    _
  $region15: #{double_critic_forward.3} parent=0 // pred_check_branch
    %32 = sbr.rel (0) target = $region17
  $region16: #{double_critic_forward.3} parent=0 // pred_region
    _
  $region17: #{double_critic_forward.3} parent=0 // pred_fallthru
    _
  // Predicated region
  $region18: #{double_critic_forward.3} parent=0 // pred_check
    _
  $region19: #{double_critic_forward.3} parent=0 // pred_check_branch
    %34 = sbr.rel (0) target = $region21
  $region20: #{double_critic_forward.3} parent=0 // pred_region
    _
  $region21: #{double_critic_forward.3} parent=0 // pred_fallthru
    _
  // Predicated region
  $region22: #{double_critic_forward.3} parent=0 // pred_check
    _
  $region23: #{double_critic_forward.3} parent=0 // pred_check_branch
    %36 = sbr.rel (0) target = $region25
  $region24: #{double_critic_forward.3} parent=0 // pred_region
    _
  $region25: #{double_critic_forward.3} parent=0 // pred_fallthru
    _
  // Predicated region
  $region26: #{double_critic_forward.3} parent=0 // pred_check
    _
  $region27: #{double_critic_forward.3} parent=0 // pred_check_branch
    %38 = sbr.rel (0) target = $region29
  $region28: #{double_critic_forward.3} parent=0 // pred_region
    _
  $region29: #{double_critic_forward.3} parent=0 // pred_fallthru
    _
  // Predicated region
  $region30: #{double_critic_forward.3} parent=0 // pred_check
    _
  $region31: #{double_critic_forward.3} parent=0 // pred_check_branch
    %40 = sbr.rel (0) target = $region33
  $region32: #{double_critic_forward.3} parent=0 // pred_region
    _
  $region33: #{double_critic_forward.3} parent=0 // pred_fallthru
    _
  // Predicated region
  $region34: #{double_critic_forward.3} parent=0 // pred_check
    _
  $region35: #{double_critic_forward.3} parent=0 // pred_check_branch
    %42 = sbr.rel (0) target = $region37
  $region36: #{double_critic_forward.3} parent=0 // pred_region
    _
  $region37: #{double_critic_forward.3} parent=0 // pred_fallthru
    _
  // Predicated region
  $region38: #{double_critic_forward.3} parent=0 // pred_check
    _
  $region39: #{double_critic_forward.3} parent=0 // pred_check_branch
    %44 = sbr.rel (0) target = $region41
  $region40: #{double_critic_forward.3} parent=0 // pred_region
    _
  $region41: #{double_critic_forward.3} parent=0 // pred_fallthru
    _
  // Predicated region
  $region42: #{double_critic_forward.3} parent=0 // pred_check
    _
  $region43: #{double_critic_forward.3} parent=0 // pred_check_branch
    %46 = sbr.rel (0) target = $region45
  $region44: #{double_critic_forward.3} parent=0 // pred_region
    _
  $region45: #{double_critic_forward.3} parent=0 // pred_fallthru
    _
  // Predicated region
  $region46: #{double_critic_forward.3} parent=0 // pred_check
    _
  $region47: #{double_critic_forward.3} parent=0 // pred_check_branch
    %48 = sbr.rel (0) target = $region49
  $region48: #{double_critic_forward.3} parent=0 // pred_region
    _
  $region49: #{double_critic_forward.3} parent=0 // pred_fallthru
    _
  // Predicated region
  $region50: #{double_critic_forward.3} parent=0 // pred_check
    _
  $region51: #{double_critic_forward.3} parent=0 // pred_check_branch
    %50 = sbr.rel (0) target = $region53
  $region52: #{double_critic_forward.3} parent=0 // pred_region
    _
  $region53: #{double_critic_forward.3} parent=0 // pred_fallthru
    _
  // Predicated region
  $region54: #{double_critic_forward.3} parent=0 // pred_check
    _
  $region55: #{double_critic_forward.3} parent=0 // pred_check_branch
    %52 = sbr.rel (0) target = $region57
  $region56: #{double_critic_forward.3} parent=0 // pred_region
    _
  $region57: #{double_critic_forward.3} parent=0 // pred_fallthru
    _
  // Predicated region
  $region58: #{double_critic_forward.3} parent=0 // pred_check
    _
  $region59: #{double_critic_forward.3} parent=0 // pred_check_branch
    %54 = sbr.rel (0) target = $region61
  $region60: #{double_critic_forward.3} parent=0 // pred_region
    _
  $region61: #{double_critic_forward.3} parent=0 // pred_fallthru
    _
  // Predicated region
  $region62: #{double_critic_forward.3} parent=0 // pred_check
    _
  $region63: #{double_critic_forward.3} parent=0 // pred_check_branch
    %56 = sbr.rel (0) target = $region65
  $region64: #{double_critic_forward.3} parent=0 // pred_region
    _
  $region65: #{double_critic_forward.3} parent=0 // pred_fallthru
    _
  // Predicated region
  $region66: #{double_critic_forward.3} parent=0 // pred_check
    _
  $region67: #{double_critic_forward.3} parent=0 // pred_check_branch
    %58 = sbr.rel (0) target = $region69
  $region68: #{double_critic_forward.3} parent=0 // pred_region
    _
  $region69: #{double_critic_forward.3} parent=0 // pred_fallthru
    _
  // Predicated region
  $region70: #{double_critic_forward.3} parent=0 // pred_check
    _
  $region71: #{double_critic_forward.3} parent=0 // pred_check_branch
    %60 = sbr.rel (0) target = $region73
  $region72: #{double_critic_forward.3} parent=0 // pred_region
    _
  $region73: #{double_critic_forward.3} parent=0 // pred_fallthru
    _
  // Predicated region
  $region74: #{double_critic_forward.3} parent=0 // pred_check
    _
  $region75: #{double_critic_forward.3} parent=0 // pred_check_branch
    %62 = sbr.rel (0) target = $region77
  $region76: #{double_critic_forward.3} parent=0 // pred_region
    _
  $region77: #{double_critic_forward.3} parent=0 // pred_fallthru
    _
  // Predicated region
  $region78: #{double_critic_forward.3} parent=0 // pred_check
    _
  $region79: #{double_critic_forward.3} parent=0 // pred_check_branch
    %64 = sbr.rel (0) target = $region81
  $region80: #{double_critic_forward.3} parent=0 // pred_region
    _
  $region81: #{double_critic_forward.3} parent=0 // pred_fallthru
    _
  %v66 = vld [vmem:[%s0] sm:$0xff]
  %v67 = vld [vmem:[%s0 + $0x8] sm:$0xff]
  %v68 = vld [vmem:[%s0 + $0x10] sm:$0xff]
  %v69 = vld [vmem:[%s0 + $0x18] sm:$0xff]
  %v70 = vld [vmem:[%s0 + $0x20] sm:$0xff]
  %v71 = vld [vmem:[%s0 + $0x28] sm:$0xff]
  %v72 = vld [vmem:[%s0 + $0x30] sm:$0xff]
  %v73 = vld [vmem:[%s0 + $0x38] sm:$0xff]
  %v74 = vld [vmem:[%s0 + $0x40] sm:$0xff]
  %v75 = vld [vmem:[%s0 + $0x48] sm:$0xff]
  %v76 = vld [vmem:[%s0 + $0x50] sm:$0xff]
  %v77 = vld [vmem:[%s0 + $0x58] sm:$0xff]
  %v78 = vld [vmem:[%s0 + $0x60] sm:$0xff]
  %v79 = vld [vmem:[%s0 + $0x68] sm:$0xff]
  %v80 = vld [vmem:[%s0 + $0x70] sm:$0xff]
  %v81 = vld [vmem:[%s0 + $0x78] sm:$0xff]
  %v82 = vld [vmem:[%s0 + $0x80] sm:$0xff]
  %v83 = vld [vmem:[%s0 + $0x88] sm:$0xff]
  %v84 = vld [vmem:[%s0 + $0x90] sm:$0xff]
  %v85 = vld [vmem:[%s0 + $0x98] sm:$0xff]
  %v86 = vld [vmem:[%s0 + $0xa0] sm:$0xff]
  %v87 = vld [vmem:[%s0 + $0xa8] sm:$0xff]
  %v88 = vld [vmem:[%s0 + $0xb0] sm:$0xff]
  %v89 = vld [vmem:[%s0 + $0xb8] sm:$0xff]
  %v90 = vld [vmem:[%s0 + $0xc0] sm:$0x11]
  %v91 = vld [vmem:[%s0 + $0xc8] sm:$0x11]
  %v92 = vld [vmem:[%s3] sm:$0xf]
  %v93 = vld [vmem:[%s3 + $0x4] sm:$0xf]
  %v94 = vld [vmem:[%s3 + $0x8] sm:$0xf]
  %v95 = vld [vmem:[%s3 + $0xc] sm:$0xf]
  %v96 = vld [vmem:[%s3 + $0x10] sm:$0xf]
  %v97 = vld [vmem:[%s3 + $0x14] sm:$0xf]
  %v98 = vld [vmem:[%s3 + $0x18] sm:$0xf]
  %v99 = vld [vmem:[%s3 + $0x1c] sm:$0xf]
  %v100 = vld [vmem:[%s3 + $0x20] sm:$0xf]
  %v101 = vld [vmem:[%s3 + $0x24] sm:$0xf]
  %v102 = vld [vmem:[%s3 + $0x28] sm:$0xf]
  %v103 = vld [vmem:[%s3 + $0x2c] sm:$0xf]
  %v104 = vld [vmem:[%s3 + $0x30] sm:$0xf]
  %v105 = vld [vmem:[%s3 + $0x34] sm:$0xf]
  %v106 = vld [vmem:[%s3 + $0x38] sm:$0xf]
  %v107 = vld [vmem:[%s3 + $0x3c] sm:$0xf]
  %v108 = vld [vmem:[%s3 + $0x40] sm:$0xf]
  %v109 = vld [vmem:[%s3 + $0x44] sm:$0xf]
  %v110 = vld [vmem:[%s3 + $0x48] sm:$0xf]
  %v111 = vld [vmem:[%s3 + $0x4c] sm:$0xf]
  %v112 = vld [vmem:[%s3 + $0x50] sm:$0xf]
  %v113 = vld [vmem:[%s3 + $0x54] sm:$0xf]
  %v114 = vld [vmem:[%s3 + $0x58] sm:$0xf]
  %v115 = vld [vmem:[%s3 + $0x5c] sm:$0xf]
  %v116 = vld [vmem:[%s3 + $0x60] sm:$0xf]
  %v117 = vld [vmem:[%s3 + $0x64] sm:$0xf]
  %v118 = vld [vmem:[%s3 + $0x68] sm:$0xf]
  %v119 = vld [vmem:[%s3 + $0x6c] sm:$0xf]
  %v120 = vld [vmem:[%s3 + $0x70] sm:$0xf]
  %v121 = vld [vmem:[%s3 + $0x74] sm:$0xf]
  %v122 = vld [vmem:[%s3 + $0x78] sm:$0xf]
  %v123 = vld [vmem:[%s3 + $0x7c] sm:$0xf]
  %v124 = vld [vmem:[%s3 + $0x80] sm:$0xf]
  %v125 = vld [vmem:[%s3 + $0x84] sm:$0xf]
  %v126 = vld [vmem:[%s3 + $0x88] sm:$0xf]
  %v127 = vld [vmem:[%s3 + $0x8c] sm:$0xf]
  %v128 = vld [vmem:[%s3 + $0x90] sm:$0xf]
  %v129 = vld [vmem:[%s3 + $0x94] sm:$0xf]
  %v130 = vld [vmem:[%s3 + $0x98] sm:$0xf]
  %v131 = vld [vmem:[%s3 + $0x9c] sm:$0xf]
  %v132 = vld [vmem:[%s3 + $0xa0] sm:$0xf]
  %v133 = vld [vmem:[%s3 + $0xa4] sm:$0xf]
  %v134 = vld [vmem:[%s3 + $0xa8] sm:$0xf]
  %v135 = vld [vmem:[%s3 + $0xac] sm:$0xf]
  %v136 = vld [vmem:[%s3 + $0xb0] sm:$0xf]
  %v137 = vld [vmem:[%s3 + $0xb4] sm:$0xf]
  %v138 = vld [vmem:[%s3 + $0xb8] sm:$0xf]
  %v139 = vld [vmem:[%s3 + $0xbc] sm:$0xf]
  %v140 = vld [vmem:[%s3 + $0xc0] sm:$0xf]
  %v141 = vld [vmem:[%s3 + $0xc4] sm:$0xf]
  %v142 = vld [vmem:[%s3 + $0xc8] sm:$0xf]
  %v143 = vld [vmem:[%s3 + $0xcc] sm:$0xf]
  %v144 = vld [vmem:[%s3 + $0xd0] sm:$0xf]
  %v145 = vld [vmem:[%s3 + $0xd4] sm:$0xf]
  %v146 = vld [vmem:[%s3 + $0xd8] sm:$0xf]
  %v147 = vld [vmem:[%s3 + $0xdc] sm:$0xf]
  %v148 = vld [vmem:[%s3 + $0xe0] sm:$0xf]
  %v149 = vld [vmem:[%s3 + $0xe4] sm:$0xf]
  %v150 = vld [vmem:[%s3 + $0xe8] sm:$0xf]
  %v151 = vld [vmem:[%s3 + $0xec] sm:$0xf]
  %v152 = vld [vmem:[%s3 + $0xf0] sm:$0xf]
  %v153 = vld [vmem:[%s3 + $0xf4] sm:$0xf]
  %v154 = vld [vmem:[%s3 + $0xf8] sm:$0xf]
  %v155 = vld [vmem:[%s3 + $0xfc] sm:$0xf]
  %v156 = vld [vmem:[%s4] sm:$0x1]
  %v158 = vperm.slane %v156, 0
  %v186 = vunpack.c.l.b16 %v66
  %v187 = vunpack.c.h.b16 %v66
  %v188 = vunpack.c.l.b16 %v67
  %v189 = vunpack.c.h.b16 %v67
  %v190 = vunpack.c.l.b16 %v68
  %v191 = vunpack.c.h.b16 %v68
  %v192 = vunpack.c.l.b16 %v69
  %v193 = vunpack.c.h.b16 %v69
  %v194 = vunpack.c.l.b16 %v70
  %v195 = vunpack.c.h.b16 %v70
  %v196 = vunpack.c.l.b16 %v71
  %v197 = vunpack.c.h.b16 %v71
  %v198 = vunpack.c.l.b16 %v72
  %v199 = vunpack.c.h.b16 %v72
  %v200 = vunpack.c.l.b16 %v73
  %v201 = vunpack.c.h.b16 %v73
  %v202 = vunpack.c.l.b16 %v74
  %v203 = vunpack.c.h.b16 %v74
  %v204 = vunpack.c.l.b16 %v75
  %v205 = vunpack.c.h.b16 %v75
  %v206 = vunpack.c.l.b16 %v76
  %v207 = vunpack.c.h.b16 %v76
  %v208 = vunpack.c.l.b16 %v77
  %v209 = vunpack.c.h.b16 %v77
  %v210 = vunpack.c.l.b16 %v78
  %v211 = vunpack.c.h.b16 %v78
  %v212 = vunpack.c.l.b16 %v79
  %v213 = vunpack.c.h.b16 %v79
  %v214 = vunpack.c.l.b16 %v80
  %v215 = vunpack.c.h.b16 %v80
  %v216 = vunpack.c.l.b16 %v81
  %v217 = vunpack.c.h.b16 %v81
  %v218 = vunpack.c.l.b16 %v82
  %v219 = vunpack.c.h.b16 %v82
  %v220 = vunpack.c.l.b16 %v83
  %v221 = vunpack.c.h.b16 %v83
  %v222 = vunpack.c.l.b16 %v84
  %v223 = vunpack.c.h.b16 %v84
  %v224 = vunpack.c.l.b16 %v85
  %v225 = vunpack.c.h.b16 %v85
  %v226 = vunpack.c.l.b16 %v86
  %v227 = vunpack.c.h.b16 %v86
  %v228 = vunpack.c.l.b16 %v87
  %v229 = vunpack.c.h.b16 %v87
  %v230 = vunpack.c.l.b16 %v88
  %v231 = vunpack.c.h.b16 %v88
  %v232 = vunpack.c.l.b16 %v89
  %v233 = vunpack.c.h.b16 %v89
  %v234 = vunpack.c.l.b16 %v90
  %v235 = vunpack.c.h.b16 %v90
  %v236 = vunpack.c.l.b16 %v91
  %v237 = vunpack.c.h.b16 %v91
  %v238 = vpack.c.b16 %v190, %v186
  %v239 = vpack.c.b16 %v191, %v187
  %v240 = vpack.c.b16 %v192, %v188
  %v241 = vpack.c.b16 %v193, %v189
  %v242 = vpack.c.b16 %v198, %v194
  %v243 = vpack.c.b16 %v199, %v195
  %v244 = vpack.c.b16 %v200, %v196
  %v245 = vpack.c.b16 %v201, %v197
  %v246 = vpack.c.b16 %v206, %v202
  %v247 = vpack.c.b16 %v207, %v203
  %v248 = vpack.c.b16 %v208, %v204
  %v249 = vpack.c.b16 %v209, %v205
  %v250 = vpack.c.b16 %v214, %v210
  %v251 = vpack.c.b16 %v215, %v211
  %v252 = vpack.c.b16 %v216, %v212
  %v253 = vpack.c.b16 %v217, %v213
  %v254 = vpack.c.b16 %v222, %v218
  %v255 = vpack.c.b16 %v223, %v219
  %v256 = vpack.c.b16 %v224, %v220
  %v257 = vpack.c.b16 %v225, %v221
  %v258 = vpack.c.b16 %v230, %v226
  %v259 = vpack.c.b16 %v231, %v227
  %v260 = vpack.c.b16 %v232, %v228
  %v261 = vpack.c.b16 %v233, %v229
  %v262 = vpack.c.b16 %v234, %v234
  %v263 = vpack.c.b16 %v235, %v235
  %v264 = vpack.c.b16 %v236, %v236
  %v265 = vpack.c.b16 %v237, %v237
  %v358 = vunpack.c.l.b16 %v92
  %v359 = vunpack.c.l.b16 %v93
  %v360 = vunpack.c.l.b16 %v94
  %v361 = vunpack.c.l.b16 %v95
  %v362 = vunpack.c.l.b16 %v96
  %v363 = vunpack.c.l.b16 %v97
  %v364 = vunpack.c.l.b16 %v98
  %v365 = vunpack.c.l.b16 %v99
  %v366 = vunpack.c.l.b16 %v100
  %v367 = vunpack.c.l.b16 %v101
  %v368 = vunpack.c.l.b16 %v102
  %v369 = vunpack.c.l.b16 %v103
  %v370 = vunpack.c.l.b16 %v104
  %v371 = vunpack.c.l.b16 %v105
  %v372 = vunpack.c.l.b16 %v106
  %v373 = vunpack.c.l.b16 %v107
  %v374 = vunpack.c.l.b16 %v108
  %v375 = vunpack.c.l.b16 %v109
  %v376 = vunpack.c.l.b16 %v110
  %v377 = vunpack.c.l.b16 %v111
  %v378 = vunpack.c.l.b16 %v112
  %v379 = vunpack.c.l.b16 %v113
  %v380 = vunpack.c.l.b16 %v114
  %v381 = vunpack.c.l.b16 %v115
  %v382 = vunpack.c.l.b16 %v116
  %v383 = vunpack.c.l.b16 %v117
  %v384 = vunpack.c.l.b16 %v118
  %v385 = vunpack.c.l.b16 %v119
  %v386 = vunpack.c.l.b16 %v120
  %v387 = vunpack.c.l.b16 %v121
  %v388 = vunpack.c.l.b16 %v122
  %v389 = vunpack.c.l.b16 %v123
  %v390 = vunpack.c.l.b16 %v124
  %v391 = vunpack.c.l.b16 %v125
  %v392 = vunpack.c.l.b16 %v126
  %v393 = vunpack.c.l.b16 %v127
  %v394 = vunpack.c.l.b16 %v128
  %v395 = vunpack.c.l.b16 %v129
  %v396 = vunpack.c.l.b16 %v130
  %v397 = vunpack.c.l.b16 %v131
  %v398 = vunpack.c.l.b16 %v132
  %v399 = vunpack.c.l.b16 %v133
  %v400 = vunpack.c.l.b16 %v134
  %v401 = vunpack.c.l.b16 %v135
  %v402 = vunpack.c.l.b16 %v136
  %v403 = vunpack.c.l.b16 %v137
  %v404 = vunpack.c.l.b16 %v138
  %v405 = vunpack.c.l.b16 %v139
  %v406 = vunpack.c.l.b16 %v140
  %v407 = vunpack.c.l.b16 %v141
  %v408 = vunpack.c.l.b16 %v142
  %v409 = vunpack.c.l.b16 %v143
  %v410 = vunpack.c.l.b16 %v144
  %v411 = vunpack.c.l.b16 %v145
  %v412 = vunpack.c.l.b16 %v146
  %v413 = vunpack.c.l.b16 %v147
  %v414 = vunpack.c.l.b16 %v148
  %v415 = vunpack.c.l.b16 %v149
  %v416 = vunpack.c.l.b16 %v150
  %v417 = vunpack.c.l.b16 %v151
  %v418 = vunpack.c.l.b16 %v152
  %v419 = vunpack.c.l.b16 %v153
  %v420 = vunpack.c.l.b16 %v154
  %v421 = vunpack.c.l.b16 %v155
  %v422 = vpack.c.b16 %v359, %v358
  %v423 = vpack.c.b16 %v361, %v360
  %v424 = vpack.c.b16 %v363, %v362
  %v425 = vpack.c.b16 %v365, %v364
  %v426 = vpack.c.b16 %v367, %v366
  %v427 = vpack.c.b16 %v369, %v368
  %v428 = vpack.c.b16 %v371, %v370
  %v429 = vpack.c.b16 %v373, %v372
  %v430 = vpack.c.b16 %v375, %v374
  %v431 = vpack.c.b16 %v377, %v376
  %v432 = vpack.c.b16 %v379, %v378
  %v433 = vpack.c.b16 %v381, %v380
  %v434 = vpack.c.b16 %v383, %v382
  %v435 = vpack.c.b16 %v385, %v384
  %v436 = vpack.c.b16 %v387, %v386
  %v437 = vpack.c.b16 %v389, %v388
  %v438 = vpack.c.b16 %v391, %v390
  %v439 = vpack.c.b16 %v393, %v392
  %v440 = vpack.c.b16 %v395, %v394
  %v441 = vpack.c.b16 %v397, %v396
  %v442 = vpack.c.b16 %v399, %v398
  %v443 = vpack.c.b16 %v401, %v400
  %v444 = vpack.c.b16 %v403, %v402
  %v445 = vpack.c.b16 %v405, %v404
  %v446 = vpack.c.b16 %v407, %v406
  %v447 = vpack.c.b16 %v409, %v408
  %v448 = vpack.c.b16 %v411, %v410
  %v449 = vpack.c.b16 %v413, %v412
  %v450 = vpack.c.b16 %v415, %v414
  %v451 = vpack.c.b16 %v417, %v416
  %v452 = vpack.c.b16 %v419, %v418
  %v453 = vpack.c.b16 %v421, %v420
  %486 = vmatpush.bf16.msra.mxu0 %v429
  %487 = vmatpush.bf16.msra.mxu0 %v428
  %488 = vmatpush.bf16.msra.mxu0 %v427
  %489 = vmatpush.bf16.msra.mxu0 %v426
  %490 = vmatpush.bf16.msra.mxu0 %v425
  %491 = vmatpush.bf16.msra.mxu0 %v424
  %492 = vmatpush.bf16.msra.mxu0 %v423
  %493 = vmatpush.bf16.msra.mxu0 %v422
  %494 = vmatmul.bf16.gmra.mxu0 %v238
  %v495 = vpop.f32.mrf.mxu0
  %v496 = vadd.f32 %v158, %v495
  %v497 = vpop.f32.mrf.mxu0
  %v498 = vadd.f32 %v158, %v497
  %499 = vmatmul.bf16.gmra.mxu0 %v242
  %v500 = vpop.f32.mrf.mxu0
  %v501 = vadd.f32 %v158, %v500
  %v502 = vpop.f32.mrf.mxu0
  %v503 = vadd.f32 %v158, %v502
  %504 = vmatmul.bf16.gmra.mxu0 %v246
  %v505 = vpop.f32.mrf.mxu0
  %v506 = vadd.f32 %v158, %v505
  %v507 = vpop.f32.mrf.mxu0
  %v508 = vadd.f32 %v158, %v507
  %509 = vmatmul.bf16.gmra.mxu0 %v250
  %v510 = vpop.f32.mrf.mxu0
  %v511 = vadd.f32 %v158, %v510
  %v512 = vpop.f32.mrf.mxu0
  %v513 = vadd.f32 %v158, %v512
  %514 = vmatmul.bf16.gmra.mxu0 %v254
  %v515 = vpop.f32.mrf.mxu0
  %v516 = vadd.f32 %v158, %v515
  %v517 = vpop.f32.mrf.mxu0
  %v518 = vadd.f32 %v158, %v517
  %519 = vmatmul.bf16.gmra.mxu0 %v258
  %v520 = vpop.f32.mrf.mxu0
  %v521 = vadd.f32 %v158, %v520
  %v522 = vpop.f32.mrf.mxu0
  %v523 = vadd.f32 %v158, %v522
  %524 = vmatmul.bf16.gmra.mxu0 %v262
  %v525 = vpop.f32.mrf.mxu0
  %v526 = vadd.f32 %v158, %v525
  %v527 = vpop.f32.mrf.mxu0
  %528 = vdwg.mxu0
  %529 = vmatpush.bf16.msra.mxu0 %v437
  %530 = vmatpush.bf16.msra.mxu0 %v436
  %531 = vmatpush.bf16.msra.mxu0 %v435
  %532 = vmatpush.bf16.msra.mxu0 %v434
  %533 = vmatpush.bf16.msra.mxu0 %v433
  %534 = vmatpush.bf16.msra.mxu0 %v432
  %535 = vmatpush.bf16.msra.mxu0 %v431
  %536 = vmatpush.bf16.msra.mxu0 %v430
  %537 = vmatmul.bf16.gmra.mxu0 %v239
  %v538 = vpop.f32.mrf.mxu0
  %v539 = vadd.f32 %v496, %v538
  %v540 = vpop.f32.mrf.mxu0
  %v541 = vadd.f32 %v498, %v540
  %542 = vmatmul.bf16.gmra.mxu0 %v243
  %v543 = vpop.f32.mrf.mxu0
  %v544 = vadd.f32 %v501, %v543
  %v545 = vpop.f32.mrf.mxu0
  %v546 = vadd.f32 %v503, %v545
  %547 = vmatmul.bf16.gmra.mxu0 %v247
  %v548 = vpop.f32.mrf.mxu0
  %v549 = vadd.f32 %v506, %v548
  %v550 = vpop.f32.mrf.mxu0
  %v551 = vadd.f32 %v508, %v550
  %552 = vmatmul.bf16.gmra.mxu0 %v251
  %v553 = vpop.f32.mrf.mxu0
  %v554 = vadd.f32 %v511, %v553
  %v555 = vpop.f32.mrf.mxu0
  %v556 = vadd.f32 %v513, %v555
  %557 = vmatmul.bf16.gmra.mxu0 %v255
  %v558 = vpop.f32.mrf.mxu0
  %v559 = vadd.f32 %v516, %v558
  %v560 = vpop.f32.mrf.mxu0
  %v561 = vadd.f32 %v518, %v560
  %562 = vmatmul.bf16.gmra.mxu0 %v259
  %v563 = vpop.f32.mrf.mxu0
  %v564 = vadd.f32 %v521, %v563
  %v565 = vpop.f32.mrf.mxu0
  %v566 = vadd.f32 %v523, %v565
  %567 = vmatmul.bf16.gmra.mxu0 %v263
  %v568 = vpop.f32.mrf.mxu0
  %v569 = vadd.f32 %v526, %v568
  %v570 = vpop.f32.mrf.mxu0
  %571 = vdwg.mxu0
  %572 = vmatpush.bf16.msra.mxu0 %v445
  %573 = vmatpush.bf16.msra.mxu0 %v444
  %574 = vmatpush.bf16.msra.mxu0 %v443
  %575 = vmatpush.bf16.msra.mxu0 %v442
  %576 = vmatpush.bf16.msra.mxu0 %v441
  %577 = vmatpush.bf16.msra.mxu0 %v440
  %578 = vmatpush.bf16.msra.mxu0 %v439
  %579 = vmatpush.bf16.msra.mxu0 %v438
  %580 = vmatmul.bf16.gmra.mxu0 %v240
  %v581 = vpop.f32.mrf.mxu0
  %v582 = vadd.f32 %v539, %v581
  %v583 = vpop.f32.mrf.mxu0
  %v584 = vadd.f32 %v541, %v583
  %585 = vmatmul.bf16.gmra.mxu0 %v244
  %v586 = vpop.f32.mrf.mxu0
  %v587 = vadd.f32 %v544, %v586
  %v588 = vpop.f32.mrf.mxu0
  %v589 = vadd.f32 %v546, %v588
  %590 = vmatmul.bf16.gmra.mxu0 %v248
  %v591 = vpop.f32.mrf.mxu0
  %v592 = vadd.f32 %v549, %v591
  %v593 = vpop.f32.mrf.mxu0
  %v594 = vadd.f32 %v551, %v593
  %595 = vmatmul.bf16.gmra.mxu0 %v252
  %v596 = vpop.f32.mrf.mxu0
  %v597 = vadd.f32 %v554, %v596
  %v598 = vpop.f32.mrf.mxu0
  %v599 = vadd.f32 %v556, %v598
  %600 = vmatmul.bf16.gmra.mxu0 %v256
  %v601 = vpop.f32.mrf.mxu0
  %v602 = vadd.f32 %v559, %v601
  %v603 = vpop.f32.mrf.mxu0
  %v604 = vadd.f32 %v561, %v603
  %605 = vmatmul.bf16.gmra.mxu0 %v260
  %v606 = vpop.f32.mrf.mxu0
  %v607 = vadd.f32 %v564, %v606
  %v608 = vpop.f32.mrf.mxu0
  %v609 = vadd.f32 %v566, %v608
  %610 = vmatmul.bf16.gmra.mxu0 %v264
  %v611 = vpop.f32.mrf.mxu0
  %v612 = vadd.f32 %v569, %v611
  %v613 = vpop.f32.mrf.mxu0
  %614 = vdwg.mxu0
  %615 = vmatpush.bf16.msra.mxu0 %v453
  %616 = vmatpush.bf16.msra.mxu0 %v452
  %617 = vmatpush.bf16.msra.mxu0 %v451
  %618 = vmatpush.bf16.msra.mxu0 %v450
  %619 = vmatpush.bf16.msra.mxu0 %v449
  %620 = vmatpush.bf16.msra.mxu0 %v448
  %621 = vmatpush.bf16.msra.mxu0 %v447
  %622 = vmatpush.bf16.msra.mxu0 %v446
  %623 = vmatmul.bf16.gmra.mxu0 %v241
  %v624 = vpop.f32.mrf.mxu0
  %v625 = vadd.f32 %v582, %v624
  %v626 = vpop.f32.mrf.mxu0
  %v627 = vadd.f32 %v584, %v626
  %628 = vmatmul.bf16.gmra.mxu0 %v245
  %v629 = vpop.f32.mrf.mxu0
  %v630 = vadd.f32 %v587, %v629
  %v631 = vpop.f32.mrf.mxu0
  %v632 = vadd.f32 %v589, %v631
  %633 = vmatmul.bf16.gmra.mxu0 %v249
  %v634 = vpop.f32.mrf.mxu0
  %v635 = vadd.f32 %v592, %v634
  %v636 = vpop.f32.mrf.mxu0
  %v637 = vadd.f32 %v594, %v636
  %638 = vmatmul.bf16.gmra.mxu0 %v253
  %v639 = vpop.f32.mrf.mxu0
  %v640 = vadd.f32 %v597, %v639
  %v641 = vpop.f32.mrf.mxu0
  %v642 = vadd.f32 %v599, %v641
  %643 = vmatmul.bf16.gmra.mxu0 %v257
  %v644 = vpop.f32.mrf.mxu0
  %v645 = vadd.f32 %v602, %v644
  %v646 = vpop.f32.mrf.mxu0
  %v647 = vadd.f32 %v604, %v646
  %648 = vmatmul.bf16.gmra.mxu0 %v261
  %v649 = vpop.f32.mrf.mxu0
  %v650 = vadd.f32 %v607, %v649
  %v651 = vpop.f32.mrf.mxu0
  %v652 = vadd.f32 %v609, %v651
  %653 = vmatmul.bf16.gmra.mxu0 %v265
  %v654 = vpop.f32.mrf.mxu0
  %v655 = vadd.f32 %v612, %v654
  %v656 = vpop.f32.mrf.mxu0
  %657 = vdwg.mxu0
  %v658 = vmax.f32 %v625, 0.0
  %v659 = vmax.f32 %v627, 0.0
  %v660 = vmax.f32 %v630, 0.0
  %v661 = vmax.f32 %v632, 0.0
  %v662 = vmax.f32 %v635, 0.0
  %v663 = vmax.f32 %v637, 0.0
  %v664 = vmax.f32 %v640, 0.0
  %v665 = vmax.f32 %v642, 0.0
  %v666 = vmax.f32 %v645, 0.0
  %v667 = vmax.f32 %v647, 0.0
  %v668 = vmax.f32 %v650, 0.0
  %v669 = vmax.f32 %v652, 0.0
  %v670 = vmax.f32 %v655, 0.0
  %v671 = vpack.c.bf16 %v659, %v658
  %v672 = vpack.c.bf16 %v661, %v660
  %v673 = vpack.c.bf16 %v663, %v662
  %v674 = vpack.c.bf16 %v665, %v664
  %v675 = vpack.c.bf16 %v667, %v666
  %v676 = vpack.c.bf16 %v669, %v668
  %v677 = vpack.c.bf16 %v670, %v670
  %v678 = vld [vmem:[%s5] sm:$0xf]
  %v679 = vld [vmem:[%s5 + $0x4] sm:$0xf]
  %v680 = vld [vmem:[%s5 + $0x8] sm:$0x1]
  %v684 = vunpack.c.l.b16 %v678
  %v685 = vunpack.c.l.b16 %v679
  %v686 = vunpack.c.l.b16 %v680
  %v687 = vpack.c.b16 %v685, %v684
  %v688 = vpack.c.b16 %v686, %v686
  %vm689 = vcmask 801792
  %v691 = vsel %vm689, %v687, 0
  %v694 = vsel %vm689, %v688, 0
  %vm696 = vcmask 1040384
  %v698 = vsel %vm696, %v677, 0
  %700 = vmatpush.bf16.msra.mxu0 0
  %701 = vmatpush.bf16.msra.mxu0 %v698
  %702 = vmatpush.bf16.msra.mxu0 %v676
  %703 = vmatpush.bf16.msra.mxu0 %v675
  %704 = vmatpush.bf16.msra.mxu0 %v674
  %705 = vmatpush.bf16.msra.mxu0 %v673
  %706 = vmatpush.bf16.msra.mxu0 %v672
  %707 = vmatpush.bf16.msra.mxu0 %v671
  %708 = vmatmul.bf16.gmra.mxu0 %v691
  %v709 = vpop.f32.mrf.mxu0
  %v710 = vadd.f32 0.0, %v709
  %v711 = vpop.f32.mrf.mxu0
  %v712 = vadd.f32 0.0, %v711
  %713 = vmatmul.bf16.gmra.mxu0 %v694
  %v714 = vpop.f32.mrf.mxu0
  %v715 = vadd.f32 0.0, %v714
  %v716 = vpop.f32.mrf.mxu0
  %717 = vdwg.mxu0
  %v718 = vpack.c.bf16 %v712, %v710
  %v719 = vpack.c.bf16 %v715, %v715
  %v720 = vld [vmem:[%s6] sm:$0xf]
  %v721 = vld [vmem:[%s6 + $0x4] sm:$0xf]
  %v722 = vld [vmem:[%s6 + $0x8] sm:$0xf]
  %v723 = vld [vmem:[%s6 + $0xc] sm:$0xf]
  %v724 = vld [vmem:[%s6 + $0x10] sm:$0xf]
  %v725 = vld [vmem:[%s6 + $0x14] sm:$0xf]
  %v726 = vld [vmem:[%s6 + $0x18] sm:$0xf]
  %v727 = vld [vmem:[%s6 + $0x1c] sm:$0xf]
  %s728 = scalar_lea.vmem %s5, 12
  %v729 = vld [vmem:[%s728] sm:$0xf]
  %v730 = vld [vmem:[%s728 + $0x4] sm:$0xf]
  %v731 = vld [vmem:[%s728 + $0x8] sm:$0x1]
  %v735 = vunpack.c.l.b16 %v729
  %v736 = vunpack.c.l.b16 %v730
  %v737 = vunpack.c.l.b16 %v731
  %v738 = vpack.c.b16 %v736, %v735
  %v739 = vpack.c.b16 %v737, %v737
  %v741 = vsel %vm689, %v738, 0
  %v744 = vsel %vm689, %v739, 0
  %746 = vmatpush.bf16.msra.mxu0 0
  %747 = vmatpush.bf16.msra.mxu0 %v698
  %748 = vmatpush.bf16.msra.mxu0 %v676
  %749 = vmatpush.bf16.msra.mxu0 %v675
  %750 = vmatpush.bf16.msra.mxu0 %v674
  %751 = vmatpush.bf16.msra.mxu0 %v673
  %752 = vmatpush.bf16.msra.mxu0 %v672
  %753 = vmatpush.bf16.msra.mxu0 %v671
  %754 = vmatmul.bf16.gmra.mxu0 %v741
  %v755 = vpop.f32.mrf.mxu0
  %v756 = vadd.f32 0.0, %v755
  %v757 = vpop.f32.mrf.mxu0
  %v758 = vadd.f32 0.0, %v757
  %759 = vmatmul.bf16.gmra.mxu0 %v744
  %v760 = vpop.f32.mrf.mxu0
  %v761 = vadd.f32 0.0, %v760
  %v762 = vpop.f32.mrf.mxu0
  %763 = vdwg.mxu0
  %v764 = vpack.c.bf16 %v758, %v756
  %v765 = vpack.c.bf16 %v761, %v761
  %s766 = scalar_lea.vmem %s6, 32
  %v767 = vld [vmem:[%s766] sm:$0xf]
  %v768 = vld [vmem:[%s766 + $0x4] sm:$0xf]
  %v769 = vld [vmem:[%s766 + $0x8] sm:$0xf]
  %v770 = vld [vmem:[%s766 + $0xc] sm:$0xf]
  %v771 = vld [vmem:[%s766 + $0x10] sm:$0xf]
  %v772 = vld [vmem:[%s766 + $0x14] sm:$0xf]
  %v773 = vld [vmem:[%s766 + $0x18] sm:$0xf]
  %v774 = vld [vmem:[%s766 + $0x1c] sm:$0xf]
  %v783 = vunpack.c.l.b16 %v767
  %v784 = vunpack.c.l.b16 %v768
  %v785 = vunpack.c.l.b16 %v769
  %v786 = vunpack.c.l.b16 %v770
  %v787 = vunpack.c.l.b16 %v771
  %v788 = vunpack.c.l.b16 %v772
  %v789 = vunpack.c.l.b16 %v773
  %v790 = vunpack.c.l.b16 %v774
  %v791 = vpack.c.b16 %v784, %v783
  %v792 = vpack.c.b16 %v786, %v785
  %v793 = vpack.c.b16 %v788, %v787
  %v794 = vpack.c.b16 %v790, %v789
  %vm799 = vcmask 523264
  %v801 = vsel %vm799, %v764, 0
  %v804 = vsel %vm799, %v765, 0
  %806 = vmatpush.bf16.msra.mxu0 0
  %807 = vmatpush.bf16.msra.mxu0 0
  %808 = vmatpush.bf16.msra.mxu0 0
  %809 = vmatpush.bf16.msra.mxu0 0
  %810 = vmatpush.bf16.msra.mxu0 %v794
  %811 = vmatpush.bf16.msra.mxu0 %v793
  %812 = vmatpush.bf16.msra.mxu0 %v792
  %813 = vmatpush.bf16.msra.mxu0 %v791
  %814 = vmatmul.bf16.gmra.mxu0 %v801
  %v815 = vpop.f32.mrf.mxu0
  %v816 = vadd.f32 0.0, %v815
  %v817 = vpop.f32.mrf.mxu0
  %v818 = vadd.f32 0.0, %v817
  %819 = vmatmul.bf16.gmra.mxu0 %v804
  %v820 = vpop.f32.mrf.mxu0
  %v821 = vadd.f32 0.0, %v820
  %v822 = vpop.f32.mrf.mxu0
  %823 = vdwg.mxu0
  %v832 = vunpack.c.l.b16 %v720
  %v833 = vunpack.c.l.b16 %v721
  %v834 = vunpack.c.l.b16 %v722
  %v835 = vunpack.c.l.b16 %v723
  %v836 = vunpack.c.l.b16 %v724
  %v837 = vunpack.c.l.b16 %v725
  %v838 = vunpack.c.l.b16 %v726
  %v839 = vunpack.c.l.b16 %v727
  %v840 = vpack.c.b16 %v833, %v832
  %v841 = vpack.c.b16 %v835, %v834
  %v842 = vpack.c.b16 %v837, %v836
  %v843 = vpack.c.b16 %v839, %v838
  %v849 = vsel %vm799, %v718, 0
  %v852 = vsel %vm799, %v719, 0
  %854 = vmatpush.bf16.msra.mxu0 0
  %855 = vmatpush.bf16.msra.mxu0 0
  %856 = vmatpush.bf16.msra.mxu0 0
  %857 = vmatpush.bf16.msra.mxu0 0
  %858 = vmatpush.bf16.msra.mxu0 %v843
  %859 = vmatpush.bf16.msra.mxu0 %v842
  %860 = vmatpush.bf16.msra.mxu0 %v841
  %861 = vmatpush.bf16.msra.mxu0 %v840
  %862 = vmatmul.bf16.gmra.mxu0 %v849
  %v863 = vpop.f32.mrf.mxu0
  %v864 = vadd.f32 %v816, %v863
  %v865 = vpop.f32.mrf.mxu0
  %v866 = vadd.f32 %v818, %v865
  %867 = vmatmul.bf16.gmra.mxu0 %v852
  %v868 = vpop.f32.mrf.mxu0
  %v869 = vadd.f32 %v821, %v868
  %v870 = vpop.f32.mrf.mxu0
  %871 = vdwg.mxu0
  %s872 = scalar_lea.vmem %s5, 24
  %v873 = vld [vmem:[%s872] sm:$0xf]
  %v874 = vld [vmem:[%s872 + $0x4] sm:$0xf]
  %v875 = vld [vmem:[%s872 + $0x8] sm:$0x1]
  %v879 = vunpack.c.l.b16 %v873
  %v880 = vunpack.c.l.b16 %v874
  %v881 = vunpack.c.l.b16 %v875
  %v882 = vpack.c.b16 %v880, %v879
  %v883 = vpack.c.b16 %v881, %v881
  %v885 = vsel %vm689, %v882, 0
  %v888 = vsel %vm689, %v883, 0
  %890 = vmatpush.bf16.msra.mxu0 0
  %891 = vmatpush.bf16.msra.mxu0 %v698
  %892 = vmatpush.bf16.msra.mxu0 %v676
  %893 = vmatpush.bf16.msra.mxu0 %v675
  %894 = vmatpush.bf16.msra.mxu0 %v674
  %895 = vmatpush.bf16.msra.mxu0 %v673
  %896 = vmatpush.bf16.msra.mxu0 %v672
  %897 = vmatpush.bf16.msra.mxu0 %v671
  %898 = vmatmul.bf16.gmra.mxu0 %v885
  %v899 = vpop.f32.mrf.mxu0
  %v900 = vadd.f32 0.0, %v899
  %v901 = vpop.f32.mrf.mxu0
  %v902 = vadd.f32 0.0, %v901
  %903 = vmatmul.bf16.gmra.mxu0 %v888
  %v904 = vpop.f32.mrf.mxu0
  %v905 = vadd.f32 0.0, %v904
  %v906 = vpop.f32.mrf.mxu0
  %907 = vdwg.mxu0
  %v908 = vpack.c.bf16 %v902, %v900
  %v909 = vpack.c.bf16 %v905, %v905
  %s910 = scalar_lea.vmem %s6, 64
  %v911 = vld [vmem:[%s910] sm:$0xf]
  %v912 = vld [vmem:[%s910 + $0x4] sm:$0xf]
  %v913 = vld [vmem:[%s910 + $0x8] sm:$0xf]
  %v914 = vld [vmem:[%s910 + $0xc] sm:$0xf]
  %v915 = vld [vmem:[%s910 + $0x10] sm:$0xf]
  %v916 = vld [vmem:[%s910 + $0x14] sm:$0xf]
  %v917 = vld [vmem:[%s910 + $0x18] sm:$0xf]
  %v918 = vld [vmem:[%s910 + $0x1c] sm:$0xf]
  %v927 = vunpack.c.l.b16 %v911
  %v928 = vunpack.c.l.b16 %v912
  %v929 = vunpack.c.l.b16 %v913
  %v930 = vunpack.c.l.b16 %v914
  %v931 = vunpack.c.l.b16 %v915
  %v932 = vunpack.c.l.b16 %v916
  %v933 = vunpack.c.l.b16 %v917
  %v934 = vunpack.c.l.b16 %v918
  %v935 = vpack.c.b16 %v928, %v927
  %v936 = vpack.c.b16 %v930, %v929
  %v937 = vpack.c.b16 %v932, %v931
  %v938 = vpack.c.b16 %v934, %v933
  %v944 = vsel %vm799, %v908, 0
  %v947 = vsel %vm799, %v909, 0
  %949 = vmatpush.bf16.msra.mxu0 0
  %950 = vmatpush.bf16.msra.mxu0 0
  %951 = vmatpush.bf16.msra.mxu0 0
  %952 = vmatpush.bf16.msra.mxu0 0
  %953 = vmatpush.bf16.msra.mxu0 %v938
  %954 = vmatpush.bf16.msra.mxu0 %v937
  %955 = vmatpush.bf16.msra.mxu0 %v936
  %956 = vmatpush.bf16.msra.mxu0 %v935
  %957 = vmatmul.bf16.gmra.mxu0 %v944
  %v958 = vpop.f32.mrf.mxu0
  %v959 = vadd.f32 0.0, %v958
  %v960 = vpop.f32.mrf.mxu0
  %v961 = vadd.f32 0.0, %v960
  %962 = vmatmul.bf16.gmra.mxu0 %v947
  %v963 = vpop.f32.mrf.mxu0
  %v964 = vadd.f32 0.0, %v963
  %v965 = vpop.f32.mrf.mxu0
  %966 = vdwg.mxu0
  %v967 = vadd.f32 %v864, %v959
  %v968 = vadd.f32 %v866, %v961
  %v969 = vadd.f32 %v869, %v964
  %s970 = scalar_lea.vmem %s5, 36
  %v971 = vld [vmem:[%s970] sm:$0xf]
  %v972 = vld [vmem:[%s970 + $0x4] sm:$0xf]
  %v973 = vld [vmem:[%s970 + $0x8] sm:$0x1]
  %v977 = vunpack.c.l.b16 %v971
  %v978 = vunpack.c.l.b16 %v972
  %v979 = vunpack.c.l.b16 %v973
  %v980 = vpack.c.b16 %v978, %v977
  %v981 = vpack.c.b16 %v979, %v979
  %v983 = vsel %vm689, %v980, 0
  %v986 = vsel %vm689, %v981, 0
  %988 = vmatpush.bf16.msra.mxu0 0
  %989 = vmatpush.bf16.msra.mxu0 %v698
  %990 = vmatpush.bf16.msra.mxu0 %v676
  %991 = vmatpush.bf16.msra.mxu0 %v675
  %992 = vmatpush.bf16.msra.mxu0 %v674
  %993 = vmatpush.bf16.msra.mxu0 %v673
  %994 = vmatpush.bf16.msra.mxu0 %v672
  %995 = vmatpush.bf16.msra.mxu0 %v671
  %996 = vmatmul.bf16.gmra.mxu0 %v983
  %v997 = vpop.f32.mrf.mxu0
  %v998 = vadd.f32 0.0, %v997
  %v999 = vpop.f32.mrf.mxu0
  %v1000 = vadd.f32 0.0, %v999
  %1001 = vmatmul.bf16.gmra.mxu0 %v986
  %v1002 = vpop.f32.mrf.mxu0
  %v1003 = vadd.f32 0.0, %v1002
  %v1004 = vpop.f32.mrf.mxu0
  %1005 = vdwg.mxu0
  %v1006 = vpack.c.bf16 %v1000, %v998
  %v1007 = vpack.c.bf16 %v1003, %v1003
  %s1008 = scalar_lea.vmem %s6, 96
  %v1009 = vld [vmem:[%s1008] sm:$0xf]
  %v1010 = vld [vmem:[%s1008 + $0x4] sm:$0xf]
  %v1011 = vld [vmem:[%s1008 + $0x8] sm:$0xf]
  %v1012 = vld [vmem:[%s1008 + $0xc] sm:$0xf]
  %v1013 = vld [vmem:[%s1008 + $0x10] sm:$0xf]
  %v1014 = vld [vmem:[%s1008 + $0x14] sm:$0xf]
  %v1015 = vld [vmem:[%s1008 + $0x18] sm:$0xf]
  %v1016 = vld [vmem:[%s1008 + $0x1c] sm:$0xf]
  %v1025 = vunpack.c.l.b16 %v1009
  %v1026 = vunpack.c.l.b16 %v1010
  %v1027 = vunpack.c.l.b16 %v1011
  %v1028 = vunpack.c.l.b16 %v1012
  %v1029 = vunpack.c.l.b16 %v1013
  %v1030 = vunpack.c.l.b16 %v1014
  %v1031 = vunpack.c.l.b16 %v1015
  %v1032 = vunpack.c.l.b16 %v1016
  %v1033 = vpack.c.b16 %v1026, %v1025
  %v1034 = vpack.c.b16 %v1028, %v1027
  %v1035 = vpack.c.b16 %v1030, %v1029
  %v1036 = vpack.c.b16 %v1032, %v1031
  %v1042 = vsel %vm799, %v1006, 0
  %v1045 = vsel %vm799, %v1007, 0
  %1047 = vmatpush.bf16.msra.mxu0 0
  %1048 = vmatpush.bf16.msra.mxu0 0
  %1049 = vmatpush.bf16.msra.mxu0 0
  %1050 = vmatpush.bf16.msra.mxu0 0
  %1051 = vmatpush.bf16.msra.mxu0 %v1036
  %1052 = vmatpush.bf16.msra.mxu0 %v1035
  %1053 = vmatpush.bf16.msra.mxu0 %v1034
  %1054 = vmatpush.bf16.msra.mxu0 %v1033
  %1055 = vmatmul.bf16.gmra.mxu0 %v1042
  %v1056 = vpop.f32.mrf.mxu0
  %v1057 = vadd.f32 0.0, %v1056
  %v1058 = vpop.f32.mrf.mxu0
  %v1059 = vadd.f32 0.0, %v1058
  %1060 = vmatmul.bf16.gmra.mxu0 %v1045
  %v1061 = vpop.f32.mrf.mxu0
  %v1062 = vadd.f32 0.0, %v1061
  %v1063 = vpop.f32.mrf.mxu0
  %1064 = vdwg.mxu0
  %v1065 = vadd.f32 %v967, %v1057
  %v1066 = vadd.f32 %v968, %v1059
  %v1067 = vadd.f32 %v969, %v1062
  %s1068 = scalar_lea.vmem %s5, 48
  %v1069 = vld [vmem:[%s1068] sm:$0xf]
  %v1070 = vld [vmem:[%s1068 + $0x4] sm:$0xf]
  %v1071 = vld [vmem:[%s1068 + $0x8] sm:$0x1]
  %v1075 = vunpack.c.l.b16 %v1069
  %v1076 = vunpack.c.l.b16 %v1070
  %v1077 = vunpack.c.l.b16 %v1071
  %v1078 = vpack.c.b16 %v1076, %v1075
  %v1079 = vpack.c.b16 %v1077, %v1077
  %v1081 = vsel %vm689, %v1078, 0
  %v1084 = vsel %vm689, %v1079, 0
  %1086 = vmatpush.bf16.msra.mxu0 0
  %1087 = vmatpush.bf16.msra.mxu0 %v698
  %1088 = vmatpush.bf16.msra.mxu0 %v676
  %1089 = vmatpush.bf16.msra.mxu0 %v675
  %1090 = vmatpush.bf16.msra.mxu0 %v674
  %1091 = vmatpush.bf16.msra.mxu0 %v673
  %1092 = vmatpush.bf16.msra.mxu0 %v672
  %1093 = vmatpush.bf16.msra.mxu0 %v671
  %1094 = vmatmul.bf16.gmra.mxu0 %v1081
  %v1095 = vpop.f32.mrf.mxu0
  %v1096 = vadd.f32 0.0, %v1095
  %v1097 = vpop.f32.mrf.mxu0
  %v1098 = vadd.f32 0.0, %v1097
  %1099 = vmatmul.bf16.gmra.mxu0 %v1084
  %v1100 = vpop.f32.mrf.mxu0
  %v1101 = vadd.f32 0.0, %v1100
  %v1102 = vpop.f32.mrf.mxu0
  %1103 = vdwg.mxu0
  %v1104 = vpack.c.bf16 %v1098, %v1096
  %v1105 = vpack.c.bf16 %v1101, %v1101
  %s1106 = scalar_lea.vmem %s6, 128
  %v1107 = vld [vmem:[%s1106] sm:$0xf]
  %v1108 = vld [vmem:[%s1106 + $0x4] sm:$0xf]
  %v1109 = vld [vmem:[%s1106 + $0x8] sm:$0xf]
  %v1110 = vld [vmem:[%s1106 + $0xc] sm:$0xf]
  %v1111 = vld [vmem:[%s1106 + $0x10] sm:$0xf]
  %v1112 = vld [vmem:[%s1106 + $0x14] sm:$0xf]
  %v1113 = vld [vmem:[%s1106 + $0x18] sm:$0xf]
  %v1114 = vld [vmem:[%s1106 + $0x1c] sm:$0xf]
  %v1123 = vunpack.c.l.b16 %v1107
  %v1124 = vunpack.c.l.b16 %v1108
  %v1125 = vunpack.c.l.b16 %v1109
  %v1126 = vunpack.c.l.b16 %v1110
  %v1127 = vunpack.c.l.b16 %v1111
  %v1128 = vunpack.c.l.b16 %v1112
  %v1129 = vunpack.c.l.b16 %v1113
  %v1130 = vunpack.c.l.b16 %v1114
  %v1131 = vpack.c.b16 %v1124, %v1123
  %v1132 = vpack.c.b16 %v1126, %v1125
  %v1133 = vpack.c.b16 %v1128, %v1127
  %v1134 = vpack.c.b16 %v1130, %v1129
  %v1140 = vsel %vm799, %v1104, 0
  %v1143 = vsel %vm799, %v1105, 0
  %1145 = vmatpush.bf16.msra.mxu0 0
  %1146 = vmatpush.bf16.msra.mxu0 0
  %1147 = vmatpush.bf16.msra.mxu0 0
  %1148 = vmatpush.bf16.msra.mxu0 0
  %1149 = vmatpush.bf16.msra.mxu0 %v1134
  %1150 = vmatpush.bf16.msra.mxu0 %v1133
  %1151 = vmatpush.bf16.msra.mxu0 %v1132
  %1152 = vmatpush.bf16.msra.mxu0 %v1131
  %1153 = vmatmul.bf16.gmra.mxu0 %v1140
  %v1154 = vpop.f32.mrf.mxu0
  %v1155 = vadd.f32 0.0, %v1154
  %v1156 = vpop.f32.mrf.mxu0
  %v1157 = vadd.f32 0.0, %v1156
  %1158 = vmatmul.bf16.gmra.mxu0 %v1143
  %v1159 = vpop.f32.mrf.mxu0
  %v1160 = vadd.f32 0.0, %v1159
  %v1161 = vpop.f32.mrf.mxu0
  %1162 = vdwg.mxu0
  %v1163 = vadd.f32 %v1065, %v1155
  %v1164 = vadd.f32 %v1066, %v1157
  %v1165 = vadd.f32 %v1067, %v1160
  %s1166 = scalar_lea.vmem %s5, 60
  %v1167 = vld [vmem:[%s1166] sm:$0xf]
  %v1168 = vld [vmem:[%s1166 + $0x4] sm:$0xf]
  %v1169 = vld [vmem:[%s1166 + $0x8] sm:$0x1]
  %v1173 = vunpack.c.l.b16 %v1167
  %v1174 = vunpack.c.l.b16 %v1168
  %v1175 = vunpack.c.l.b16 %v1169
  %v1176 = vpack.c.b16 %v1174, %v1173
  %v1177 = vpack.c.b16 %v1175, %v1175
  %v1179 = vsel %vm689, %v1176, 0
  %v1182 = vsel %vm689, %v1177, 0
  %1184 = vmatpush.bf16.msra.mxu0 0
  %1185 = vmatpush.bf16.msra.mxu0 %v698
  %1186 = vmatpush.bf16.msra.mxu0 %v676
  %1187 = vmatpush.bf16.msra.mxu0 %v675
  %1188 = vmatpush.bf16.msra.mxu0 %v674
  %1189 = vmatpush.bf16.msra.mxu0 %v673
  %1190 = vmatpush.bf16.msra.mxu0 %v672
  %1191 = vmatpush.bf16.msra.mxu0 %v671
  %1192 = vmatmul.bf16.gmra.mxu0 %v1179
  %v1193 = vpop.f32.mrf.mxu0
  %v1194 = vadd.f32 0.0, %v1193
  %v1195 = vpop.f32.mrf.mxu0
  %v1196 = vadd.f32 0.0, %v1195
  %1197 = vmatmul.bf16.gmra.mxu0 %v1182
  %v1198 = vpop.f32.mrf.mxu0
  %v1199 = vadd.f32 0.0, %v1198
  %v1200 = vpop.f32.mrf.mxu0
  %1201 = vdwg.mxu0
  %v1202 = vpack.c.bf16 %v1196, %v1194
  %v1203 = vpack.c.bf16 %v1199, %v1199
  %s1204 = scalar_lea.vmem %s6, 160
  %v1205 = vld [vmem:[%s1204] sm:$0xf]
  %v1206 = vld [vmem:[%s1204 + $0x4] sm:$0xf]
  %v1207 = vld [vmem:[%s1204 + $0x8] sm:$0xf]
  %v1208 = vld [vmem:[%s1204 + $0xc] sm:$0xf]
  %v1209 = vld [vmem:[%s1204 + $0x10] sm:$0xf]
  %v1210 = vld [vmem:[%s1204 + $0x14] sm:$0xf]
  %v1211 = vld [vmem:[%s1204 + $0x18] sm:$0xf]
  %v1212 = vld [vmem:[%s1204 + $0x1c] sm:$0xf]
  %v1221 = vunpack.c.l.b16 %v1205
  %v1222 = vunpack.c.l.b16 %v1206
  %v1223 = vunpack.c.l.b16 %v1207
  %v1224 = vunpack.c.l.b16 %v1208
  %v1225 = vunpack.c.l.b16 %v1209
  %v1226 = vunpack.c.l.b16 %v1210
  %v1227 = vunpack.c.l.b16 %v1211
  %v1228 = vunpack.c.l.b16 %v1212
  %v1229 = vpack.c.b16 %v1222, %v1221
  %v1230 = vpack.c.b16 %v1224, %v1223
  %v1231 = vpack.c.b16 %v1226, %v1225
  %v1232 = vpack.c.b16 %v1228, %v1227
  %v1238 = vsel %vm799, %v1202, 0
  %v1241 = vsel %vm799, %v1203, 0
  %1243 = vmatpush.bf16.msra.mxu0 0
  %1244 = vmatpush.bf16.msra.mxu0 0
  %1245 = vmatpush.bf16.msra.mxu0 0
  %1246 = vmatpush.bf16.msra.mxu0 0
  %1247 = vmatpush.bf16.msra.mxu0 %v1232
  %1248 = vmatpush.bf16.msra.mxu0 %v1231
  %1249 = vmatpush.bf16.msra.mxu0 %v1230
  %1250 = vmatpush.bf16.msra.mxu0 %v1229
  %1251 = vmatmul.bf16.gmra.mxu0 %v1238
  %v1252 = vpop.f32.mrf.mxu0
  %v1253 = vadd.f32 0.0, %v1252
  %v1254 = vpop.f32.mrf.mxu0
  %v1255 = vadd.f32 0.0, %v1254
  %1256 = vmatmul.bf16.gmra.mxu0 %v1241
  %v1257 = vpop.f32.mrf.mxu0
  %v1258 = vadd.f32 0.0, %v1257
  %v1259 = vpop.f32.mrf.mxu0
  %1260 = vdwg.mxu0
  %v1261 = vadd.f32 %v1163, %v1253
  %v1262 = vadd.f32 %v1164, %v1255
  %v1263 = vadd.f32 %v1165, %v1258
  %s1264 = scalar_lea.vmem %s5, 72
  %v1265 = vld [vmem:[%s1264] sm:$0xf]
  %v1266 = vld [vmem:[%s1264 + $0x4] sm:$0xf]
  %v1267 = vld [vmem:[%s1264 + $0x8] sm:$0x1]
  %v1271 = vunpack.c.l.b16 %v1265
  %v1272 = vunpack.c.l.b16 %v1266
  %v1273 = vunpack.c.l.b16 %v1267
  %v1274 = vpack.c.b16 %v1272, %v1271
  %v1275 = vpack.c.b16 %v1273, %v1273
  %v1277 = vsel %vm689, %v1274, 0
  %v1280 = vsel %vm689, %v1275, 0
  %1282 = vmatpush.bf16.msra.mxu0 0
  %1283 = vmatpush.bf16.msra.mxu0 %v698
  %1284 = vmatpush.bf16.msra.mxu0 %v676
  %1285 = vmatpush.bf16.msra.mxu0 %v675
  %1286 = vmatpush.bf16.msra.mxu0 %v674
  %1287 = vmatpush.bf16.msra.mxu0 %v673
  %1288 = vmatpush.bf16.msra.mxu0 %v672
  %1289 = vmatpush.bf16.msra.mxu0 %v671
  %1290 = vmatmul.bf16.gmra.mxu0 %v1277
  %v1291 = vpop.f32.mrf.mxu0
  %v1292 = vadd.f32 0.0, %v1291
  %v1293 = vpop.f32.mrf.mxu0
  %v1294 = vadd.f32 0.0, %v1293
  %1295 = vmatmul.bf16.gmra.mxu0 %v1280
  %v1296 = vpop.f32.mrf.mxu0
  %v1297 = vadd.f32 0.0, %v1296
  %v1298 = vpop.f32.mrf.mxu0
  %1299 = vdwg.mxu0
  %v1300 = vpack.c.bf16 %v1294, %v1292
  %v1301 = vpack.c.bf16 %v1297, %v1297
  %s1302 = scalar_lea.vmem %s6, 192
  %v1303 = vld [vmem:[%s1302] sm:$0xf]
  %v1304 = vld [vmem:[%s1302 + $0x4] sm:$0xf]
  %v1305 = vld [vmem:[%s1302 + $0x8] sm:$0xf]
  %v1306 = vld [vmem:[%s1302 + $0xc] sm:$0xf]
  %v1307 = vld [vmem:[%s1302 + $0x10] sm:$0xf]
  %v1308 = vld [vmem:[%s1302 + $0x14] sm:$0xf]
  %v1309 = vld [vmem:[%s1302 + $0x18] sm:$0xf]
  %v1310 = vld [vmem:[%s1302 + $0x1c] sm:$0xf]
  %v1319 = vunpack.c.l.b16 %v1303
  %v1320 = vunpack.c.l.b16 %v1304
  %v1321 = vunpack.c.l.b16 %v1305
  %v1322 = vunpack.c.l.b16 %v1306
  %v1323 = vunpack.c.l.b16 %v1307
  %v1324 = vunpack.c.l.b16 %v1308
  %v1325 = vunpack.c.l.b16 %v1309
  %v1326 = vunpack.c.l.b16 %v1310
  %v1327 = vpack.c.b16 %v1320, %v1319
  %v1328 = vpack.c.b16 %v1322, %v1321
  %v1329 = vpack.c.b16 %v1324, %v1323
  %v1330 = vpack.c.b16 %v1326, %v1325
  %v1336 = vsel %vm799, %v1300, 0
  %v1339 = vsel %vm799, %v1301, 0
  %1341 = vmatpush.bf16.msra.mxu0 0
  %1342 = vmatpush.bf16.msra.mxu0 0
  %1343 = vmatpush.bf16.msra.mxu0 0
  %1344 = vmatpush.bf16.msra.mxu0 0
  %1345 = vmatpush.bf16.msra.mxu0 %v1330
  %1346 = vmatpush.bf16.msra.mxu0 %v1329
  %1347 = vmatpush.bf16.msra.mxu0 %v1328
  %1348 = vmatpush.bf16.msra.mxu0 %v1327
  %1349 = vmatmul.bf16.gmra.mxu0 %v1336
  %v1350 = vpop.f32.mrf.mxu0
  %v1351 = vadd.f32 0.0, %v1350
  %v1352 = vpop.f32.mrf.mxu0
  %v1353 = vadd.f32 0.0, %v1352
  %1354 = vmatmul.bf16.gmra.mxu0 %v1339
  %v1355 = vpop.f32.mrf.mxu0
  %v1356 = vadd.f32 0.0, %v1355
  %v1357 = vpop.f32.mrf.mxu0
  %1358 = vdwg.mxu0
  %v1359 = vadd.f32 %v1261, %v1351
  %v1360 = vadd.f32 %v1262, %v1353
  %v1361 = vadd.f32 %v1263, %v1356
  %s1362 = scalar_lea.vmem %s5, 84
  %v1363 = vld [vmem:[%s1362] sm:$0xf]
  %v1364 = vld [vmem:[%s1362 + $0x4] sm:$0xf]
  %v1365 = vld [vmem:[%s1362 + $0x8] sm:$0x1]
  %v1369 = vunpack.c.l.b16 %v1363
  %v1370 = vunpack.c.l.b16 %v1364
  %v1371 = vunpack.c.l.b16 %v1365
  %v1372 = vpack.c.b16 %v1370, %v1369
  %v1373 = vpack.c.b16 %v1371, %v1371
  %v1375 = vsel %vm689, %v1372, 0
  %v1378 = vsel %vm689, %v1373, 0
  %1380 = vmatpush.bf16.msra.mxu0 0
  %1381 = vmatpush.bf16.msra.mxu0 %v698
  %1382 = vmatpush.bf16.msra.mxu0 %v676
  %1383 = vmatpush.bf16.msra.mxu0 %v675
  %1384 = vmatpush.bf16.msra.mxu0 %v674
  %1385 = vmatpush.bf16.msra.mxu0 %v673
  %1386 = vmatpush.bf16.msra.mxu0 %v672
  %1387 = vmatpush.bf16.msra.mxu0 %v671
  %1388 = vmatmul.bf16.gmra.mxu0 %v1375
  %v1389 = vpop.f32.mrf.mxu0
  %v1390 = vadd.f32 0.0, %v1389
  %v1391 = vpop.f32.mrf.mxu0
  %v1392 = vadd.f32 0.0, %v1391
  %1393 = vmatmul.bf16.gmra.mxu0 %v1378
  %v1394 = vpop.f32.mrf.mxu0
  %v1395 = vadd.f32 0.0, %v1394
  %v1396 = vpop.f32.mrf.mxu0
  %1397 = vdwg.mxu0
  %v1398 = vpack.c.bf16 %v1392, %v1390
  %v1399 = vpack.c.bf16 %v1395, %v1395
  %s1400 = scalar_lea.vmem %s6, 224
  %v1401 = vld [vmem:[%s1400] sm:$0xf]
  %v1402 = vld [vmem:[%s1400 + $0x4] sm:$0xf]
  %v1403 = vld [vmem:[%s1400 + $0x8] sm:$0xf]
  %v1404 = vld [vmem:[%s1400 + $0xc] sm:$0xf]
  %v1405 = vld [vmem:[%s1400 + $0x10] sm:$0xf]
  %v1406 = vld [vmem:[%s1400 + $0x14] sm:$0xf]
  %v1407 = vld [vmem:[%s1400 + $0x18] sm:$0xf]
  %v1408 = vld [vmem:[%s1400 + $0x1c] sm:$0xf]
  %v1417 = vunpack.c.l.b16 %v1401
  %v1418 = vunpack.c.l.b16 %v1402
  %v1419 = vunpack.c.l.b16 %v1403
  %v1420 = vunpack.c.l.b16 %v1404
  %v1421 = vunpack.c.l.b16 %v1405
  %v1422 = vunpack.c.l.b16 %v1406
  %v1423 = vunpack.c.l.b16 %v1407
  %v1424 = vunpack.c.l.b16 %v1408
  %v1425 = vpack.c.b16 %v1418, %v1417
  %v1426 = vpack.c.b16 %v1420, %v1419
  %v1427 = vpack.c.b16 %v1422, %v1421
  %v1428 = vpack.c.b16 %v1424, %v1423
  %v1434 = vsel %vm799, %v1398, 0
  %v1437 = vsel %vm799, %v1399, 0
  %1439 = vmatpush.bf16.msra.mxu0 0
  %1440 = vmatpush.bf16.msra.mxu0 0
  %1441 = vmatpush.bf16.msra.mxu0 0
  %1442 = vmatpush.bf16.msra.mxu0 0
  %1443 = vmatpush.bf16.msra.mxu0 %v1428
  %1444 = vmatpush.bf16.msra.mxu0 %v1427
  %1445 = vmatpush.bf16.msra.mxu0 %v1426
  %1446 = vmatpush.bf16.msra.mxu0 %v1425
  %1447 = vmatmul.bf16.gmra.mxu0 %v1434
  %v1448 = vpop.f32.mrf.mxu0
  %v1449 = vadd.f32 0.0, %v1448
  %v1450 = vpop.f32.mrf.mxu0
  %v1451 = vadd.f32 0.0, %v1450
  %1452 = vmatmul.bf16.gmra.mxu0 %v1437
  %v1453 = vpop.f32.mrf.mxu0
  %v1454 = vadd.f32 0.0, %v1453
  %v1455 = vpop.f32.mrf.mxu0
  %1456 = vdwg.mxu0
  %v1457 = vadd.f32 %v1359, %v1449
  %v1458 = vadd.f32 %v1360, %v1451
  %v1459 = vadd.f32 %v1361, %v1454
  %s1460 = scalar_lea.vmem %s5, 96
  %v1461 = vld [vmem:[%s1460] sm:$0xf]
  %v1462 = vld [vmem:[%s1460 + $0x4] sm:$0xf]
  %v1463 = vld [vmem:[%s1460 + $0x8] sm:$0x1]
  %v1467 = vunpack.c.l.b16 %v1461
  %v1468 = vunpack.c.l.b16 %v1462
  %v1469 = vunpack.c.l.b16 %v1463
  %v1470 = vpack.c.b16 %v1468, %v1467
  %v1471 = vpack.c.b16 %v1469, %v1469
  %v1473 = vsel %vm689, %v1470, 0
  %v1476 = vsel %vm689, %v1471, 0
  %1478 = vmatpush.bf16.msra.mxu0 0
  %1479 = vmatpush.bf16.msra.mxu0 %v698
  %1480 = vmatpush.bf16.msra.mxu0 %v676
  %1481 = vmatpush.bf16.msra.mxu0 %v675
  %1482 = vmatpush.bf16.msra.mxu0 %v674
  %1483 = vmatpush.bf16.msra.mxu0 %v673
  %1484 = vmatpush.bf16.msra.mxu0 %v672
  %1485 = vmatpush.bf16.msra.mxu0 %v671
  %1486 = vmatmul.bf16.gmra.mxu0 %v1473
  %v1487 = vpop.f32.mrf.mxu0
  %v1488 = vadd.f32 0.0, %v1487
  %v1489 = vpop.f32.mrf.mxu0
  %v1490 = vadd.f32 0.0, %v1489
  %1491 = vmatmul.bf16.gmra.mxu0 %v1476
  %v1492 = vpop.f32.mrf.mxu0
  %v1493 = vadd.f32 0.0, %v1492
  %v1494 = vpop.f32.mrf.mxu0
  %1495 = vdwg.mxu0
  %v1496 = vpack.c.bf16 %v1490, %v1488
  %v1497 = vpack.c.bf16 %v1493, %v1493
  %s1498 = scalar_lea.vmem %s6, 256
  %v1499 = vld [vmem:[%s1498] sm:$0xf]
  %v1500 = vld [vmem:[%s1498 + $0x4] sm:$0xf]
  %v1501 = vld [vmem:[%s1498 + $0x8] sm:$0xf]
  %v1502 = vld [vmem:[%s1498 + $0xc] sm:$0xf]
  %v1503 = vld [vmem:[%s1498 + $0x10] sm:$0xf]
  %v1504 = vld [vmem:[%s1498 + $0x14] sm:$0xf]
  %v1505 = vld [vmem:[%s1498 + $0x18] sm:$0xf]
  %v1506 = vld [vmem:[%s1498 + $0x1c] sm:$0xf]
  %v1515 = vunpack.c.l.b16 %v1499
  %v1516 = vunpack.c.l.b16 %v1500
  %v1517 = vunpack.c.l.b16 %v1501
  %v1518 = vunpack.c.l.b16 %v1502
  %v1519 = vunpack.c.l.b16 %v1503
  %v1520 = vunpack.c.l.b16 %v1504
  %v1521 = vunpack.c.l.b16 %v1505
  %v1522 = vunpack.c.l.b16 %v1506
  %v1523 = vpack.c.b16 %v1516, %v1515
  %v1524 = vpack.c.b16 %v1518, %v1517
  %v1525 = vpack.c.b16 %v1520, %v1519
  %v1526 = vpack.c.b16 %v1522, %v1521
  %v1532 = vsel %vm799, %v1496, 0
  %v1535 = vsel %vm799, %v1497, 0
  %1537 = vmatpush.bf16.msra.mxu0 0
  %1538 = vmatpush.bf16.msra.mxu0 0
  %1539 = vmatpush.bf16.msra.mxu0 0
  %1540 = vmatpush.bf16.msra.mxu0 0
  %1541 = vmatpush.bf16.msra.mxu0 %v1526
  %1542 = vmatpush.bf16.msra.mxu0 %v1525
  %1543 = vmatpush.bf16.msra.mxu0 %v1524
  %1544 = vmatpush.bf16.msra.mxu0 %v1523
  %1545 = vmatmul.bf16.gmra.mxu0 %v1532
  %v1546 = vpop.f32.mrf.mxu0
  %v1547 = vadd.f32 0.0, %v1546
  %v1548 = vpop.f32.mrf.mxu0
  %v1549 = vadd.f32 0.0, %v1548
  %1550 = vmatmul.bf16.gmra.mxu0 %v1535
  %v1551 = vpop.f32.mrf.mxu0
  %v1552 = vadd.f32 0.0, %v1551
  %v1553 = vpop.f32.mrf.mxu0
  %1554 = vdwg.mxu0
  %v1555 = vadd.f32 %v1457, %v1547
  %v1556 = vadd.f32 %v1458, %v1549
  %v1557 = vadd.f32 %v1459, %v1552
  %v1558 = vld [vmem:[%s7] sm:$0x1]
  %v1560 = vperm.slane %v1558, 0
  %v1562 = vadd.f32 %v1555, %v1560
  %v1563 = vadd.f32 %v1556, %v1560
  %v1564 = vadd.f32 %v1557, %v1560
  %v1565 = vmax.f32 %v1562, 0.0
  %v1566 = vmax.f32 %v1563, 0.0
  %v1567 = vmax.f32 %v1564, 0.0
  %v1568 = vpack.c.bf16 %v1566, %v1565
  %v1569 = vpack.c.bf16 %v1567, %v1567
  %v1570 = vld [vmem:[%s8] sm:$0x1]
  %vm1571 = vcmask 146432
  %v1573 = vsel %vm1571, %v1570, 0
  %v1576 = vsel %vm696, %v1569, 0
  %1578 = vmatpush.bf16.msra.mxu0 0
  %1579 = vmatpush.bf16.msra.mxu0 0
  %1580 = vmatpush.bf16.msra.mxu0 0
  %1581 = vmatpush.bf16.msra.mxu0 0
  %1582 = vmatpush.bf16.msra.mxu0 0
  %1583 = vmatpush.bf16.msra.mxu0 0
  %1584 = vmatpush.bf16.msra.mxu0 %v1576
  %1585 = vmatpush.bf16.msra.mxu0 %v1568
  %1586 = vmatmul.bf16.gmra.mxu0 %v1573
  %v1587 = vpop.f32.mrf.mxu0
  %v1588 = vadd.f32 0.0, %v1587
  %v1589 = vpop.f32.mrf.mxu0
  %1590 = vdwg.mxu0
  %v1591 = vpack.c.bf16 %v1588, %v1588
  %v1592 = vld [vmem:[%s9] sm:$0xf]
  %v1593 = vld [vmem:[%s9 + $0x4] sm:$0xf]
  %v1594 = vld [vmem:[%s9 + $0x8] sm:$0xf]
  %v1595 = vld [vmem:[%s9 + $0xc] sm:$0xf]
  %v1596 = vld [vmem:[%s9 + $0x10] sm:$0xf]
  %v1597 = vld [vmem:[%s9 + $0x14] sm:$0xf]
  %v1598 = vld [vmem:[%s9 + $0x18] sm:$0xf]
  %v1599 = vld [vmem:[%s9 + $0x1c] sm:$0xf]
  %v1600 = vld [vmem:[%s9 + $0x20] sm:$0xf]
  %v1601 = vld [vmem:[%s9 + $0x24] sm:$0xf]
  %v1602 = vld [vmem:[%s9 + $0x28] sm:$0xf]
  %v1603 = vld [vmem:[%s9 + $0x2c] sm:$0xf]
  %v1604 = vld [vmem:[%s9 + $0x30] sm:$0xf]
  %v1605 = vld [vmem:[%s9 + $0x34] sm:$0xf]
  %v1606 = vld [vmem:[%s9 + $0x38] sm:$0xf]
  %v1607 = vld [vmem:[%s9 + $0x3c] sm:$0xf]
  %s1608 = scalar_lea.vmem %s8, 1
  %v1609 = vld [vmem:[%s1608] sm:$0x1]
  %v1611 = vsel %vm1571, %v1609, 0
  %1613 = vmatpush.bf16.msra.mxu0 0
  %1614 = vmatpush.bf16.msra.mxu0 0
  %1615 = vmatpush.bf16.msra.mxu0 0
  %1616 = vmatpush.bf16.msra.mxu0 0
  %1617 = vmatpush.bf16.msra.mxu0 0
  %1618 = vmatpush.bf16.msra.mxu0 0
  %1619 = vmatpush.bf16.msra.mxu0 %v1576
  %1620 = vmatpush.bf16.msra.mxu0 %v1568
  %1621 = vmatmul.bf16.gmra.mxu0 %v1611
  %v1622 = vpop.f32.mrf.mxu0
  %v1623 = vadd.f32 0.0, %v1622
  %v1624 = vpop.f32.mrf.mxu0
  %1625 = vdwg.mxu0
  %v1626 = vpack.c.bf16 %v1623, %v1623
  %s1627 = scalar_lea.vmem %s9, 64
  %v1628 = vld [vmem:[%s1627] sm:$0xf]
  %v1629 = vld [vmem:[%s1627 + $0x4] sm:$0xf]
  %v1630 = vld [vmem:[%s1627 + $0x8] sm:$0xf]
  %v1631 = vld [vmem:[%s1627 + $0xc] sm:$0xf]
  %v1632 = vld [vmem:[%s1627 + $0x10] sm:$0xf]
  %v1633 = vld [vmem:[%s1627 + $0x14] sm:$0xf]
  %v1634 = vld [vmem:[%s1627 + $0x18] sm:$0xf]
  %v1635 = vld [vmem:[%s1627 + $0x1c] sm:$0xf]
  %v1636 = vld [vmem:[%s1627 + $0x20] sm:$0xf]
  %v1637 = vld [vmem:[%s1627 + $0x24] sm:$0xf]
  %v1638 = vld [vmem:[%s1627 + $0x28] sm:$0xf]
  %v1639 = vld [vmem:[%s1627 + $0x2c] sm:$0xf]
  %v1640 = vld [vmem:[%s1627 + $0x30] sm:$0xf]
  %v1641 = vld [vmem:[%s1627 + $0x34] sm:$0xf]
  %v1642 = vld [vmem:[%s1627 + $0x38] sm:$0xf]
  %v1643 = vld [vmem:[%s1627 + $0x3c] sm:$0xf]
  %v1660 = vunpack.c.l.b16 %v1628
  %v1661 = vunpack.c.l.b16 %v1629
  %v1662 = vunpack.c.l.b16 %v1630
  %v1663 = vunpack.c.l.b16 %v1631
  %v1664 = vunpack.c.l.b16 %v1632
  %v1665 = vunpack.c.l.b16 %v1633
  %v1666 = vunpack.c.l.b16 %v1634
  %v1667 = vunpack.c.l.b16 %v1635
  %v1668 = vunpack.c.l.b16 %v1636
  %v1669 = vunpack.c.l.b16 %v1637
  %v1670 = vunpack.c.l.b16 %v1638
  %v1671 = vunpack.c.l.b16 %v1639
  %v1672 = vunpack.c.l.b16 %v1640
  %v1673 = vunpack.c.l.b16 %v1641
  %v1674 = vunpack.c.l.b16 %v1642
  %v1675 = vunpack.c.l.b16 %v1643
  %v1676 = vpack.c.b16 %v1661, %v1660
  %v1677 = vpack.c.b16 %v1663, %v1662
  %v1678 = vpack.c.b16 %v1665, %v1664
  %v1679 = vpack.c.b16 %v1667, %v1666
  %v1680 = vpack.c.b16 %v1669, %v1668
  %v1681 = vpack.c.b16 %v1671, %v1670
  %v1682 = vpack.c.b16 %v1673, %v1672
  %v1683 = vpack.c.b16 %v1675, %v1674
  %1692 = vmatpush.bf16.msra.mxu0 %v1683
  %1693 = vmatpush.bf16.msra.mxu0 %v1682
  %1694 = vmatpush.bf16.msra.mxu0 %v1681
  %1695 = vmatpush.bf16.msra.mxu0 %v1680
  %1696 = vmatpush.bf16.msra.mxu0 %v1679
  %1697 = vmatpush.bf16.msra.mxu0 %v1678
  %1698 = vmatpush.bf16.msra.mxu0 %v1677
  %1699 = vmatpush.bf16.msra.mxu0 %v1676
  %1700 = vmatmul.bf16.gmra.mxu0 %v1626
  %v1701 = vpop.f32.mrf.mxu0
  %v1702 = vadd.f32 0.0, %v1701
  %v1703 = vpop.f32.mrf.mxu0
  %1704 = vdwg.mxu0
  %v1721 = vunpack.c.l.b16 %v1592
  %v1722 = vunpack.c.l.b16 %v1593
  %v1723 = vunpack.c.l.b16 %v1594
  %v1724 = vunpack.c.l.b16 %v1595
  %v1725 = vunpack.c.l.b16 %v1596
  %v1726 = vunpack.c.l.b16 %v1597
  %v1727 = vunpack.c.l.b16 %v1598
  %v1728 = vunpack.c.l.b16 %v1599
  %v1729 = vunpack.c.l.b16 %v1600
  %v1730 = vunpack.c.l.b16 %v1601
  %v1731 = vunpack.c.l.b16 %v1602
  %v1732 = vunpack.c.l.b16 %v1603
  %v1733 = vunpack.c.l.b16 %v1604
  %v1734 = vunpack.c.l.b16 %v1605
  %v1735 = vunpack.c.l.b16 %v1606
  %v1736 = vunpack.c.l.b16 %v1607
  %v1737 = vpack.c.b16 %v1722, %v1721
  %v1738 = vpack.c.b16 %v1724, %v1723
  %v1739 = vpack.c.b16 %v1726, %v1725
  %v1740 = vpack.c.b16 %v1728, %v1727
  %v1741 = vpack.c.b16 %v1730, %v1729
  %v1742 = vpack.c.b16 %v1732, %v1731
  %v1743 = vpack.c.b16 %v1734, %v1733
  %v1744 = vpack.c.b16 %v1736, %v1735
  %1753 = vmatpush.bf16.msra.mxu0 %v1744
  %1754 = vmatpush.bf16.msra.mxu0 %v1743
  %1755 = vmatpush.bf16.msra.mxu0 %v1742
  %1756 = vmatpush.bf16.msra.mxu0 %v1741
  %1757 = vmatpush.bf16.msra.mxu0 %v1740
  %1758 = vmatpush.bf16.msra.mxu0 %v1739
  %1759 = vmatpush.bf16.msra.mxu0 %v1738
  %1760 = vmatpush.bf16.msra.mxu0 %v1737
  %1761 = vmatmul.bf16.gmra.mxu0 %v1591
  %v1762 = vpop.f32.mrf.mxu0
  %v1763 = vadd.f32 %v1702, %v1762
  %v1764 = vpop.f32.mrf.mxu0
  %1765 = vdwg.mxu0
  %s1766 = scalar_lea.vmem %s8, 2
  %v1767 = vld [vmem:[%s1766] sm:$0x1]
  %v1769 = vsel %vm1571, %v1767, 0
  %1771 = vmatpush.bf16.msra.mxu0 0
  %1772 = vmatpush.bf16.msra.mxu0 0
  %1773 = vmatpush.bf16.msra.mxu0 0
  %1774 = vmatpush.bf16.msra.mxu0 0
  %1775 = vmatpush.bf16.msra.mxu0 0
  %1776 = vmatpush.bf16.msra.mxu0 0
  %1777 = vmatpush.bf16.msra.mxu0 %v1576
  %1778 = vmatpush.bf16.msra.mxu0 %v1568
  %1779 = vmatmul.bf16.gmra.mxu0 %v1769
  %v1780 = vpop.f32.mrf.mxu0
  %v1781 = vadd.f32 0.0, %v1780
  %v1782 = vpop.f32.mrf.mxu0
  %1783 = vdwg.mxu0
  %v1784 = vpack.c.bf16 %v1781, %v1781
  %s1785 = scalar_lea.vmem %s9, 128
  %v1786 = vld [vmem:[%s1785] sm:$0xf]
  %v1787 = vld [vmem:[%s1785 + $0x4] sm:$0xf]
  %v1788 = vld [vmem:[%s1785 + $0x8] sm:$0xf]
  %v1789 = vld [vmem:[%s1785 + $0xc] sm:$0xf]
  %v1790 = vld [vmem:[%s1785 + $0x10] sm:$0xf]
  %v1791 = vld [vmem:[%s1785 + $0x14] sm:$0xf]
  %v1792 = vld [vmem:[%s1785 + $0x18] sm:$0xf]
  %v1793 = vld [vmem:[%s1785 + $0x1c] sm:$0xf]
  %v1794 = vld [vmem:[%s1785 + $0x20] sm:$0xf]
  %v1795 = vld [vmem:[%s1785 + $0x24] sm:$0xf]
  %v1796 = vld [vmem:[%s1785 + $0x28] sm:$0xf]
  %v1797 = vld [vmem:[%s1785 + $0x2c] sm:$0xf]
  %v1798 = vld [vmem:[%s1785 + $0x30] sm:$0xf]
  %v1799 = vld [vmem:[%s1785 + $0x34] sm:$0xf]
  %v1800 = vld [vmem:[%s1785 + $0x38] sm:$0xf]
  %v1801 = vld [vmem:[%s1785 + $0x3c] sm:$0xf]
  %v1818 = vunpack.c.l.b16 %v1786
  %v1819 = vunpack.c.l.b16 %v1787
  %v1820 = vunpack.c.l.b16 %v1788
  %v1821 = vunpack.c.l.b16 %v1789
  %v1822 = vunpack.c.l.b16 %v1790
  %v1823 = vunpack.c.l.b16 %v1791
  %v1824 = vunpack.c.l.b16 %v1792
  %v1825 = vunpack.c.l.b16 %v1793
  %v1826 = vunpack.c.l.b16 %v1794
  %v1827 = vunpack.c.l.b16 %v1795
  %v1828 = vunpack.c.l.b16 %v1796
  %v1829 = vunpack.c.l.b16 %v1797
  %v1830 = vunpack.c.l.b16 %v1798
  %v1831 = vunpack.c.l.b16 %v1799
  %v1832 = vunpack.c.l.b16 %v1800
  %v1833 = vunpack.c.l.b16 %v1801
  %v1834 = vpack.c.b16 %v1819, %v1818
  %v1835 = vpack.c.b16 %v1821, %v1820
  %v1836 = vpack.c.b16 %v1823, %v1822
  %v1837 = vpack.c.b16 %v1825, %v1824
  %v1838 = vpack.c.b16 %v1827, %v1826
  %v1839 = vpack.c.b16 %v1829, %v1828
  %v1840 = vpack.c.b16 %v1831, %v1830
  %v1841 = vpack.c.b16 %v1833, %v1832
  %1850 = vmatpush.bf16.msra.mxu0 %v1841
  %1851 = vmatpush.bf16.msra.mxu0 %v1840
  %1852 = vmatpush.bf16.msra.mxu0 %v1839
  %1853 = vmatpush.bf16.msra.mxu0 %v1838
  %1854 = vmatpush.bf16.msra.mxu0 %v1837
  %1855 = vmatpush.bf16.msra.mxu0 %v1836
  %1856 = vmatpush.bf16.msra.mxu0 %v1835
  %1857 = vmatpush.bf16.msra.mxu0 %v1834
  %1858 = vmatmul.bf16.gmra.mxu0 %v1784
  %v1859 = vpop.f32.mrf.mxu0
  %v1860 = vadd.f32 0.0, %v1859
  %v1861 = vpop.f32.mrf.mxu0
  %1862 = vdwg.mxu0
  %v1863 = vadd.f32 %v1763, %v1860
  %s1864 = scalar_lea.vmem %s8, 3
  %v1865 = vld [vmem:[%s1864] sm:$0x1]
  %v1867 = vsel %vm1571, %v1865, 0
  %1869 = vmatpush.bf16.msra.mxu0 0
  %1870 = vmatpush.bf16.msra.mxu0 0
  %1871 = vmatpush.bf16.msra.mxu0 0
  %1872 = vmatpush.bf16.msra.mxu0 0
  %1873 = vmatpush.bf16.msra.mxu0 0
  %1874 = vmatpush.bf16.msra.mxu0 0
  %1875 = vmatpush.bf16.msra.mxu0 %v1576
  %1876 = vmatpush.bf16.msra.mxu0 %v1568
  %1877 = vmatmul.bf16.gmra.mxu0 %v1867
  %v1878 = vpop.f32.mrf.mxu0
  %v1879 = vadd.f32 0.0, %v1878
  %v1880 = vpop.f32.mrf.mxu0
  %1881 = vdwg.mxu0
  %v1882 = vpack.c.bf16 %v1879, %v1879
  %s1883 = scalar_lea.vmem %s9, 192
  %v1884 = vld [vmem:[%s1883] sm:$0xf]
  %v1885 = vld [vmem:[%s1883 + $0x4] sm:$0xf]
  %v1886 = vld [vmem:[%s1883 + $0x8] sm:$0xf]
  %v1887 = vld [vmem:[%s1883 + $0xc] sm:$0xf]
  %v1888 = vld [vmem:[%s1883 + $0x10] sm:$0xf]
  %v1889 = vld [vmem:[%s1883 + $0x14] sm:$0xf]
  %v1890 = vld [vmem:[%s1883 + $0x18] sm:$0xf]
  %v1891 = vld [vmem:[%s1883 + $0x1c] sm:$0xf]
  %v1892 = vld [vmem:[%s1883 + $0x20] sm:$0xf]
  %v1893 = vld [vmem:[%s1883 + $0x24] sm:$0xf]
  %v1894 = vld [vmem:[%s1883 + $0x28] sm:$0xf]
  %v1895 = vld [vmem:[%s1883 + $0x2c] sm:$0xf]
  %v1896 = vld [vmem:[%s1883 + $0x30] sm:$0xf]
  %v1897 = vld [vmem:[%s1883 + $0x34] sm:$0xf]
  %v1898 = vld [vmem:[%s1883 + $0x38] sm:$0xf]
  %v1899 = vld [vmem:[%s1883 + $0x3c] sm:$0xf]
  %v1916 = vunpack.c.l.b16 %v1884
  %v1917 = vunpack.c.l.b16 %v1885
  %v1918 = vunpack.c.l.b16 %v1886
  %v1919 = vunpack.c.l.b16 %v1887
  %v1920 = vunpack.c.l.b16 %v1888
  %v1921 = vunpack.c.l.b16 %v1889
  %v1922 = vunpack.c.l.b16 %v1890
  %v1923 = vunpack.c.l.b16 %v1891
  %v1924 = vunpack.c.l.b16 %v1892
  %v1925 = vunpack.c.l.b16 %v1893
  %v1926 = vunpack.c.l.b16 %v1894
  %v1927 = vunpack.c.l.b16 %v1895
  %v1928 = vunpack.c.l.b16 %v1896
  %v1929 = vunpack.c.l.b16 %v1897
  %v1930 = vunpack.c.l.b16 %v1898
  %v1931 = vunpack.c.l.b16 %v1899
  %v1932 = vpack.c.b16 %v1917, %v1916
  %v1933 = vpack.c.b16 %v1919, %v1918
  %v1934 = vpack.c.b16 %v1921, %v1920
  %v1935 = vpack.c.b16 %v1923, %v1922
  %v1936 = vpack.c.b16 %v1925, %v1924
  %v1937 = vpack.c.b16 %v1927, %v1926
  %v1938 = vpack.c.b16 %v1929, %v1928
  %v1939 = vpack.c.b16 %v1931, %v1930
  %1948 = vmatpush.bf16.msra.mxu0 %v1939
  %1949 = vmatpush.bf16.msra.mxu0 %v1938
  %1950 = vmatpush.bf16.msra.mxu0 %v1937
  %1951 = vmatpush.bf16.msra.mxu0 %v1936
  %1952 = vmatpush.bf16.msra.mxu0 %v1935
  %1953 = vmatpush.bf16.msra.mxu0 %v1934
  %1954 = vmatpush.bf16.msra.mxu0 %v1933
  %1955 = vmatpush.bf16.msra.mxu0 %v1932
  %1956 = vmatmul.bf16.gmra.mxu0 %v1882
  %v1957 = vpop.f32.mrf.mxu0
  %v1958 = vadd.f32 0.0, %v1957
  %v1959 = vpop.f32.mrf.mxu0
  %1960 = vdwg.mxu0
  %v1961 = vadd.f32 %v1863, %v1958
  %s1962 = scalar_lea.vmem %s8, 4
  %v1963 = vld [vmem:[%s1962] sm:$0x1]
  %v1965 = vsel %vm1571, %v1963, 0
  %1967 = vmatpush.bf16.msra.mxu0 0
  %1968 = vmatpush.bf16.msra.mxu0 0
  %1969 = vmatpush.bf16.msra.mxu0 0
  %1970 = vmatpush.bf16.msra.mxu0 0
  %1971 = vmatpush.bf16.msra.mxu0 0
  %1972 = vmatpush.bf16.msra.mxu0 0
  %1973 = vmatpush.bf16.msra.mxu0 %v1576
  %1974 = vmatpush.bf16.msra.mxu0 %v1568
  %1975 = vmatmul.bf16.gmra.mxu0 %v1965
  %v1976 = vpop.f32.mrf.mxu0
  %v1977 = vadd.f32 0.0, %v1976
  %v1978 = vpop.f32.mrf.mxu0
  %1979 = vdwg.mxu0
  %v1980 = vpack.c.bf16 %v1977, %v1977
  %s1981 = scalar_lea.vmem %s9, 256
  %v1982 = vld [vmem:[%s1981] sm:$0xf]
  %v1983 = vld [vmem:[%s1981 + $0x4] sm:$0xf]
  %v1984 = vld [vmem:[%s1981 + $0x8] sm:$0xf]
  %v1985 = vld [vmem:[%s1981 + $0xc] sm:$0xf]
  %v1986 = vld [vmem:[%s1981 + $0x10] sm:$0xf]
  %v1987 = vld [vmem:[%s1981 + $0x14] sm:$0xf]
  %v1988 = vld [vmem:[%s1981 + $0x18] sm:$0xf]
  %v1989 = vld [vmem:[%s1981 + $0x1c] sm:$0xf]
  %v1990 = vld [vmem:[%s1981 + $0x20] sm:$0xf]
  %v1991 = vld [vmem:[%s1981 + $0x24] sm:$0xf]
  %v1992 = vld [vmem:[%s1981 + $0x28] sm:$0xf]
  %v1993 = vld [vmem:[%s1981 + $0x2c] sm:$0xf]
  %v1994 = vld [vmem:[%s1981 + $0x30] sm:$0xf]
  %v1995 = vld [vmem:[%s1981 + $0x34] sm:$0xf]
  %v1996 = vld [vmem:[%s1981 + $0x38] sm:$0xf]
  %v1997 = vld [vmem:[%s1981 + $0x3c] sm:$0xf]
  %v2014 = vunpack.c.l.b16 %v1982
  %v2015 = vunpack.c.l.b16 %v1983
  %v2016 = vunpack.c.l.b16 %v1984
  %v2017 = vunpack.c.l.b16 %v1985
  %v2018 = vunpack.c.l.b16 %v1986
  %v2019 = vunpack.c.l.b16 %v1987
  %v2020 = vunpack.c.l.b16 %v1988
  %v2021 = vunpack.c.l.b16 %v1989
  %v2022 = vunpack.c.l.b16 %v1990
  %v2023 = vunpack.c.l.b16 %v1991
  %v2024 = vunpack.c.l.b16 %v1992
  %v2025 = vunpack.c.l.b16 %v1993
  %v2026 = vunpack.c.l.b16 %v1994
  %v2027 = vunpack.c.l.b16 %v1995
  %v2028 = vunpack.c.l.b16 %v1996
  %v2029 = vunpack.c.l.b16 %v1997
  %v2030 = vpack.c.b16 %v2015, %v2014
  %v2031 = vpack.c.b16 %v2017, %v2016
  %v2032 = vpack.c.b16 %v2019, %v2018
  %v2033 = vpack.c.b16 %v2021, %v2020
  %v2034 = vpack.c.b16 %v2023, %v2022
  %v2035 = vpack.c.b16 %v2025, %v2024
  %v2036 = vpack.c.b16 %v2027, %v2026
  %v2037 = vpack.c.b16 %v2029, %v2028
  %2046 = vmatpush.bf16.msra.mxu0 %v2037
  %2047 = vmatpush.bf16.msra.mxu0 %v2036
  %2048 = vmatpush.bf16.msra.mxu0 %v2035
  %2049 = vmatpush.bf16.msra.mxu0 %v2034
  %2050 = vmatpush.bf16.msra.mxu0 %v2033
  %2051 = vmatpush.bf16.msra.mxu0 %v2032
  %2052 = vmatpush.bf16.msra.mxu0 %v2031
  %2053 = vmatpush.bf16.msra.mxu0 %v2030
  %2054 = vmatmul.bf16.gmra.mxu0 %v1980
  %v2055 = vpop.f32.mrf.mxu0
  %v2056 = vadd.f32 0.0, %v2055
  %v2057 = vpop.f32.mrf.mxu0
  %2058 = vdwg.mxu0
  %v2059 = vadd.f32 %v1961, %v2056
  %s2060 = scalar_lea.vmem %s8, 5
  %v2061 = vld [vmem:[%s2060] sm:$0x1]
  %v2063 = vsel %vm1571, %v2061, 0
  %2065 = vmatpush.bf16.msra.mxu0 0
  %2066 = vmatpush.bf16.msra.mxu0 0
  %2067 = vmatpush.bf16.msra.mxu0 0
  %2068 = vmatpush.bf16.msra.mxu0 0
  %2069 = vmatpush.bf16.msra.mxu0 0
  %2070 = vmatpush.bf16.msra.mxu0 0
  %2071 = vmatpush.bf16.msra.mxu0 %v1576
  %2072 = vmatpush.bf16.msra.mxu0 %v1568
  %2073 = vmatmul.bf16.gmra.mxu0 %v2063
  %v2074 = vpop.f32.mrf.mxu0
  %v2075 = vadd.f32 0.0, %v2074
  %v2076 = vpop.f32.mrf.mxu0
  %2077 = vdwg.mxu0
  %v2078 = vpack.c.bf16 %v2075, %v2075
  %s2079 = scalar_lea.vmem %s9, 320
  %v2080 = vld [vmem:[%s2079] sm:$0xf]
  %v2081 = vld [vmem:[%s2079 + $0x4] sm:$0xf]
  %v2082 = vld [vmem:[%s2079 + $0x8] sm:$0xf]
  %v2083 = vld [vmem:[%s2079 + $0xc] sm:$0xf]
  %v2084 = vld [vmem:[%s2079 + $0x10] sm:$0xf]
  %v2085 = vld [vmem:[%s2079 + $0x14] sm:$0xf]
  %v2086 = vld [vmem:[%s2079 + $0x18] sm:$0xf]
  %v2087 = vld [vmem:[%s2079 + $0x1c] sm:$0xf]
  %v2088 = vld [vmem:[%s2079 + $0x20] sm:$0xf]
  %v2089 = vld [vmem:[%s2079 + $0x24] sm:$0xf]
  %v2090 = vld [vmem:[%s2079 + $0x28] sm:$0xf]
  %v2091 = vld [vmem:[%s2079 + $0x2c] sm:$0xf]
  %v2092 = vld [vmem:[%s2079 + $0x30] sm:$0xf]
  %v2093 = vld [vmem:[%s2079 + $0x34] sm:$0xf]
  %v2094 = vld [vmem:[%s2079 + $0x38] sm:$0xf]
  %v2095 = vld [vmem:[%s2079 + $0x3c] sm:$0xf]
  %v2112 = vunpack.c.l.b16 %v2080
  %v2113 = vunpack.c.l.b16 %v2081
  %v2114 = vunpack.c.l.b16 %v2082
  %v2115 = vunpack.c.l.b16 %v2083
  %v2116 = vunpack.c.l.b16 %v2084
  %v2117 = vunpack.c.l.b16 %v2085
  %v2118 = vunpack.c.l.b16 %v2086
  %v2119 = vunpack.c.l.b16 %v2087
  %v2120 = vunpack.c.l.b16 %v2088
  %v2121 = vunpack.c.l.b16 %v2089
  %v2122 = vunpack.c.l.b16 %v2090
  %v2123 = vunpack.c.l.b16 %v2091
  %v2124 = vunpack.c.l.b16 %v2092
  %v2125 = vunpack.c.l.b16 %v2093
  %v2126 = vunpack.c.l.b16 %v2094
  %v2127 = vunpack.c.l.b16 %v2095
  %v2128 = vpack.c.b16 %v2113, %v2112
  %v2129 = vpack.c.b16 %v2115, %v2114
  %v2130 = vpack.c.b16 %v2117, %v2116
  %v2131 = vpack.c.b16 %v2119, %v2118
  %v2132 = vpack.c.b16 %v2121, %v2120
  %v2133 = vpack.c.b16 %v2123, %v2122
  %v2134 = vpack.c.b16 %v2125, %v2124
  %v2135 = vpack.c.b16 %v2127, %v2126
  %2144 = vmatpush.bf16.msra.mxu0 %v2135
  %2145 = vmatpush.bf16.msra.mxu0 %v2134
  %2146 = vmatpush.bf16.msra.mxu0 %v2133
  %2147 = vmatpush.bf16.msra.mxu0 %v2132
  %2148 = vmatpush.bf16.msra.mxu0 %v2131
  %2149 = vmatpush.bf16.msra.mxu0 %v2130
  %2150 = vmatpush.bf16.msra.mxu0 %v2129
  %2151 = vmatpush.bf16.msra.mxu0 %v2128
  %2152 = vmatmul.bf16.gmra.mxu0 %v2078
  %v2153 = vpop.f32.mrf.mxu0
  %v2154 = vadd.f32 0.0, %v2153
  %v2155 = vpop.f32.mrf.mxu0
  %2156 = vdwg.mxu0
  %v2157 = vadd.f32 %v2059, %v2154
  %s2158 = scalar_lea.vmem %s8, 6
  %v2159 = vld [vmem:[%s2158] sm:$0x1]
  %v2161 = vsel %vm1571, %v2159, 0
  %2163 = vmatpush.bf16.msra.mxu0 0
  %2164 = vmatpush.bf16.msra.mxu0 0
  %2165 = vmatpush.bf16.msra.mxu0 0
  %2166 = vmatpush.bf16.msra.mxu0 0
  %2167 = vmatpush.bf16.msra.mxu0 0
  %2168 = vmatpush.bf16.msra.mxu0 0
  %2169 = vmatpush.bf16.msra.mxu0 %v1576
  %2170 = vmatpush.bf16.msra.mxu0 %v1568
  %2171 = vmatmul.bf16.gmra.mxu0 %v2161
  %v2172 = vpop.f32.mrf.mxu0
  %v2173 = vadd.f32 0.0, %v2172
  %v2174 = vpop.f32.mrf.mxu0
  %2175 = vdwg.mxu0
  %v2176 = vpack.c.bf16 %v2173, %v2173
  %s2177 = scalar_lea.vmem %s9, 384
  %v2178 = vld [vmem:[%s2177] sm:$0xf]
  %v2179 = vld [vmem:[%s2177 + $0x4] sm:$0xf]
  %v2180 = vld [vmem:[%s2177 + $0x8] sm:$0xf]
  %v2181 = vld [vmem:[%s2177 + $0xc] sm:$0xf]
  %v2182 = vld [vmem:[%s2177 + $0x10] sm:$0xf]
  %v2183 = vld [vmem:[%s2177 + $0x14] sm:$0xf]
  %v2184 = vld [vmem:[%s2177 + $0x18] sm:$0xf]
  %v2185 = vld [vmem:[%s2177 + $0x1c] sm:$0xf]
  %v2186 = vld [vmem:[%s2177 + $0x20] sm:$0xf]
  %v2187 = vld [vmem:[%s2177 + $0x24] sm:$0xf]
  %v2188 = vld [vmem:[%s2177 + $0x28] sm:$0xf]
  %v2189 = vld [vmem:[%s2177 + $0x2c] sm:$0xf]
  %v2190 = vld [vmem:[%s2177 + $0x30] sm:$0xf]
  %v2191 = vld [vmem:[%s2177 + $0x34] sm:$0xf]
  %v2192 = vld [vmem:[%s2177 + $0x38] sm:$0xf]
  %v2193 = vld [vmem:[%s2177 + $0x3c] sm:$0xf]
  %v2210 = vunpack.c.l.b16 %v2178
  %v2211 = vunpack.c.l.b16 %v2179
  %v2212 = vunpack.c.l.b16 %v2180
  %v2213 = vunpack.c.l.b16 %v2181
  %v2214 = vunpack.c.l.b16 %v2182
  %v2215 = vunpack.c.l.b16 %v2183
  %v2216 = vunpack.c.l.b16 %v2184
  %v2217 = vunpack.c.l.b16 %v2185
  %v2218 = vunpack.c.l.b16 %v2186
  %v2219 = vunpack.c.l.b16 %v2187
  %v2220 = vunpack.c.l.b16 %v2188
  %v2221 = vunpack.c.l.b16 %v2189
  %v2222 = vunpack.c.l.b16 %v2190
  %v2223 = vunpack.c.l.b16 %v2191
  %v2224 = vunpack.c.l.b16 %v2192
  %v2225 = vunpack.c.l.b16 %v2193
  %v2226 = vpack.c.b16 %v2211, %v2210
  %v2227 = vpack.c.b16 %v2213, %v2212
  %v2228 = vpack.c.b16 %v2215, %v2214
  %v2229 = vpack.c.b16 %v2217, %v2216
  %v2230 = vpack.c.b16 %v2219, %v2218
  %v2231 = vpack.c.b16 %v2221, %v2220
  %v2232 = vpack.c.b16 %v2223, %v2222
  %v2233 = vpack.c.b16 %v2225, %v2224
  %2242 = vmatpush.bf16.msra.mxu0 %v2233
  %2243 = vmatpush.bf16.msra.mxu0 %v2232
  %2244 = vmatpush.bf16.msra.mxu0 %v2231
  %2245 = vmatpush.bf16.msra.mxu0 %v2230
  %2246 = vmatpush.bf16.msra.mxu0 %v2229
  %2247 = vmatpush.bf16.msra.mxu0 %v2228
  %2248 = vmatpush.bf16.msra.mxu0 %v2227
  %2249 = vmatpush.bf16.msra.mxu0 %v2226
  %2250 = vmatmul.bf16.gmra.mxu0 %v2176
  %v2251 = vpop.f32.mrf.mxu0
  %v2252 = vadd.f32 0.0, %v2251
  %v2253 = vpop.f32.mrf.mxu0
  %2254 = vdwg.mxu0
  %v2255 = vadd.f32 %v2157, %v2252
  %s2256 = scalar_lea.vmem %s8, 7
  %v2257 = vld [vmem:[%s2256] sm:$0x1]
  %v2259 = vsel %vm1571, %v2257, 0
  %2261 = vmatpush.bf16.msra.mxu0 0
  %2262 = vmatpush.bf16.msra.mxu0 0
  %2263 = vmatpush.bf16.msra.mxu0 0
  %2264 = vmatpush.bf16.msra.mxu0 0
  %2265 = vmatpush.bf16.msra.mxu0 0
  %2266 = vmatpush.bf16.msra.mxu0 0
  %2267 = vmatpush.bf16.msra.mxu0 %v1576
  %2268 = vmatpush.bf16.msra.mxu0 %v1568
  %2269 = vmatmul.bf16.gmra.mxu0 %v2259
  %v2270 = vpop.f32.mrf.mxu0
  %v2271 = vadd.f32 0.0, %v2270
  %v2272 = vpop.f32.mrf.mxu0
  %2273 = vdwg.mxu0
  %v2274 = vpack.c.bf16 %v2271, %v2271
  %s2275 = scalar_lea.vmem %s9, 448
  %v2276 = vld [vmem:[%s2275] sm:$0xf]
  %v2277 = vld [vmem:[%s2275 + $0x4] sm:$0xf]
  %v2278 = vld [vmem:[%s2275 + $0x8] sm:$0xf]
  %v2279 = vld [vmem:[%s2275 + $0xc] sm:$0xf]
  %v2280 = vld [vmem:[%s2275 + $0x10] sm:$0xf]
  %v2281 = vld [vmem:[%s2275 + $0x14] sm:$0xf]
  %v2282 = vld [vmem:[%s2275 + $0x18] sm:$0xf]
  %v2283 = vld [vmem:[%s2275 + $0x1c] sm:$0xf]
  %v2284 = vld [vmem:[%s2275 + $0x20] sm:$0xf]
  %v2285 = vld [vmem:[%s2275 + $0x24] sm:$0xf]
  %v2286 = vld [vmem:[%s2275 + $0x28] sm:$0xf]
  %v2287 = vld [vmem:[%s2275 + $0x2c] sm:$0xf]
  %v2288 = vld [vmem:[%s2275 + $0x30] sm:$0xf]
  %v2289 = vld [vmem:[%s2275 + $0x34] sm:$0xf]
  %v2290 = vld [vmem:[%s2275 + $0x38] sm:$0xf]
  %v2291 = vld [vmem:[%s2275 + $0x3c] sm:$0xf]
  %v2308 = vunpack.c.l.b16 %v2276
  %v2309 = vunpack.c.l.b16 %v2277
  %v2310 = vunpack.c.l.b16 %v2278
  %v2311 = vunpack.c.l.b16 %v2279
  %v2312 = vunpack.c.l.b16 %v2280
  %v2313 = vunpack.c.l.b16 %v2281
  %v2314 = vunpack.c.l.b16 %v2282
  %v2315 = vunpack.c.l.b16 %v2283
  %v2316 = vunpack.c.l.b16 %v2284
  %v2317 = vunpack.c.l.b16 %v2285
  %v2318 = vunpack.c.l.b16 %v2286
  %v2319 = vunpack.c.l.b16 %v2287
  %v2320 = vunpack.c.l.b16 %v2288
  %v2321 = vunpack.c.l.b16 %v2289
  %v2322 = vunpack.c.l.b16 %v2290
  %v2323 = vunpack.c.l.b16 %v2291
  %v2324 = vpack.c.b16 %v2309, %v2308
  %v2325 = vpack.c.b16 %v2311, %v2310
  %v2326 = vpack.c.b16 %v2313, %v2312
  %v2327 = vpack.c.b16 %v2315, %v2314
  %v2328 = vpack.c.b16 %v2317, %v2316
  %v2329 = vpack.c.b16 %v2319, %v2318
  %v2330 = vpack.c.b16 %v2321, %v2320
  %v2331 = vpack.c.b16 %v2323, %v2322
  %2340 = vmatpush.bf16.msra.mxu0 %v2331
  %2341 = vmatpush.bf16.msra.mxu0 %v2330
  %2342 = vmatpush.bf16.msra.mxu0 %v2329
  %2343 = vmatpush.bf16.msra.mxu0 %v2328
  %2344 = vmatpush.bf16.msra.mxu0 %v2327
  %2345 = vmatpush.bf16.msra.mxu0 %v2326
  %2346 = vmatpush.bf16.msra.mxu0 %v2325
  %2347 = vmatpush.bf16.msra.mxu0 %v2324
  %2348 = vmatmul.bf16.gmra.mxu0 %v2274
  %v2349 = vpop.f32.mrf.mxu0
  %v2350 = vadd.f32 0.0, %v2349
  %v2351 = vpop.f32.mrf.mxu0
  %2352 = vdwg.mxu0
  %v2353 = vadd.f32 %v2255, %v2350
  %s2354 = scalar_lea.vmem %s8, 8
  %v2355 = vld [vmem:[%s2354] sm:$0x1]
  %v2357 = vsel %vm1571, %v2355, 0
  %2359 = vmatpush.bf16.msra.mxu0 0
  %2360 = vmatpush.bf16.msra.mxu0 0
  %2361 = vmatpush.bf16.msra.mxu0 0
  %2362 = vmatpush.bf16.msra.mxu0 0
  %2363 = vmatpush.bf16.msra.mxu0 0
  %2364 = vmatpush.bf16.msra.mxu0 0
  %2365 = vmatpush.bf16.msra.mxu0 %v1576
  %2366 = vmatpush.bf16.msra.mxu0 %v1568
  %2367 = vmatmul.bf16.gmra.mxu0 %v2357
  %v2368 = vpop.f32.mrf.mxu0
  %v2369 = vadd.f32 0.0, %v2368
  %v2370 = vpop.f32.mrf.mxu0
  %2371 = vdwg.mxu0
  %v2372 = vpack.c.bf16 %v2369, %v2369
  %s2373 = scalar_lea.vmem %s9, 512
  %v2374 = vld [vmem:[%s2373] sm:$0xf]
  %v2375 = vld [vmem:[%s2373 + $0x4] sm:$0xf]
  %v2376 = vld [vmem:[%s2373 + $0x8] sm:$0xf]
  %v2377 = vld [vmem:[%s2373 + $0xc] sm:$0xf]
  %v2378 = vld [vmem:[%s2373 + $0x10] sm:$0xf]
  %v2379 = vld [vmem:[%s2373 + $0x14] sm:$0xf]
  %v2380 = vld [vmem:[%s2373 + $0x18] sm:$0xf]
  %v2381 = vld [vmem:[%s2373 + $0x1c] sm:$0xf]
  %v2382 = vld [vmem:[%s2373 + $0x20] sm:$0xf]
  %v2383 = vld [vmem:[%s2373 + $0x24] sm:$0xf]
  %v2384 = vld [vmem:[%s2373 + $0x28] sm:$0xf]
  %v2385 = vld [vmem:[%s2373 + $0x2c] sm:$0xf]
  %v2386 = vld [vmem:[%s2373 + $0x30] sm:$0xf]
  %v2387 = vld [vmem:[%s2373 + $0x34] sm:$0xf]
  %v2388 = vld [vmem:[%s2373 + $0x38] sm:$0xf]
  %v2389 = vld [vmem:[%s2373 + $0x3c] sm:$0xf]
  %v2406 = vunpack.c.l.b16 %v2374
  %v2407 = vunpack.c.l.b16 %v2375
  %v2408 = vunpack.c.l.b16 %v2376
  %v2409 = vunpack.c.l.b16 %v2377
  %v2410 = vunpack.c.l.b16 %v2378
  %v2411 = vunpack.c.l.b16 %v2379
  %v2412 = vunpack.c.l.b16 %v2380
  %v2413 = vunpack.c.l.b16 %v2381
  %v2414 = vunpack.c.l.b16 %v2382
  %v2415 = vunpack.c.l.b16 %v2383
  %v2416 = vunpack.c.l.b16 %v2384
  %v2417 = vunpack.c.l.b16 %v2385
  %v2418 = vunpack.c.l.b16 %v2386
  %v2419 = vunpack.c.l.b16 %v2387
  %v2420 = vunpack.c.l.b16 %v2388
  %v2421 = vunpack.c.l.b16 %v2389
  %v2422 = vpack.c.b16 %v2407, %v2406
  %v2423 = vpack.c.b16 %v2409, %v2408
  %v2424 = vpack.c.b16 %v2411, %v2410
  %v2425 = vpack.c.b16 %v2413, %v2412
  %v2426 = vpack.c.b16 %v2415, %v2414
  %v2427 = vpack.c.b16 %v2417, %v2416
  %v2428 = vpack.c.b16 %v2419, %v2418
  %v2429 = vpack.c.b16 %v2421, %v2420
  %2438 = vmatpush.bf16.msra.mxu0 %v2429
  %2439 = vmatpush.bf16.msra.mxu0 %v2428
  %2440 = vmatpush.bf16.msra.mxu0 %v2427
  %2441 = vmatpush.bf16.msra.mxu0 %v2426
  %2442 = vmatpush.bf16.msra.mxu0 %v2425
  %2443 = vmatpush.bf16.msra.mxu0 %v2424
  %2444 = vmatpush.bf16.msra.mxu0 %v2423
  %2445 = vmatpush.bf16.msra.mxu0 %v2422
  %2446 = vmatmul.bf16.gmra.mxu0 %v2372
  %v2447 = vpop.f32.mrf.mxu0
  %v2448 = vadd.f32 0.0, %v2447
  %v2449 = vpop.f32.mrf.mxu0
  %2450 = vdwg.mxu0
  %v2451 = vadd.f32 %v2353, %v2448
  %v2452 = vld [vmem:[%s10] sm:$0x1]
  %v2454 = vperm.slane %v2452, 0
  %v2456 = vadd.f32 %v2451, %v2454
  %v2457 = vmax.f32 %v2456, 0.0
  %v2458 = vpack.c.bf16 %v2457, %v2457
  %v2459 = vld [vmem:[%s11] sm:$0x1]
  %vm2460 = vcmask 15360
  %v2462 = vsel %vm2460, %v2459, 0
  %v2465 = vsel %vm696, %v2458, 0
  %2467 = vmatpush.bf16.msra.mxu0 0
  %2468 = vmatpush.bf16.msra.mxu0 0
  %2469 = vmatpush.bf16.msra.mxu0 0
  %2470 = vmatpush.bf16.msra.mxu0 0
  %2471 = vmatpush.bf16.msra.mxu0 0
  %2472 = vmatpush.bf16.msra.mxu0 0
  %2473 = vmatpush.bf16.msra.mxu0 0
  %2474 = vmatpush.bf16.msra.mxu0 %v2465
  %2475 = vmatmul.bf16.gmra.mxu0 %v2462
  %v2476 = vpop.f32.mrf.mxu0
  %v2477 = vadd.f32 0.0, %v2476
  %v2478 = vpop.f32.mrf.mxu0
  %2479 = vdwg.mxu0
  %v2480 = vpack.c.bf16 %v2477, %v2477
  %v2481 = vld [vmem:[%s12] sm:$0xf]
  %v2482 = vld [vmem:[%s12 + $0x4] sm:$0xf]
  %v2483 = vld [vmem:[%s12 + $0x8] sm:$0xf]
  %v2484 = vld [vmem:[%s12 + $0xc] sm:$0xf]
  %v2485 = vld [vmem:[%s12 + $0x10] sm:$0xf]
  %v2486 = vld [vmem:[%s12 + $0x14] sm:$0xf]
  %v2487 = vld [vmem:[%s12 + $0x18] sm:$0xf]
  %v2488 = vld [vmem:[%s12 + $0x1c] sm:$0xf]
  %v2489 = vld [vmem:[%s12 + $0x20] sm:$0xf]
  %v2490 = vld [vmem:[%s12 + $0x24] sm:$0xf]
  %v2491 = vld [vmem:[%s12 + $0x28] sm:$0xf]
  %v2492 = vld [vmem:[%s12 + $0x2c] sm:$0xf]
  %v2493 = vld [vmem:[%s12 + $0x30] sm:$0xf]
  %v2494 = vld [vmem:[%s12 + $0x34] sm:$0xf]
  %v2495 = vld [vmem:[%s12 + $0x38] sm:$0xf]
  %v2496 = vld [vmem:[%s12 + $0x3c] sm:$0xf]
  %v2497 = vld [vmem:[%s1] sm:$0x3]
  %v2498 = vpack.c.bf16 %v2497, %v2497
  %v2499 = vld [vmem:[%s13] sm:$0x3]
  %vm2500 = vcmask 31744
  %v2502 = vsel %vm2500, %v2498, 0
  %vm2504 = vcmask 1041408
  %v2506 = vsel %vm2504, %v2499, 0
  %2508 = vmatpush.bf16.msra.mxu0 0
  %2509 = vmatpush.bf16.msra.mxu0 0
  %2510 = vmatpush.bf16.msra.mxu0 0
  %2511 = vmatpush.bf16.msra.mxu0 0
  %2512 = vmatpush.bf16.msra.mxu0 0
  %2513 = vmatpush.bf16.msra.mxu0 0
  %2514 = vmatpush.bf16.msra.mxu0 0
  %2515 = vmatpush.bf16.msra.mxu0 %v2506
  %2516 = vmatmul.bf16.gmra.mxu0 %v2502
  %v2517 = vpop.f32.mrf.mxu0
  %v2518 = vadd.f32 0.0, %v2517
  %v2519 = vpop.f32.mrf.mxu0
  %2520 = vdwg.mxu0
  %v2537 = vunpack.c.l.b16 %v2481
  %v2538 = vunpack.c.l.b16 %v2482
  %v2539 = vunpack.c.l.b16 %v2483
  %v2540 = vunpack.c.l.b16 %v2484
  %v2541 = vunpack.c.l.b16 %v2485
  %v2542 = vunpack.c.l.b16 %v2486
  %v2543 = vunpack.c.l.b16 %v2487
  %v2544 = vunpack.c.l.b16 %v2488
  %v2545 = vunpack.c.l.b16 %v2489
  %v2546 = vunpack.c.l.b16 %v2490
  %v2547 = vunpack.c.l.b16 %v2491
  %v2548 = vunpack.c.l.b16 %v2492
  %v2549 = vunpack.c.l.b16 %v2493
  %v2550 = vunpack.c.l.b16 %v2494
  %v2551 = vunpack.c.l.b16 %v2495
  %v2552 = vunpack.c.l.b16 %v2496
  %v2553 = vpack.c.b16 %v2538, %v2537
  %v2554 = vpack.c.b16 %v2540, %v2539
  %v2555 = vpack.c.b16 %v2542, %v2541
  %v2556 = vpack.c.b16 %v2544, %v2543
  %v2557 = vpack.c.b16 %v2546, %v2545
  %v2558 = vpack.c.b16 %v2548, %v2547
  %v2559 = vpack.c.b16 %v2550, %v2549
  %v2560 = vpack.c.b16 %v2552, %v2551
  %2569 = vmatpush.bf16.msra.mxu0 %v2560
  %2570 = vmatpush.bf16.msra.mxu0 %v2559
  %2571 = vmatpush.bf16.msra.mxu0 %v2558
  %2572 = vmatpush.bf16.msra.mxu0 %v2557
  %2573 = vmatpush.bf16.msra.mxu0 %v2556
  %2574 = vmatpush.bf16.msra.mxu0 %v2555
  %2575 = vmatpush.bf16.msra.mxu0 %v2554
  %2576 = vmatpush.bf16.msra.mxu0 %v2553
  %2577 = vmatmul.bf16.gmra.mxu0 %v2480
  %v2578 = vpop.f32.mrf.mxu0
  %v2579 = vadd.f32 %v2518, %v2578
  %v2580 = vpop.f32.mrf.mxu0
  %2581 = vdwg.mxu0
  %v2582 = vld [vmem:[%s2] sm:$0x3]
  %v2583 = vpack.c.bf16 %v2582, %v2582
  %v2584 = vld [vmem:[%s14] sm:$0xf]
  %vm2585 = vcmask 64512
  %v2587 = vsel %vm2585, %v2583, 0
  %vm2589 = vcmask 1043456
  %v2591 = vsel %vm2589, %v2584, 0
  %2593 = vmatpush.bf16.msra.mxu0 0
  %2594 = vmatpush.bf16.msra.mxu0 0
  %2595 = vmatpush.bf16.msra.mxu0 0
  %2596 = vmatpush.bf16.msra.mxu0 0
  %2597 = vmatpush.bf16.msra.mxu0 0
  %2598 = vmatpush.bf16.msra.mxu0 0
  %2599 = vmatpush.bf16.msra.mxu0 0
  %2600 = vmatpush.bf16.msra.mxu0 %v2591
  %2601 = vmatmul.bf16.gmra.mxu0 %v2587
  %v2602 = vpop.f32.mrf.mxu0
  %v2603 = vadd.f32 0.0, %v2602
  %v2604 = vpop.f32.mrf.mxu0
  %2605 = vdwg.mxu0
  %v2606 = vadd.f32 %v2579, %v2603
  %v2607 = vld [vmem:[%s15] sm:$0x1]
  %v2609 = vperm.slane %v2607, 0
  %v2611 = vadd.f32 %v2606, %v2609
  %v2612 = vmax.f32 %v2611, 0.0
  %v2613 = vpack.c.bf16 %v2612, %v2612
  %v2614 = vld [vmem:[%s16] sm:$0xf]
  %v2615 = vld [vmem:[%s16 + $0x4] sm:$0xf]
  %v2616 = vld [vmem:[%s16 + $0x8] sm:$0xf]
  %v2617 = vld [vmem:[%s16 + $0xc] sm:$0xf]
  %v2618 = vld [vmem:[%s16 + $0x10] sm:$0xf]
  %v2619 = vld [vmem:[%s16 + $0x14] sm:$0xf]
  %v2620 = vld [vmem:[%s16 + $0x18] sm:$0xf]
  %v2621 = vld [vmem:[%s16 + $0x1c] sm:$0xf]
  %v2622 = vld [vmem:[%s17] sm:$0x1]
  %v2624 = vperm.slane %v2622, 0
  %v2634 = vunpack.c.l.b16 %v2614
  %v2635 = vunpack.c.l.b16 %v2615
  %v2636 = vunpack.c.l.b16 %v2616
  %v2637 = vunpack.c.l.b16 %v2617
  %v2638 = vunpack.c.l.b16 %v2618
  %v2639 = vunpack.c.l.b16 %v2619
  %v2640 = vunpack.c.l.b16 %v2620
  %v2641 = vunpack.c.l.b16 %v2621
  %v2642 = vpack.c.b16 %v2635, %v2634
  %v2643 = vpack.c.b16 %v2637, %v2636
  %v2644 = vpack.c.b16 %v2639, %v2638
  %v2645 = vpack.c.b16 %v2641, %v2640
  %v2651 = vsel %vm799, %v2613, 0
  %2653 = vmatpush.bf16.msra.mxu0 0
  %2654 = vmatpush.bf16.msra.mxu0 0
  %2655 = vmatpush.bf16.msra.mxu0 0
  %2656 = vmatpush.bf16.msra.mxu0 0
  %2657 = vmatpush.bf16.msra.mxu0 %v2645
  %2658 = vmatpush.bf16.msra.mxu0 %v2644
  %2659 = vmatpush.bf16.msra.mxu0 %v2643
  %2660 = vmatpush.bf16.msra.mxu0 %v2642
  %2661 = vmatmul.bf16.gmra.mxu0 %v2651
  %v2662 = vpop.f32.mrf.mxu0
  %v2663 = vadd.f32 %v2624, %v2662
  %v2664 = vpop.f32.mrf.mxu0
  %2665 = vdwg.mxu0
  %v2666 = vmax.f32 %v2663, 0.0
  %v2667 = vpack.c.bf16 %v2666, %v2666
  %v2668 = vld [vmem:[%s18] sm:$0xf]
  %v2669 = vld [vmem:[%s18 + $0x4] sm:$0xf]
  %v2670 = vld [vmem:[%s18 + $0x8] sm:$0xf]
  %v2671 = vld [vmem:[%s18 + $0xc] sm:$0xf]
  %v2672 = vld [vmem:[%s18 + $0x10] sm:$0xf]
  %v2673 = vld [vmem:[%s18 + $0x14] sm:$0xf]
  %v2674 = vld [vmem:[%s18 + $0x18] sm:$0xf]
  %v2675 = vld [vmem:[%s18 + $0x1c] sm:$0xf]
  %v2676 = vld [vmem:[%s19] sm:$0x1]
  %v2678 = vperm.slane %v2676, 0
  %v2688 = vunpack.c.l.b16 %v2668
  %v2689 = vunpack.c.l.b16 %v2669
  %v2690 = vunpack.c.l.b16 %v2670
  %v2691 = vunpack.c.l.b16 %v2671
  %v2692 = vunpack.c.l.b16 %v2672
  %v2693 = vunpack.c.l.b16 %v2673
  %v2694 = vunpack.c.l.b16 %v2674
  %v2695 = vunpack.c.l.b16 %v2675
  %v2696 = vpack.c.b16 %v2689, %v2688
  %v2697 = vpack.c.b16 %v2691, %v2690
  %v2698 = vpack.c.b16 %v2693, %v2692
  %v2699 = vpack.c.b16 %v2695, %v2694
  %v2705 = vsel %vm799, %v2667, 0
  %2707 = vmatpush.bf16.msra.mxu0 0
  %2708 = vmatpush.bf16.msra.mxu0 0
  %2709 = vmatpush.bf16.msra.mxu0 0
  %2710 = vmatpush.bf16.msra.mxu0 0
  %2711 = vmatpush.bf16.msra.mxu0 %v2699
  %2712 = vmatpush.bf16.msra.mxu0 %v2698
  %2713 = vmatpush.bf16.msra.mxu0 %v2697
  %2714 = vmatpush.bf16.msra.mxu0 %v2696
  %2715 = vmatmul.bf16.gmra.mxu0 %v2705
  %v2716 = vpop.f32.mrf.mxu0
  %v2717 = vadd.f32 %v2678, %v2716
  %v2718 = vpop.f32.mrf.mxu0
  %2719 = vdwg.mxu0
  %vm2720 = vcmask 9216
  %2721 = vst.msk [vmem:[%s20] sm:$0x3] %vm2720, %v2717
  // Predicated region
  $region82: #{double_critic_forward.3} parent=0 // pred_check
    _
  $region83: #{double_critic_forward.3} parent=0 // pred_check_branch
    %2723 = sbr.rel (0) target = $region85
  $region84: #{double_critic_forward.3} parent=0 // pred_region
    _
  $region85: #{double_critic_forward.3} parent=0 // pred_fallthru
    _
  // Predicated region
  $region86: #{double_critic_forward.3} parent=0 // pred_check
    _
  $region87: #{double_critic_forward.3} parent=0 // pred_check_branch
    %2725 = sbr.rel (0) target = $region89
  $region88: #{double_critic_forward.3} parent=0 // pred_region
    _
  $region89: #{double_critic_forward.3} parent=0 // pred_fallthru
    _

</llo_original>
